<compile_context>
chip_gen: v7x
topology: tpu7x:2x2x1
jax: 0.10.0
libtpu: 0.0.40
codegen_flags: <defaults>
</compile_context>

<pallas_src>
import functools

import jax
import jax.numpy as jnp
from jax.experimental import pallas as pl
from jax.experimental.pallas import tpu as pltpu


def _clam_sb_kernel(h_ref, w1_ref, b1_ref, wab_ref, bab_ref, wc_ref, bc_ref,
                    wcls_ref, bcls_ref,
                    a_raw_ref, logits_ref, yprob_ref, m_out_ref,
                    m_sc, l_sc, acc_sc,
                    *, n_valid, tile_n, d_attn):
    i = pl.program_id(0)

    @pl.when(i == 0)
    def _init():
        m_sc[...] = jnp.full(m_sc.shape, -jnp.inf, jnp.float32)
        l_sc[...] = jnp.zeros(l_sc.shape, jnp.float32)
        acc_sc[...] = jnp.zeros(acc_sc.shape, jnp.float32)

    # fc: Linear(L, hidden) + ReLU   (bf16 operands, f32 accumulation)
    h1 = jnp.dot(h_ref[...], w1_ref[...],
                 preferred_element_type=jnp.float32) + b1_ref[...]
    h1 = jnp.maximum(h1, 0.0)                                   # (tile_n, hidden) f32

    # gated attention: single fused [Wa | Wb] matmul, split into tanh/sigmoid halves
    ab = jnp.dot(h1.astype(jnp.bfloat16), wab_ref[...],
                 preferred_element_type=jnp.float32) + bab_ref[...]
    a = jnp.tanh(ab[:, :d_attn])
    b = jax.nn.sigmoid(ab[:, d_attn:])
    gated = a * b                                               # (tile_n, d_attn) f32

    # attention logits directly in lane-dense row form (1, tile_n):
    #   A[0, j] = sum_k wc[0, k] * gated[j, k] + bc   (q @ k^T style dot)
    A_row = jax.lax.dot_general(
        wc_ref[...], gated,
        dimension_numbers=(((1,), (1,)), ((), ())),
        preferred_element_type=jnp.float32) + bc_ref[...]

    a_raw_ref[...] = A_row                                      # raw pre-softmax logits

    # mask padded rows of the (ragged) last tile out of the softmax
    col = jax.lax.broadcasted_iota(jnp.int32, (1, tile_n), 1) + i * tile_n
    A_m = jnp.where(col < n_valid, A_row, -jnp.inf)

    # online-softmax accumulator update
    m_new = jnp.maximum(m_sc[...], jnp.max(A_m, axis=1, keepdims=True))   # (1, 1)
    alpha = jnp.exp(m_sc[...] - m_new)                                    # (1, 1)
    p = jnp.exp(A_m - m_new)                                              # (1, tile_n)
    l_sc[...] = alpha * l_sc[...] + jnp.sum(p, axis=1, keepdims=True)
    acc_sc[...] = alpha * acc_sc[...] + jnp.dot(
        p, h1, preferred_element_type=jnp.float32)                        # (1, hidden)
    m_sc[...] = m_new

    @pl.when(i == pl.num_programs(0) - 1)
    def _finalize():
        M = acc_sc[...] * pl.reciprocal(l_sc[...], approx=True)           # (1, hidden)
        m_out_ref[...] = M
        logits = jnp.dot(M, wcls_ref[...],
                         preferred_element_type=jnp.float32) + bcls_ref[...]
        logits_ref[...] = logits
        lmax = jnp.max(logits, axis=1, keepdims=True)
        e = jnp.exp(logits - lmax)
        yprob_ref[...] = e / jnp.sum(e, axis=1, keepdims=True)


def clam_sb_forward(h, params, *, tile_n=512, attention_only=False,
                    return_features=False):
    """CLAM_SB forward. Returns (logits, Y_prob, Y_hat, A_raw, results_dict),
    or A_raw alone if attention_only=True (matching the module)."""
    N, L = h.shape
    hidden = params["w1"].shape[1]
    d_attn = params["wa"].shape[1]
    n_classes = params["wcls"].shape[1]

    grid_n = pl.cdiv(N, tile_n)
    n_pad = grid_n * tile_n

    # bf16 operands for the bandwidth/MXU-heavy matmuls; everything else f32
    h_bf = h.astype(jnp.bfloat16)
    if n_pad != N:
        h_bf = jnp.pad(h_bf, ((0, n_pad - N), (0, 0)))
    w1 = params["w1"].astype(jnp.bfloat16)
    b1 = params["b1"].astype(jnp.float32)
    wab = jnp.concatenate([params["wa"], params["wb"]], axis=1).astype(jnp.bfloat16)
    bab = jnp.concatenate([params["ba"], params["bb"]], axis=1).astype(jnp.float32)
    wc_row = params["wc"].reshape(1, d_attn).astype(jnp.float32)
    bc = params["bc"].reshape(1, 1).astype(jnp.float32)
    wcls = params["wcls"].astype(jnp.float32)
    bcls = params["bcls"].astype(jnp.float32)

    kernel = functools.partial(_clam_sb_kernel, n_valid=N, tile_n=tile_n,
                               d_attn=d_attn)
    const = lambda i: (0, 0)

    grid_spec = pltpu.PrefetchScalarGridSpec(
        num_scalar_prefetch=0,
        grid=(grid_n,),
        in_specs=[
            pl.BlockSpec((tile_n, L), lambda i: (i, 0)),       # h tile (streamed)
            pl.BlockSpec((L, hidden), const),                  # W1 (resident)
            pl.BlockSpec((1, hidden), const),                  # b1
            pl.BlockSpec((hidden, 2 * d_attn), const),         # [Wa | Wb]
            pl.BlockSpec((1, 2 * d_attn), const),              # [ba | bb]
            pl.BlockSpec((1, d_attn), const),                  # Wc (row form)
            pl.BlockSpec((1, 1), const),                       # bc
            pl.BlockSpec((hidden, n_classes), const),          # Wcls
            pl.BlockSpec((1, n_classes), const),               # bcls
        ],
        out_specs=[
            pl.BlockSpec((1, tile_n), lambda i: (0, i)),       # A_raw, lane-dense
            pl.BlockSpec((1, n_classes), const),               # logits
            pl.BlockSpec((1, n_classes), const),               # Y_prob
            pl.BlockSpec((1, hidden), const),                  # M (bag features)
        ],
        scratch_shapes=[
            pltpu.VMEM((1, 1), jnp.float32),                   # running max
            pltpu.VMEM((1, 1), jnp.float32),                   # running sum of exp
            pltpu.VMEM((1, hidden), jnp.float32),              # running exp-weighted sum of h1
        ],
    )

    out_shapes = (
        jax.ShapeDtypeStruct((1, n_pad), jnp.float32),         # A_raw (padded)
        jax.ShapeDtypeStruct((1, n_classes), jnp.float32),     # logits
        jax.ShapeDtypeStruct((1, n_classes), jnp.float32),     # Y_prob
        jax.ShapeDtypeStruct((1, hidden), jnp.float32),        # M
    )

    a_raw_pad, logits, y_prob, M = pl.pallas_call(
        kernel,
        out_shape=out_shapes,
        grid_spec=grid_spec,
        compiler_params=pltpu.CompilerParams(
            dimension_semantics=("arbitrary",),                # N axis carries accumulators
            vmem_limit_bytes=32 << 20,                         # fits v7x 64 MiB VMEM
        ),
    )(h_bf, w1, b1, wab, bab, wc_row, bc, wcls, bcls)

    A_raw = a_raw_pad[:, :N]
    if attention_only:
        return A_raw
    Y_hat = jnp.argmax(logits, axis=1, keepdims=True)
    results_dict = {}
    if return_features:
        results_dict["features"] = M
    # TODO(synk): instance_eval branch (top-k instance sampling + CE loss) not
    # implemented; it needs labels and host-side bookkeeping outside the default
    # forward path.
    # TODO(synk): v7x two-TensorCore split (per-core partial softmax state + LSE
    # merge) left to a follow-up; the "arbitrary" grid axis must stay sequential.
    return logits, y_prob, Y_hat, A_raw, results_dict


def init_params(key, L=1024, hidden=512, D=256, n_classes=2):
    """Deterministic synthetic parameters (shapes match CLAM_SB 'small').
    Linear weights stored [in_features, out_features]; biases as [1, out]."""
    ks = jax.random.split(key, 6)
    s = 0.02

    def lin(k, fan_in, fan_out):
        return (s * jax.random.normal(k, (fan_in, fan_out), jnp.float32),
                jnp.zeros((1, fan_out), jnp.float32))

    w1, b1 = lin(ks[0], L, hidden)
    wa, ba = lin(ks[1], hidden, D)
    wb, bb = lin(ks[2], hidden, D)
    wc, bc = lin(ks[3], D, 1)
    wcls, bcls = lin(ks[4], hidden, n_classes)
    b1 = 0.01 * jax.random.normal(ks[5], (1, hidden), jnp.float32)  # non-trivial bias
    return dict(w1=w1, b1=b1, wa=wa, ba=ba, wb=wb, bb=bb,
                wc=wc, bc=bc, wcls=wcls, bcls=bcls)


def _reference_forward_bf16(h, p):
    """Pure-JAX reference mirroring the kernel's dtype handling (bf16 matmul
    operands, f32 accumulation, f32 activations / softmax)."""
    D = p["wa"].shape[1]
    w1 = p["w1"].astype(jnp.bfloat16)
    wab = jnp.concatenate([p["wa"], p["wb"]], axis=1).astype(jnp.bfloat16)
    bab = jnp.concatenate([p["ba"], p["bb"]], axis=1)
    h1 = jnp.dot(h.astype(jnp.bfloat16), w1, preferred_element_type=jnp.float32) + p["b1"]
    h1 = jnp.maximum(h1, 0.0)
    ab = jnp.dot(h1.astype(jnp.bfloat16), wab, preferred_element_type=jnp.float32) + bab
    a = jnp.tanh(ab[:, :D])
    b = jax.nn.sigmoid(ab[:, D:])
    A = (a * b) @ p["wc"] + p["bc"]              # [N, 1]
    A_raw = A.T                                  # [1, N]
    w = jax.nn.softmax(A_raw, axis=1)
    M = w @ h1                                   # [1, hidden]
    logits = M @ p["wcls"] + p["bcls"]
    y_prob = jax.nn.softmax(logits, axis=1)
    y_hat = jnp.argmax(logits, axis=1, keepdims=True)
    return logits, y_prob, y_hat, A_raw


def _reference_forward_f32(h, p):
    """Pure f32 reference (module semantics), used only as a loose sanity check."""
    D = p["wa"].shape[1]
    h1 = jnp.maximum(h @ p["w1"] + p["b1"], 0.0)
    a = jnp.tanh(h1 @ p["wa"] + p["ba"])
    b = jax.nn.sigmoid(h1 @ p["wb"] + p["bb"])
    A_raw = ((a * b) @ p["wc"] + p["bc"]).T
    w = jax.nn.softmax(A_raw, axis=1)
    M = w @ h1
    logits = M @ p["wcls"] + p["bcls"]
    return logits, jax.nn.softmax(logits, axis=1), A_raw


if __name__ == "__main__":
    key = jax.random.PRNGKey(0)
    k_in, k_par = jax.random.split(key)

    # feature dims follow the module's size_dict['small']; bag of 300 instances,
    # TILE_N=128 so the test exercises multi-tile streaming + a ragged last tile.
    N, L, hidden, D, n_classes = 300, 1024, 512, 256, 2
    tile_n = 128
    h = jax.random.normal(k_in, (N, L), jnp.float32)
    params = init_params(k_par, L=L, hidden=hidden, D=D, n_classes=n_classes)

    logits, y_prob, y_hat, A_raw, results = clam_sb_forward(h, params, tile_n=tile_n)
    jax.block_until_ready((logits, y_prob, y_hat, A_raw))

    assert logits.shape == (1, n_classes) and y_prob.shape == (1, n_classes)
    assert y_hat.shape == (1, 1) and A_raw.shape == (1, N)

    # tight check against a reference with the same bf16 matmul operands
    r_logits, r_prob, r_hat, r_Araw = _reference_forward_bf16(h, params)
    assert jnp.allclose(logits, r_logits, atol=2e-3, rtol=2e-3)
    assert jnp.allclose(y_prob, r_prob, atol=2e-3, rtol=2e-3)
    assert jnp.allclose(A_raw, r_Araw, atol=2e-3, rtol=2e-3)
    assert jnp.array_equal(y_hat, r_hat)

    # loose sanity check against the full-f32 module semantics
    f_logits, f_prob, f_Araw = _reference_forward_f32(h, params)
    assert jnp.allclose(logits, f_logits, atol=5e-2, rtol=5e-2)
    assert jnp.allclose(y_prob, f_prob, atol=5e-2)
    assert jnp.allclose(A_raw, f_Araw, atol=5e-2)

    print("KERNEL_OK")
</pallas_src>

<mosaic_0001>
module attributes {stable_mosaic.version = 11 : i64} {
  func.func @_clam_sb_kernel(%arg0: i32, %arg1: memref<128x1024xbf16, #tpu.memory_space<vmem>>, %arg2: memref<1024x512xbf16, #tpu.memory_space<vmem>>, %arg3: memref<1x512xf32, #tpu.memory_space<vmem>>, %arg4: memref<512x512xbf16, #tpu.memory_space<vmem>>, %arg5: memref<1x512xf32, #tpu.memory_space<vmem>>, %arg6: memref<1x256xf32, #tpu.memory_space<vmem>>, %arg7: memref<1x1xf32, #tpu.memory_space<vmem>>, %arg8: memref<512x2xf32, #tpu.memory_space<vmem>>, %arg9: memref<1x2xf32, #tpu.memory_space<vmem>>, %arg10: memref<1x128xf32, #tpu.memory_space<vmem>>, %arg11: memref<1x2xf32, #tpu.memory_space<vmem>>, %arg12: memref<1x2xf32, #tpu.memory_space<vmem>>, %arg13: memref<1x512xf32, #tpu.memory_space<vmem>>, %arg14: memref<1x1xf32, #tpu.memory_space<vmem>>, %arg15: memref<1x1xf32, #tpu.memory_space<vmem>>, %arg16: memref<1x512xf32, #tpu.memory_space<vmem>>) attributes {dimension_semantics = [#tpu.dimension_semantics<arbitrary>], iteration_bounds = array<i64: 3>, scalar_prefetch = 0 : i64, scratch_operands = 3 : i64, tpu.core_type = #tpu.core_type<tc>, window_params = [{transform_indices = @transform_0, window_bounds = array<i64: 128, 1024>}, {pipeline_mode = #tpu.pipeline_mode<synchronous>, transform_indices = @transform_1, window_bounds = array<i64: 1024, 512>}, {pipeline_mode = #tpu.pipeline_mode<synchronous>, transform_indices = @transform_2, window_bounds = array<i64: 1, 512>}, {pipeline_mode = #tpu.pipeline_mode<synchronous>, transform_indices = @transform_3, window_bounds = array<i64: 512, 512>}, {pipeline_mode = #tpu.pipeline_mode<synchronous>, transform_indices = @transform_4, window_bounds = array<i64: 1, 512>}, {pipeline_mode = #tpu.pipeline_mode<synchronous>, transform_indices = @transform_5, window_bounds = array<i64: 1, 256>}, {pipeline_mode = #tpu.pipeline_mode<synchronous>, transform_indices = @transform_6, window_bounds = array<i64: 1, 1>}, {pipeline_mode = #tpu.pipeline_mode<synchronous>, transform_indices = @transform_7, window_bounds = array<i64: 512, 2>}, {pipeline_mode = #tpu.pipeline_mode<synchronous>, transform_indices = @transform_8, window_bounds = array<i64: 1, 2>}, {transform_indices = @transform_9, window_bounds = array<i64: 1, 128>}, {pipeline_mode = #tpu.pipeline_mode<synchronous>, transform_indices = @transform_10, window_bounds = array<i64: 1, 2>}, {pipeline_mode = #tpu.pipeline_mode<synchronous>, transform_indices = @transform_11, window_bounds = array<i64: 1, 2>}, {pipeline_mode = #tpu.pipeline_mode<synchronous>, transform_indices = @transform_12, window_bounds = array<i64: 1, 512>}]} {
    %c0_i32 = arith.constant 0 : i32
    %0 = arith.cmpi eq, %arg0, %c0_i32 : i32
    %1 = arith.extui %0 : i1 to i32
    %c0_i32_0 = arith.constant 0 : i32
    %2 = arith.cmpi ne, %1, %c0_i32_0 : i32
    scf.if %2 {
      %cst_39 = arith.constant 0xFF800000 : f32
      %66 = vector.broadcast %cst_39 : f32 to vector<1x1xf32>
      %c0_40 = arith.constant 0 : index
      %c0_41 = arith.constant 0 : index
      %67 = vector.load %arg14[%c0_40, %c0_41] : memref<1x1xf32, #tpu.memory_space<vmem>>, vector<1x1xf32>
      tpu.vector_store %arg14[%c0_40, %c0_41], %66 {strides = array<i32>} : memref<1x1xf32, #tpu.memory_space<vmem>>, vector<1x1xf32>,
      %cst_42 = arith.constant 0.000000e+00 : f32
      %68 = vector.broadcast %cst_42 : f32 to vector<1x1xf32>
      %c0_43 = arith.constant 0 : index
      %c0_44 = arith.constant 0 : index
      %69 = vector.load %arg15[%c0_43, %c0_44] : memref<1x1xf32, #tpu.memory_space<vmem>>, vector<1x1xf32>
      tpu.vector_store %arg15[%c0_43, %c0_44], %68 {strides = array<i32>} : memref<1x1xf32, #tpu.memory_space<vmem>>, vector<1x1xf32>,
      %cst_45 = arith.constant 0.000000e+00 : f32
      %70 = vector.broadcast %cst_45 : f32 to vector<1x512xf32>
      %c0_46 = arith.constant 0 : index
      %c0_47 = arith.constant 0 : index
      %71 = vector.load %arg16[%c0_46, %c0_47] : memref<1x512xf32, #tpu.memory_space<vmem>>, vector<1x512xf32>
      tpu.vector_store %arg16[%c0_46, %c0_47], %70 {strides = array<i32>} : memref<1x512xf32, #tpu.memory_space<vmem>>, vector<1x512xf32>,
    } else {
    }
    %c0 = arith.constant 0 : index
    %c0_1 = arith.constant 0 : index
    %3 = vector.load %arg1[%c0, %c0_1] : memref<128x1024xbf16, #tpu.memory_space<vmem>>, vector<128x1024xbf16>
    %c0_2 = arith.constant 0 : index
    %c0_3 = arith.constant 0 : index
    %4 = vector.load %arg2[%c0_2, %c0_3] : memref<1024x512xbf16, #tpu.memory_space<vmem>>, vector<1024x512xbf16>
    %cst = arith.constant dense<0.000000e+00> : vector<128x512xf32>
    %5 = tpu.matmul %3, %4, %cst {dimension_numbers = #tpu.dot_dimension_numbers<[1], [0], [0], [1], [0, 0, 1, 1], [], []>} : vector<128x1024xbf16>, vector<1024x512xbf16>, vector<128x512xf32> -> vector<128x512xf32>
    %c0_4 = arith.constant 0 : index
    %c0_5 = arith.constant 0 : index
    %6 = vector.load %arg3[%c0_4, %c0_5] : memref<1x512xf32, #tpu.memory_space<vmem>>, vector<1x512xf32>
    %7 = vector.broadcast %6 : vector<1x512xf32> to vector<128x512xf32>
    %8 = arith.addf %5, %7 : vector<128x512xf32>
    %cst_6 = arith.constant 0.000000e+00 : f32
    %9 = vector.broadcast %cst_6 : f32 to vector<128x512xf32>
    %10 = arith.maximumf %8, %9 : vector<128x512xf32>
    %11 = arith.truncf %10 : vector<128x512xf32> to vector<128x512xbf16>
    %c0_7 = arith.constant 0 : index
    %c0_8 = arith.constant 0 : index
    %12 = vector.load %arg4[%c0_7, %c0_8] : memref<512x512xbf16, #tpu.memory_space<vmem>>, vector<512x512xbf16>
    %cst_9 = arith.constant dense<0.000000e+00> : vector<128x512xf32>
    %13 = tpu.matmul %11, %12, %cst_9 {dimension_numbers = #tpu.dot_dimension_numbers<[1], [0], [0], [1], [0, 0, 1, 1], [], []>} : vector<128x512xbf16>, vector<512x512xbf16>, vector<128x512xf32> -> vector<128x512xf32>
    %c0_10 = arith.constant 0 : index
    %c0_11 = arith.constant 0 : index
    %14 = vector.load %arg5[%c0_10, %c0_11] : memref<1x512xf32, #tpu.memory_space<vmem>>, vector<1x512xf32>
    %15 = vector.broadcast %14 : vector<1x512xf32> to vector<128x512xf32>
    %16 = arith.addf %13, %15 : vector<128x512xf32>
    %17 = vector.extract_strided_slice %16 {offsets = [0, 0], sizes = [128, 256], strides = [1, 1]} : vector<128x512xf32> to vector<128x256xf32>
    %18 = math.tanh %17 : vector<128x256xf32>
    %19 = vector.extract_strided_slice %16 {offsets = [0, 256], sizes = [128, 256], strides = [1, 1]} : vector<128x512xf32> to vector<128x256xf32>
    %20 = arith.negf %19 : vector<128x256xf32>
    %21 = math.exp %20 : vector<128x256xf32>
    %cst_12 = arith.constant 1.000000e+00 : f32
    %22 = vector.broadcast %cst_12 : f32 to vector<128x256xf32>
    %23 = arith.addf %22, %21 : vector<128x256xf32>
    %24 = arith.divf %22, %23 : vector<128x256xf32>
    %25 = arith.mulf %18, %24 : vector<128x256xf32>
    %c0_13 = arith.constant 0 : index
    %c0_14 = arith.constant 0 : index
    %26 = vector.load %arg6[%c0_13, %c0_14] : memref<1x256xf32, #tpu.memory_space<vmem>>, vector<1x256xf32>
    %cst_15 = arith.constant dense<0.000000e+00> : vector<1x128xf32>
    %27 = tpu.matmul %26, %25, %cst_15 {dimension_numbers = #tpu.dot_dimension_numbers<[1], [1], [0], [0], [0, 0, 1, 0], [], []>} : vector<1x256xf32>, vector<128x256xf32>, vector<1x128xf32> -> vector<1x128xf32>
    %c0_16 = arith.constant 0 : index
    %c0_17 = arith.constant 0 : index
    %28 = vector.load %arg7[%c0_16, %c0_17] : memref<1x1xf32, #tpu.memory_space<vmem>>, vector<1x1xf32>
    %29 = vector.broadcast %28 : vector<1x1xf32> to vector<1x128xf32>
    %30 = arith.addf %27, %29 : vector<1x128xf32>
    %c0_18 = arith.constant 0 : index
    %c0_19 = arith.constant 0 : index
    %31 = vector.load %arg10[%c0_18, %c0_19] : memref<1x128xf32, #tpu.memory_space<vmem>>, vector<1x128xf32>
    tpu.vector_store %arg10[%c0_18, %c0_19], %30 {strides = array<i32>} : memref<1x128xf32, #tpu.memory_space<vmem>>, vector<1x128xf32>,
    %32 = tpu.iota {dimensions = array<i32: 1>} : vector<1x128xi32>
    %c128_i32 = arith.constant 128 : i32
    %33 = arith.muli %arg0, %c128_i32 : i32
    %34 = vector.broadcast %33 : i32 to vector<1x128xi32>
    %35 = arith.addi %32, %34 : vector<1x128xi32>
    %c300_i32 = arith.constant 300 : i32
    %36 = vector.broadcast %c300_i32 : i32 to vector<1x128xi32>
    %37 = arith.cmpi slt, %35, %36 : vector<1x128xi32>
    %cst_20 = arith.constant 0xFF800000 : f32
    %38 = vector.broadcast %cst_20 : f32 to vector<1x128xf32>
    %39 = arith.select %37, %30, %38 : vector<1x128xi1>, vector<1x128xf32>
    %c0_21 = arith.constant 0 : index
    %c0_22 = arith.constant 0 : index
    %40 = vector.load %arg14[%c0_21, %c0_22] : memref<1x1xf32, #tpu.memory_space<vmem>>, vector<1x1xf32>
    %cst_23 = arith.constant dense<0xFF800000> : vector<1xf32>
    %41 = vector.multi_reduction <maximumf>, %39, %cst_23 [1] : vector<1x128xf32> to vector<1xf32>
    %42 = vector.shape_cast %41 : vector<1xf32> to vector<1x1xf32>
    %43 = arith.maximumf %40, %42 : vector<1x1xf32>
    %c0_24 = arith.constant 0 : index
    %c0_25 = arith.constant 0 : index
    %44 = vector.load %arg14[%c0_24, %c0_25] : memref<1x1xf32, #tpu.memory_space<vmem>>, vector<1x1xf32>
    %45 = arith.subf %44, %43 : vector<1x1xf32>
    %46 = math.exp %45 : vector<1x1xf32>
    %47 = vector.broadcast %43 : vector<1x1xf32> to vector<1x128xf32>
    %48 = arith.subf %39, %47 : vector<1x128xf32>
    %49 = math.exp %48 : vector<1x128xf32>
    %c0_26 = arith.constant 0 : index
    %c0_27 = arith.constant 0 : index
    %50 = vector.load %arg15[%c0_26, %c0_27] : memref<1x1xf32, #tpu.memory_space<vmem>>, vector<1x1xf32>
    %51 = arith.mulf %46, %50 : vector<1x1xf32>
    %cst_28 = arith.constant dense<0.000000e+00> : vector<1xf32>
    %52 = vector.multi_reduction <add>, %49, %cst_28 [1] : vector<1x128xf32> to vector<1xf32>
    %53 = vector.shape_cast %52 : vector<1xf32> to vector<1x1xf32>
    %54 = arith.addf %51, %53 : vector<1x1xf32>
    %c0_29 = arith.constant 0 : index
    %c0_30 = arith.constant 0 : index
    %55 = vector.load %arg15[%c0_29, %c0_30] : memref<1x1xf32, #tpu.memory_space<vmem>>, vector<1x1xf32>
    tpu.vector_store %arg15[%c0_29, %c0_30], %54 {strides = array<i32>} : memref<1x1xf32, #tpu.memory_space<vmem>>, vector<1x1xf32>,
    %c0_31 = arith.constant 0 : index
    %c0_32 = arith.constant 0 : index
    %56 = vector.load %arg16[%c0_31, %c0_32] : memref<1x512xf32, #tpu.memory_space<vmem>>, vector<1x512xf32>
    %57 = vector.broadcast %46 : vector<1x1xf32> to vector<1x512xf32>
    %58 = arith.mulf %57, %56 : vector<1x512xf32>
    %cst_33 = arith.constant dense<0.000000e+00> : vector<1x512xf32>
    %59 = tpu.matmul %49, %10, %cst_33 {dimension_numbers = #tpu.dot_dimension_numbers<[1], [0], [0], [1], [0, 0, 1, 1], [], []>} : vector<1x128xf32>, vector<128x512xf32>, vector<1x512xf32> -> vector<1x512xf32>
    %60 = arith.addf %58, %59 : vector<1x512xf32>
    %c0_34 = arith.constant 0 : index
    %c0_35 = arith.constant 0 : index
    %61 = vector.load %arg16[%c0_34, %c0_35] : memref<1x512xf32, #tpu.memory_space<vmem>>, vector<1x512xf32>
    tpu.vector_store %arg16[%c0_34, %c0_35], %60 {strides = array<i32>} : memref<1x512xf32, #tpu.memory_space<vmem>>, vector<1x512xf32>,
    %c0_36 = arith.constant 0 : index
    %c0_37 = arith.constant 0 : index
    %62 = vector.load %arg14[%c0_36, %c0_37] : memref<1x1xf32, #tpu.memory_space<vmem>>, vector<1x1xf32>
    tpu.vector_store %arg14[%c0_36, %c0_37], %43 {strides = array<i32>} : memref<1x1xf32, #tpu.memory_space<vmem>>, vector<1x1xf32>,
    %c2_i32 = arith.constant 2 : i32
    %63 = arith.cmpi eq, %arg0, %c2_i32 : i32
    %64 = arith.extui %63 : i1 to i32
    %c0_i32_38 = arith.constant 0 : i32
    %65 = arith.cmpi ne, %64, %c0_i32_38 : i32
    scf.if %65 {
      %c0_39 = arith.constant 0 : index
      %c0_40 = arith.constant 0 : index
      %66 = vector.load %arg16[%c0_39, %c0_40] : memref<1x512xf32, #tpu.memory_space<vmem>>, vector<1x512xf32>
      %c0_41 = arith.constant 0 : index
      %c0_42 = arith.constant 0 : index
      %67 = vector.load %arg15[%c0_41, %c0_42] : memref<1x1xf32, #tpu.memory_space<vmem>>, vector<1x1xf32>
      %68 = tpu.reciprocal %67 {approx = true} : vector<1x1xf32> -> vector<1x1xf32>
      %69 = vector.broadcast %68 : vector<1x1xf32> to vector<1x512xf32>
      %70 = arith.mulf %66, %69 : vector<1x512xf32>
      %c0_43 = arith.constant 0 : index
      %c0_44 = arith.constant 0 : index
      %71 = vector.load %arg13[%c0_43, %c0_44] : memref<1x512xf32, #tpu.memory_space<vmem>>, vector<1x512xf32>
      tpu.vector_store %arg13[%c0_43, %c0_44], %70 {strides = array<i32>} : memref<1x512xf32, #tpu.memory_space<vmem>>, vector<1x512xf32>,
      %c0_45 = arith.constant 0 : index
      %c0_46 = arith.constant 0 : index
      %72 = vector.load %arg8[%c0_45, %c0_46] : memref<512x2xf32, #tpu.memory_space<vmem>>, vector<512x2xf32>
      %cst_47 = arith.constant dense<0.000000e+00> : vector<1x2xf32>
      %73 = tpu.matmul %70, %72, %cst_47 {dimension_numbers = #tpu.dot_dimension_numbers<[1], [0], [0], [1], [0, 0, 1, 1], [], []>} : vector<1x512xf32>, vector<512x2xf32>, vector<1x2xf32> -> vector<1x2xf32>
      %c0_48 = arith.constant 0 : index
      %c0_49 = arith.constant 0 : index
      %74 = vector.load %arg9[%c0_48, %c0_49] : memref<1x2xf32, #tpu.memory_space<vmem>>, vector<1x2xf32>
      %75 = arith.addf %73, %74 : vector<1x2xf32>
      %c0_50 = arith.constant 0 : index
      %c0_51 = arith.constant 0 : index
      %76 = vector.load %arg11[%c0_50, %c0_51] : memref<1x2xf32, #tpu.memory_space<vmem>>, vector<1x2xf32>
      tpu.vector_store %arg11[%c0_50, %c0_51], %75 {strides = array<i32>} : memref<1x2xf32, #tpu.memory_space<vmem>>, vector<1x2xf32>,
      %cst_52 = arith.constant dense<0xFF800000> : vector<1xf32>
      %77 = vector.multi_reduction <maximumf>, %75, %cst_52 [1] : vector<1x2xf32> to vector<1xf32>
      %78 = vector.shape_cast %77 : vector<1xf32> to vector<1x1xf32>
      %79 = vector.broadcast %78 : vector<1x1xf32> to vector<1x2xf32>
      %80 = arith.subf %75, %79 : vector<1x2xf32>
      %81 = math.exp %80 : vector<1x2xf32>
      %cst_53 = arith.constant dense<0.000000e+00> : vector<1xf32>
      %82 = vector.multi_reduction <add>, %81, %cst_53 [1] : vector<1x2xf32> to vector<1xf32>
      %83 = vector.shape_cast %82 : vector<1xf32> to vector<1x1xf32>
      %84 = vector.broadcast %83 : vector<1x1xf32> to vector<1x2xf32>
      %85 = arith.divf %81, %84 : vector<1x2xf32>
      %c0_54 = arith.constant 0 : index
      %c0_55 = arith.constant 0 : index
      %86 = vector.load %arg12[%c0_54, %c0_55] : memref<1x2xf32, #tpu.memory_space<vmem>>, vector<1x2xf32>
      tpu.vector_store %arg12[%c0_54, %c0_55], %85 {strides = array<i32>} : memref<1x2xf32, #tpu.memory_space<vmem>>, vector<1x2xf32>,
    } else {
    }
    return
  }
  func.func @transform_0(%arg0: i32) -> (i32, i32) {
    %c0_i32 = arith.constant 0 : i32
    %c0_i32_0 = arith.constant 0 : i32
    return %arg0, %c0_i32 : i32, i32
  }
  func.func @transform_1(%arg0: i32) -> (i32, i32) {
    %c0_i32 = arith.constant 0 : i32
    %c0_i32_0 = arith.constant 0 : i32
    %c0_i32_1 = arith.constant 0 : i32
    return %c0_i32, %c0_i32_0 : i32, i32
  }
  func.func @transform_2(%arg0: i32) -> (i32, i32) {
    %c0_i32 = arith.constant 0 : i32
    %c0_i32_0 = arith.constant 0 : i32
    %c0_i32_1 = arith.constant 0 : i32
    return %c0_i32, %c0_i32_0 : i32, i32
  }
  func.func @transform_3(%arg0: i32) -> (i32, i32) {
    %c0_i32 = arith.constant 0 : i32
    %c0_i32_0 = arith.constant 0 : i32
    %c0_i32_1 = arith.constant 0 : i32
    return %c0_i32, %c0_i32_0 : i32, i32
  }
  func.func @transform_4(%arg0: i32) -> (i32, i32) {
    %c0_i32 = arith.constant 0 : i32
    %c0_i32_0 = arith.constant 0 : i32
    %c0_i32_1 = arith.constant 0 : i32
    return %c0_i32, %c0_i32_0 : i32, i32
  }
  func.func @transform_5(%arg0: i32) -> (i32, i32) {
    %c0_i32 = arith.constant 0 : i32
    %c0_i32_0 = arith.constant 0 : i32
    %c0_i32_1 = arith.constant 0 : i32
    return %c0_i32, %c0_i32_0 : i32, i32
  }
  func.func @transform_6(%arg0: i32) -> (i32, i32) {
    %c0_i32 = arith.constant 0 : i32
    %c0_i32_0 = arith.constant 0 : i32
    %c0_i32_1 = arith.constant 0 : i32
    return %c0_i32, %c0_i32_0 : i32, i32
  }
  func.func @transform_7(%arg0: i32) -> (i32, i32) {
    %c0_i32 = arith.constant 0 : i32
    %c0_i32_0 = arith.constant 0 : i32
    %c0_i32_1 = arith.constant 0 : i32
    return %c0_i32, %c0_i32_0 : i32, i32
  }
  func.func @transform_8(%arg0: i32) -> (i32, i32) {
    %c0_i32 = arith.constant 0 : i32
    %c0_i32_0 = arith.constant 0 : i32
    %c0_i32_1 = arith.constant 0 : i32
    return %c0_i32, %c0_i32_0 : i32, i32
  }
  func.func @transform_9(%arg0: i32) -> (i32, i32) {
    %c0_i32 = arith.constant 0 : i32
    %c0_i32_0 = arith.constant 0 : i32
    return %c0_i32, %arg0 : i32, i32
  }
  func.func @transform_10(%arg0: i32) -> (i32, i32) {
    %c0_i32 = arith.constant 0 : i32
    %c0_i32_0 = arith.constant 0 : i32
    %c0_i32_1 = arith.constant 0 : i32
    return %c0_i32, %c0_i32_0 : i32, i32
  }
  func.func @transform_11(%arg0: i32) -> (i32, i32) {
    %c0_i32 = arith.constant 0 : i32
    %c0_i32_0 = arith.constant 0 : i32
    %c0_i32_1 = arith.constant 0 : i32
    return %c0_i32, %c0_i32_0 : i32, i32
  }
  func.func @transform_12(%arg0: i32) -> (i32, i32) {
    %c0_i32 = arith.constant 0 : i32
    %c0_i32_0 = arith.constant 0 : i32
    %c0_i32_1 = arith.constant 0 : i32
    return %c0_i32, %c0_i32_0 : i32, i32
  }
}

</mosaic_0001>

<llo_original>
// kernel: tpu_custom_call.1
$region0: #{tpu_custom_call.1}
  #allocation0 [shape = 'u32[]', space=smem, size = 0x4, offset = 0x4, fixed_abs, tag = 'smem constant byte address 0x4 - core index']
  #allocation1 [shape = 'u32[144,128]{1,0:T(1,128)}', space=vmem, size = 0x12000, scoped, tag = 'internal scratch']
  #allocation2 [shape = 'f32[1,1]{1,0:T(1,128)}', space=vmem, size = 0x200, scoped, tag = 'scratch operand']
  #allocation3 [shape = 'f32[1,1]{1,0:T(1,128)}', space=vmem, size = 0x200, scoped, tag = 'scratch operand']
  #allocation4 [shape = 'f32[1,512]{1,0:T(1,128)}', space=vmem, size = 0x800, scoped, tag = 'scratch operand']
  #allocation5 [shape = 'f32[1,1]{1,0:T(1,128)S(1)}', space=vmem, size = 0x200, scoped, tag = 'scoped memory for tpu_custom_call.1']
  %s0 = inlined_call_operand.hbm [shape: bf16[384,1024], index: 0, kind: input, shape index: {}]
  %s1 = inlined_call_operand.hbm [shape: bf16[1024,512], index: 1, kind: input, shape index: {}]
  %s2 = inlined_call_operand.vmem [shape: f32[1,512], index: 2, kind: input, shape index: {}]
  %s3 = inlined_call_operand.hbm [shape: bf16[512,512], index: 3, kind: input, shape index: {}]
  %s4 = inlined_call_operand.vmem [shape: f32[1,512], index: 4, kind: input, shape index: {}]
  %s5 = inlined_call_operand.vmem [shape: f32[1,256], index: 5, kind: input, shape index: {}]
  %s6 = inlined_call_operand.<no memory space> [shape: f32[1,1], index: 6, kind: input, shape index: {}]
  %s7 = inlined_call_operand.vmem [shape: f32[512,2], index: 7, kind: input, shape index: {}]
  %s8 = inlined_call_operand.vmem [shape: f32[1,2], index: 8, kind: input, shape index: {}]
  %s9 = inlined_call_operand.hbm [shape: f32[1,384], index: 9, kind: output, shape index: {0}]
  %s10 = inlined_call_operand.hbm [shape: f32[1,2], index: 10, kind: output, shape index: {1}]
  %s11 = inlined_call_operand.hbm [shape: f32[1,2], index: 11, kind: output, shape index: {2}]
  %s12 = inlined_call_operand.hbm [shape: f32[1,512], index: 12, kind: output, shape index: {3}]
  %13 = xla_tuple %s9, %s10, %s11, %s12
  %s14 = sld [smem:[#allocation0]]
  $region113: #{tpu_custom_call.1} parent=0
    _
  %s16 = ssub.s32 1, %s14
  %s17 = scalar_select 0, %s16, %s14
  %v18 = vstv %s6
  %19 = vst [vmem:[#allocation5] sm:$0x1] %v18
  $region1: #{tpu_custom_call.1} parent=0
    #allocation6 [shape = 'u8[524288]{0}', space=vmem, size = 0x80000, scoped, tag = 'input window, operand 0']
    #allocation7 [shape = 's32[2]{0}', space=sflag, size = 0x8, scoped, tag = 'scoped memory for tpu_custom_call.1']
    #allocation8 [shape = 's32[2]{0}', space=sflag, size = 0x8, scoped, tag = 'scoped memory for tpu_custom_call.1']
    #allocation9 [shape = 'u8[1048576]{0}', space=vmem, size = 0x100000, scoped, tag = 'input window, operand 1, single buffered']
    #allocation10 [shape = 's32[1]{0}', space=sflag, size = 0x4, scoped, tag = 'scoped memory for tpu_custom_call.1']
    #allocation11 [shape = 'u8[524288]{0}', space=vmem, size = 0x80000, scoped, tag = 'input window, operand 3, single buffered']
    #allocation12 [shape = 'u8[1024]{0}', space=vmem, size = 0x400, scoped, tag = 'output window, operand 0']
    #allocation13 [shape = 'u8[512]{0}', space=vmem, size = 0x400, scoped, tag = 'output window, operand 1, single buffered']
    #allocation14 [shape = 's32[1]{0}', space=sflag, size = 0x4, scoped, tag = 'scoped memory for tpu_custom_call.1']
    #allocation15 [shape = 'u8[512]{0}', space=vmem, size = 0x400, scoped, tag = 'output window, operand 2, single buffered']
    #allocation16 [shape = 'u8[2048]{0}', space=vmem, size = 0x800, scoped, tag = 'output window, operand 3, single buffered']
    #allocation17 [shape = 's32[1]{0}', space=sflag, size = 0x4, scoped, tag = 'scoped memory for tpu_custom_call.1']
    %20 = vsyncpa [#allocation7], 0
    %s21 = scalar_lea.sflag [#allocation7], 1
    %22 = vsyncpa %s21, 0
    %23 = vsyncpa [#allocation10], 0
    %24 = vsyncpa [#allocation8], 0
    %s25 = scalar_lea.sflag [#allocation8], 1
    %26 = vsyncpa %s25, 0
    %27 = vsyncpa [#allocation14], 0
    %28 = vsyncpa [#allocation17], 0
    loop: start=0, step=1, limit=5
    $region2: #{tpu_custom_call.1} parent=1 // loop_pre_header
      _
    $region3: #{tpu_custom_call.1} parent=1 // loop_header
      %s30 = sphi 0, %s34
      %p31 = scmp.ge.s32.totalorder %s30, 5
      %s40 = sphi 0, %s42
      %s43 = sphi 0, %s40
      %s44 = sphi 0, %s43
      %s60 = sphi 0, %s44
      %s64 = sphi 0, %s64
      %s66 = sphi 0, %s64
      %s67 = sphi 0, %s66
      %s81 = sphi 0, %s67
      %s85 = sphi 0, %s85
      %s87 = sphi 0, %s85
      %s88 = sphi 0, %s87
      %s102 = sphi 0, %s88
      %s106 = sphi 0, %s106
      %s108 = sphi 0, %s106
      %s109 = sphi 0, %s108
      %s123 = sphi 0, %s109
      %s127 = sphi 0, %s127
      %s129 = sphi 0, %s127
      %s130 = sphi 0, %s129
      %s144 = sphi 0, %s130
      %s148 = sphi 0, %s148
      %s150 = sphi 0, %s148
      %s151 = sphi 0, %s150
      %s165 = sphi 0, %s151
      %s169 = sphi 0, %s169
      %s171 = sphi 0, %s169
      %s172 = sphi 0, %s171
      %s186 = sphi 0, %s172
      %s190 = sphi 0, %s190
      %s192 = sphi 0, %s190
      %s193 = sphi 0, %s192
      %s207 = sphi 0, %s193
      %s211 = sphi 0, %s211
      %s213 = sphi 0, %s211
      %s214 = sphi 0, %s213
      %s228 = sphi 0, %s214
      %s234 = sphi 0, %s236
      %s237 = sphi 0, %s234
      %s238 = sphi 0, %s237
      %s254 = sphi 0, %s238
      %s258 = sphi 0, %s258
      %s260 = sphi 0, %s258
      %s261 = sphi 0, %s260
      %s275 = sphi 0, %s261
      %s279 = sphi 0, %s279
      %s281 = sphi 0, %s279
      %s282 = sphi 0, %s281
      %s296 = sphi 0, %s282
      %s300 = sphi 0, %s300
      %s302 = sphi 0, %s300
      %s303 = sphi 0, %s302
      %s317 = sphi 0, %s303
    $region4: #{tpu_custom_call.1} parent=1 // loop_header_branch
      %33 = sbr.rel (%p31) target = $region8
    $region5: #{tpu_custom_call.1} parent=1 // loop_body
      %s35 = ssub.s32 %s30, 1
      %s36 = ssub.s32 %s30, 2
      %s37 = sadd.s32 %s30, 1
      %s38 = ssub.s32 %s30, %s37
      %p39 = scmp.eq.s32.totalorder %s38, 0
      %s41 = sadd.s32 %s40, 1
      %s42 = scalar_select %p39, %s40, %s41
      %p45 = pneg %p39
      %p46 = scmp.eq.s32.totalorder %s30, 2
      %p47 = por %p45, %p46
      %p48 = scmp.ne.s32.totalorder %s40, %s43
      %p49 = scmp.eq.s32.totalorder %s30, 0
      %p50 = por %p48, %p49
      %p51 = scmp.ne.s32.totalorder %s40, %s43
      %p52 = scmp.eq.s32.totalorder %s35, 2
      %p53 = por %p51, %p52
      %p54 = scmp.ne.s32.totalorder %s43, %s44
      %p55 = scmp.eq.s32.totalorder %s35, 0
      %p56 = por %p54, %p55
      %p57 = scmp.ne.s32.totalorder %s43, %s44
      %p58 = scmp.eq.s32.totalorder %s36, 2
      %p59 = por %p57, %p58
      %p61 = scmp.ne.s32.totalorder %s44, %s60
      %p62 = scmp.eq.s32.totalorder %s36, 0
      %p63 = por %p61, %p62
      %s65 = sadd.s32 %s64, 1
      %p68 = scmp.eq.s32.totalorder %s30, 2
      %p69 = scmp.ne.s32.totalorder %s64, %s66
      %p70 = scmp.eq.s32.totalorder %s30, 0
      %p71 = por %p69, %p70
      %p72 = scmp.ne.s32.totalorder %s64, %s66
      %p73 = scmp.eq.s32.totalorder %s35, 2
      %p74 = por %p72, %p73
      %p75 = scmp.ne.s32.totalorder %s66, %s67
      %p76 = scmp.eq.s32.totalorder %s35, 0
      %p77 = por %p75, %p76
      %p78 = scmp.ne.s32.totalorder %s66, %s67
      %p79 = scmp.eq.s32.totalorder %s36, 2
      %p80 = por %p78, %p79
      %p82 = scmp.ne.s32.totalorder %s67, %s81
      %p83 = scmp.eq.s32.totalorder %s36, 0
      %p84 = por %p82, %p83
      %s86 = sadd.s32 %s85, 1
      %p89 = scmp.eq.s32.totalorder %s30, 2
      %p90 = scmp.ne.s32.totalorder %s85, %s87
      %p91 = scmp.eq.s32.totalorder %s30, 0
      %p92 = por %p90, %p91
      %p93 = scmp.ne.s32.totalorder %s85, %s87
      %p94 = scmp.eq.s32.totalorder %s35, 2
      %p95 = por %p93, %p94
      %p96 = scmp.ne.s32.totalorder %s87, %s88
      %p97 = scmp.eq.s32.totalorder %s35, 0
      %p98 = por %p96, %p97
      %p99 = scmp.ne.s32.totalorder %s87, %s88
      %p100 = scmp.eq.s32.totalorder %s36, 2
      %p101 = por %p99, %p100
      %p103 = scmp.ne.s32.totalorder %s88, %s102
      %p104 = scmp.eq.s32.totalorder %s36, 0
      %p105 = por %p103, %p104
      %s107 = sadd.s32 %s106, 1
      %p110 = scmp.eq.s32.totalorder %s30, 2
      %p111 = scmp.ne.s32.totalorder %s106, %s108
      %p112 = scmp.eq.s32.totalorder %s30, 0
      %p113 = por %p111, %p112
      %p114 = scmp.ne.s32.totalorder %s106, %s108
      %p115 = scmp.eq.s32.totalorder %s35, 2
      %p116 = por %p114, %p115
      %p117 = scmp.ne.s32.totalorder %s108, %s109
      %p118 = scmp.eq.s32.totalorder %s35, 0
      %p119 = por %p117, %p118
      %p120 = scmp.ne.s32.totalorder %s108, %s109
      %p121 = scmp.eq.s32.totalorder %s36, 2
      %p122 = por %p120, %p121
      %p124 = scmp.ne.s32.totalorder %s109, %s123
      %p125 = scmp.eq.s32.totalorder %s36, 0
      %p126 = por %p124, %p125
      %s128 = sadd.s32 %s127, 1
      %p131 = scmp.eq.s32.totalorder %s30, 2
      %p132 = scmp.ne.s32.totalorder %s127, %s129
      %p133 = scmp.eq.s32.totalorder %s30, 0
      %p134 = por %p132, %p133
      %p135 = scmp.ne.s32.totalorder %s127, %s129
      %p136 = scmp.eq.s32.totalorder %s35, 2
      %p137 = por %p135, %p136
      %p138 = scmp.ne.s32.totalorder %s129, %s130
      %p139 = scmp.eq.s32.totalorder %s35, 0
      %p140 = por %p138, %p139
      %p141 = scmp.ne.s32.totalorder %s129, %s130
      %p142 = scmp.eq.s32.totalorder %s36, 2
      %p143 = por %p141, %p142
      %p145 = scmp.ne.s32.totalorder %s130, %s144
      %p146 = scmp.eq.s32.totalorder %s36, 0
      %p147 = por %p145, %p146
      %s149 = sadd.s32 %s148, 1
      %p152 = scmp.eq.s32.totalorder %s30, 2
      %p153 = scmp.ne.s32.totalorder %s148, %s150
      %p154 = scmp.eq.s32.totalorder %s30, 0
      %p155 = por %p153, %p154
      %p156 = scmp.ne.s32.totalorder %s148, %s150
      %p157 = scmp.eq.s32.totalorder %s35, 2
      %p158 = por %p156, %p157
      %p159 = scmp.ne.s32.totalorder %s150, %s151
      %p160 = scmp.eq.s32.totalorder %s35, 0
      %p161 = por %p159, %p160
      %p162 = scmp.ne.s32.totalorder %s150, %s151
      %p163 = scmp.eq.s32.totalorder %s36, 2
      %p164 = por %p162, %p163
      %p166 = scmp.ne.s32.totalorder %s151, %s165
      %p167 = scmp.eq.s32.totalorder %s36, 0
      %p168 = por %p166, %p167
      %s170 = sadd.s32 %s169, 1
      %p173 = scmp.eq.s32.totalorder %s30, 2
      %p174 = scmp.ne.s32.totalorder %s169, %s171
      %p175 = scmp.eq.s32.totalorder %s30, 0
      %p176 = por %p174, %p175
      %p177 = scmp.ne.s32.totalorder %s169, %s171
      %p178 = scmp.eq.s32.totalorder %s35, 2
      %p179 = por %p177, %p178
      %p180 = scmp.ne.s32.totalorder %s171, %s172
      %p181 = scmp.eq.s32.totalorder %s35, 0
      %p182 = por %p180, %p181
      %p183 = scmp.ne.s32.totalorder %s171, %s172
      %p184 = scmp.eq.s32.totalorder %s36, 2
      %p185 = por %p183, %p184
      %p187 = scmp.ne.s32.totalorder %s172, %s186
      %p188 = scmp.eq.s32.totalorder %s36, 0
      %p189 = por %p187, %p188
      %s191 = sadd.s32 %s190, 1
      %p194 = scmp.eq.s32.totalorder %s30, 2
      %p195 = scmp.ne.s32.totalorder %s190, %s192
      %p196 = scmp.eq.s32.totalorder %s30, 0
      %p197 = por %p195, %p196
      %p198 = scmp.ne.s32.totalorder %s190, %s192
      %p199 = scmp.eq.s32.totalorder %s35, 2
      %p200 = por %p198, %p199
      %p201 = scmp.ne.s32.totalorder %s192, %s193
      %p202 = scmp.eq.s32.totalorder %s35, 0
      %p203 = por %p201, %p202
      %p204 = scmp.ne.s32.totalorder %s192, %s193
      %p205 = scmp.eq.s32.totalorder %s36, 2
      %p206 = por %p204, %p205
      %p208 = scmp.ne.s32.totalorder %s193, %s207
      %p209 = scmp.eq.s32.totalorder %s36, 0
      %p210 = por %p208, %p209
      %s212 = sadd.s32 %s211, 1
      %p215 = scmp.eq.s32.totalorder %s30, 2
      %p216 = scmp.ne.s32.totalorder %s211, %s213
      %p217 = scmp.eq.s32.totalorder %s30, 0
      %p218 = por %p216, %p217
      %p219 = scmp.ne.s32.totalorder %s211, %s213
      %p220 = scmp.eq.s32.totalorder %s35, 2
      %p221 = por %p219, %p220
      %p222 = scmp.ne.s32.totalorder %s213, %s214
      %p223 = scmp.eq.s32.totalorder %s35, 0
      %p224 = por %p222, %p223
      %p225 = scmp.ne.s32.totalorder %s213, %s214
      %p226 = scmp.eq.s32.totalorder %s36, 2
      %p227 = por %p225, %p226
      %p229 = scmp.ne.s32.totalorder %s214, %s228
      %p230 = scmp.eq.s32.totalorder %s36, 0
      %p231 = por %p229, %p230
      %s232 = ssub.s32 %s30, %s37
      %p233 = scmp.eq.s32.totalorder %s232, 0
      %s235 = sadd.s32 %s234, 1
      %s236 = scalar_select %p233, %s234, %s235
      %p239 = pneg %p233
      %p240 = scmp.eq.s32.totalorder %s30, 2
      %p241 = por %p239, %p240
      %p242 = scmp.ne.s32.totalorder %s234, %s237
      %p243 = scmp.eq.s32.totalorder %s30, 0
      %p244 = por %p242, %p243
      %p245 = scmp.ne.s32.totalorder %s234, %s237
      %p246 = scmp.eq.s32.totalorder %s35, 2
      %p247 = por %p245, %p246
      %p248 = scmp.ne.s32.totalorder %s237, %s238
      %p249 = scmp.eq.s32.totalorder %s35, 0
      %p250 = por %p248, %p249
      %p251 = scmp.ne.s32.totalorder %s237, %s238
      %p252 = scmp.eq.s32.totalorder %s36, 2
      %p253 = por %p251, %p252
      %p255 = scmp.ne.s32.totalorder %s238, %s254
      %p256 = scmp.eq.s32.totalorder %s36, 0
      %p257 = por %p255, %p256
      %s259 = sadd.s32 %s258, 1
      %p262 = scmp.eq.s32.totalorder %s30, 2
      %p263 = scmp.ne.s32.totalorder %s258, %s260
      %p264 = scmp.eq.s32.totalorder %s30, 0
      %p265 = por %p263, %p264
      %p266 = scmp.ne.s32.totalorder %s258, %s260
      %p267 = scmp.eq.s32.totalorder %s35, 2
      %p268 = por %p266, %p267
      %p269 = scmp.ne.s32.totalorder %s260, %s261
      %p270 = scmp.eq.s32.totalorder %s35, 0
      %p271 = por %p269, %p270
      %p272 = scmp.ne.s32.totalorder %s260, %s261
      %p273 = scmp.eq.s32.totalorder %s36, 2
      %p274 = por %p272, %p273
      %p276 = scmp.ne.s32.totalorder %s261, %s275
      %p277 = scmp.eq.s32.totalorder %s36, 0
      %p278 = por %p276, %p277
      %s280 = sadd.s32 %s279, 1
      %p283 = scmp.eq.s32.totalorder %s30, 2
      %p284 = scmp.ne.s32.totalorder %s279, %s281
      %p285 = scmp.eq.s32.totalorder %s30, 0
      %p286 = por %p284, %p285
      %p287 = scmp.ne.s32.totalorder %s279, %s281
      %p288 = scmp.eq.s32.totalorder %s35, 2
      %p289 = por %p287, %p288
      %p290 = scmp.ne.s32.totalorder %s281, %s282
      %p291 = scmp.eq.s32.totalorder %s35, 0
      %p292 = por %p290, %p291
      %p293 = scmp.ne.s32.totalorder %s281, %s282
      %p294 = scmp.eq.s32.totalorder %s36, 2
      %p295 = por %p293, %p294
      %p297 = scmp.ne.s32.totalorder %s282, %s296
      %p298 = scmp.eq.s32.totalorder %s36, 0
      %p299 = por %p297, %p298
      %s301 = sadd.s32 %s300, 1
      %p304 = scmp.eq.s32.totalorder %s30, 2
      %p305 = scmp.ne.s32.totalorder %s300, %s302
      %p306 = scmp.eq.s32.totalorder %s30, 0
      %p307 = por %p305, %p306
      %p308 = scmp.ne.s32.totalorder %s300, %s302
      %p309 = scmp.eq.s32.totalorder %s35, 2
      %p310 = por %p308, %p309
      %p311 = scmp.ne.s32.totalorder %s302, %s303
      %p312 = scmp.eq.s32.totalorder %s35, 0
      %p313 = por %p311, %p312
      %p314 = scmp.ne.s32.totalorder %s302, %s303
      %p315 = scmp.eq.s32.totalorder %s36, 2
      %p316 = por %p314, %p315
      %p318 = scmp.ne.s32.totalorder %s303, %s317
      %p319 = scmp.eq.s32.totalorder %s36, 0
      %p320 = por %p318, %p319
      %p321 = scmp.le.s32.totalorder 1, %s30
      %p322 = scmp.lt.s32.totalorder %s30, 4
      %p323 = pnand %p321, %p322
      %p324 = pneg %p323
      // Predicated region
      $region9: #{tpu_custom_call.1} parent=5 // pred_check
        _
      $region10: #{tpu_custom_call.1} parent=5 // pred_check_branch
        %326 = sbr.rel (%p323) target = $region12
      $region11: #{tpu_custom_call.1} parent=5 // pred_region
        %s327 = ssub.s32 %s30, 1
        // Predicated region
        $region13: #{tpu_custom_call.1} parent=11 // pred_check
          %p328 = pneg %p77
        $region14: #{tpu_custom_call.1} parent=11 // pred_check_branch
          %330 = sbr.rel (%p328) target = $region16
        $region15: #{tpu_custom_call.1} parent=11 // pred_region
          %s332 = ssub.s32 32768, 32768
          %333 = vsyncadd [#allocation10], %s332
          %s334 = sshll.u32 [#allocation9], 4
          %s335 = int_to_ptr.vmem [resolvable:$true] %s334
          %340 = dma.hbm_to_vmem [thread:$0]  %s1, 32768, %s335, [#allocation10], 256, 256, 16
        $region16: #{tpu_custom_call.1} parent=11 // pred_fallthru
          _
        // Predicated region
        $region17: #{tpu_custom_call.1} parent=11 // pred_check
          %p341 = pneg %p98
        $region18: #{tpu_custom_call.1} parent=11 // pred_check_branch
          %343 = sbr.rel (%p341) target = $region20
        $region19: #{tpu_custom_call.1} parent=11 // pred_region
          _
        $region20: #{tpu_custom_call.1} parent=11 // pred_fallthru
          _
        // Predicated region
        $region21: #{tpu_custom_call.1} parent=11 // pred_check
          %p344 = pneg %p119
        $region22: #{tpu_custom_call.1} parent=11 // pred_check_branch
          %346 = sbr.rel (%p344) target = $region24
        $region23: #{tpu_custom_call.1} parent=11 // pred_region
          %s348 = ssub.s32 16384, 16384
          %349 = vsyncadd [#allocation10], %s348
          %s350 = sshll.u32 [#allocation11], 4
          %s351 = int_to_ptr.vmem [resolvable:$true] %s350
          %356 = dma.hbm_to_vmem [thread:$0]  %s3, 16384, %s351, [#allocation10], 256, 256, 16
        $region24: #{tpu_custom_call.1} parent=11 // pred_fallthru
          _
        // Predicated region
        $region25: #{tpu_custom_call.1} parent=11 // pred_check
          %p357 = pneg %p140
        $region26: #{tpu_custom_call.1} parent=11 // pred_check_branch
          %359 = sbr.rel (%p357) target = $region28
        $region27: #{tpu_custom_call.1} parent=11 // pred_region
          _
        $region28: #{tpu_custom_call.1} parent=11 // pred_fallthru
          _
        // Predicated region
        $region29: #{tpu_custom_call.1} parent=11 // pred_check
          %p360 = pneg %p161
        $region30: #{tpu_custom_call.1} parent=11 // pred_check_branch
          %362 = sbr.rel (%p360) target = $region32
        $region31: #{tpu_custom_call.1} parent=11 // pred_region
          _
        $region32: #{tpu_custom_call.1} parent=11 // pred_fallthru
          _
        // Predicated region
        $region33: #{tpu_custom_call.1} parent=11 // pred_check
          %p363 = pneg %p182
        $region34: #{tpu_custom_call.1} parent=11 // pred_check_branch
          %365 = sbr.rel (%p363) target = $region36
        $region35: #{tpu_custom_call.1} parent=11 // pred_region
          _
        $region36: #{tpu_custom_call.1} parent=11 // pred_fallthru
          _
        // Predicated region
        $region37: #{tpu_custom_call.1} parent=11 // pred_check
          %p366 = pneg %p203
        $region38: #{tpu_custom_call.1} parent=11 // pred_check_branch
          %368 = sbr.rel (%p366) target = $region40
        $region39: #{tpu_custom_call.1} parent=11 // pred_region
          _
        $region40: #{tpu_custom_call.1} parent=11 // pred_fallthru
          _
        // Predicated region
        $region41: #{tpu_custom_call.1} parent=11 // pred_check
          %p369 = pneg %p224
        $region42: #{tpu_custom_call.1} parent=11 // pred_check_branch
          %371 = sbr.rel (%p369) target = $region44
        $region43: #{tpu_custom_call.1} parent=11 // pred_region
          _
        $region44: #{tpu_custom_call.1} parent=11 // pred_fallthru
          _
      $region12: #{tpu_custom_call.1} parent=5 // pred_fallthru
        _
      %p372 = scmp.lt.s32.totalorder %s30, 3
      // Predicated region
      $region45: #{tpu_custom_call.1} parent=5 // pred_check
        %p373 = pneg %p372
      $region46: #{tpu_custom_call.1} parent=5 // pred_check_branch
        %375 = sbr.rel (%p373) target = $region48
      $region47: #{tpu_custom_call.1} parent=5 // pred_region
        // Predicated region
        $region49: #{tpu_custom_call.1} parent=47 // pred_check
          %p376 = pneg %p50
        $region50: #{tpu_custom_call.1} parent=47 // pred_check_branch
          %378 = sbr.rel (%p376) target = $region52
        $region51: #{tpu_custom_call.1} parent=47 // pred_region
          %s379 = sand.u32 %s40, 1
          %s380 = scalar_lea.sflag [#allocation7], %s379
          %s381 = sand.u32 %s40, 1
          %s382 = smul.addr %s381, 512
          %s383 = scalar_lea.vmem [#allocation6], %s382
          %s384 = smul.u32 16, %s30
          %s386 = ssub.s32 8192, 8192
          %387 = vsyncadd %s380, %s386
          %s388 = smul.addr %s384, 8
          %s389 = smul.addr %s388, 64
          %s390 = scalar_lea.hbm %s0, %s389
          %s391 = sshll.u32 %s383, 4
          %s392 = int_to_ptr.vmem [resolvable:$true] %s391
          %397 = dma.hbm_to_vmem [thread:$0]  %s390, 8192, %s392, %s380, 512, 512, 32
        $region52: #{tpu_custom_call.1} parent=47 // pred_fallthru
          _
      $region48: #{tpu_custom_call.1} parent=5 // pred_fallthru
        _
      %p398 = scmp.le.s32.totalorder 1, %s30
      %p399 = scmp.lt.s32.totalorder %s30, 4
      %p400 = pnand %p398, %p399
      %p401 = pneg %p400
      // Predicated region
      $region53: #{tpu_custom_call.1} parent=5 // pred_check
        _
      $region54: #{tpu_custom_call.1} parent=5 // pred_check_branch
        %403 = sbr.rel (%p400) target = $region56
      $region55: #{tpu_custom_call.1} parent=5 // pred_region
        %s404 = ssub.s32 %s30, 1
        %s405 = sand.u32 %s43, 1
        %s406 = scalar_lea.sflag [#allocation7], %s405
        %s407 = sand.u32 %s43, 1
        %s408 = smul.addr %s407, 512
        %s409 = scalar_lea.vmem [#allocation6], %s408
        // Predicated region
        $region57: #{tpu_custom_call.1} parent=55 // pred_check
          %p410 = pneg %p56
        $region58: #{tpu_custom_call.1} parent=55 // pred_check_branch
          %412 = sbr.rel (%p410) target = $region60
        $region59: #{tpu_custom_call.1} parent=55 // pred_region
          %413 = dma.done %s406, 8192
        $region60: #{tpu_custom_call.1} parent=55 // pred_fallthru
          _
        // Predicated region
        $region61: #{tpu_custom_call.1} parent=55 // pred_check
          %p414 = pneg %p77
        $region62: #{tpu_custom_call.1} parent=55 // pred_check_branch
          %416 = sbr.rel (%p414) target = $region64
        $region63: #{tpu_custom_call.1} parent=55 // pred_region
          %417 = dma.done [#allocation10], 32768
        $region64: #{tpu_custom_call.1} parent=55 // pred_fallthru
          _
        // Predicated region
        $region65: #{tpu_custom_call.1} parent=55 // pred_check
          %p418 = pneg %p119
        $region66: #{tpu_custom_call.1} parent=55 // pred_check_branch
          %420 = sbr.rel (%p418) target = $region68
        $region67: #{tpu_custom_call.1} parent=55 // pred_region
          %421 = dma.done [#allocation10], 16384
        $region68: #{tpu_custom_call.1} parent=55 // pred_fallthru
          _
        %s422 = sand.u32 %s43, 1
        %s423 = scalar_lea.sflag [#allocation7], %s422
        %s424 = sand.u32 %s43, 1
        %s425 = smul.addr %s424, 512
        %s426 = scalar_lea.vmem [#allocation6], %s425
        %p427 = pneg %p56
        %p428 = pneg %p53
        %p429 = pneg %p77
        %p430 = pneg %p74
        %p431 = pneg %p98
        %p432 = pneg %p95
        %p433 = pneg %p119
        %p434 = pneg %p116
        %p435 = pneg %p140
        %p436 = pneg %p137
        %p437 = pneg %p161
        %p438 = pneg %p158
        %p439 = pneg %p182
        %p440 = pneg %p179
        %p441 = pneg %p203
        %p442 = pneg %p200
        %p443 = pneg %p224
        %p444 = pneg %p221
        %p445 = pneg %p250
        %p446 = pneg %p247
        %s447 = sand.u32 %s237, 1
        %s448 = scalar_lea.sflag [#allocation8], %s447
        %s449 = sand.u32 %s237, 1
        %s450 = scalar_lea.vmem [#allocation12], %s449
        %p451 = pneg %p271
        %p452 = pneg %p268
        %p453 = pneg %p292
        %p454 = pneg %p289
        %p455 = pneg %p313
        %p456 = pneg %p310
        %s457 = smul.u32 16, %s35
        %p458 = scmp.eq.s32.totalorder %s35, 0
        // Predicated region
        $region69: #{tpu_custom_call.1} parent=55 // pred_check
          %p459 = pneg %p458
        $region70: #{tpu_custom_call.1} parent=55 // pred_check_branch
          %461 = sbr.rel (%p459) target = $region72
        $region71: #{tpu_custom_call.1} parent=55 // pred_region
          %vm462 = vcmask 0
          %463 = vst.msk [vmem:[#allocation2] sm:$0x1] %vm462, -inf
          %464 = vst.msk [vmem:[#allocation3] sm:$0x1] %vm462, 0.0
          %v465 = vlaneseq
          %vm466 = vcmp.ge.s32.totalorder %v465, 0
          %vm467 = vcmp.lt.s32.totalorder %v465, 512
          %vm468 = vmand %vm466, %vm467
          %469 = vst.msk [vmem:[#allocation4] sm:$0xf] %vm468, 0.0
        $region72: #{tpu_custom_call.1} parent=55 // pred_fallthru
          _
        %v470 = vld [vmem:[%s409] sm:$0xff]
        %v471 = vld [vmem:[%s409 + $0x8] sm:$0xff]
        %v472 = vld [vmem:[%s409 + $0x10] sm:$0xff]
        %v473 = vld [vmem:[%s409 + $0x18] sm:$0xff]
        %v474 = vld [vmem:[%s409 + $0x20] sm:$0xff]
        %v475 = vld [vmem:[%s409 + $0x28] sm:$0xff]
        %v476 = vld [vmem:[%s409 + $0x30] sm:$0xff]
        %v477 = vld [vmem:[%s409 + $0x38] sm:$0xff]
        %v478 = vld [vmem:[%s409 + $0x40] sm:$0xff]
        %v479 = vld [vmem:[%s409 + $0x48] sm:$0xff]
        %v480 = vld [vmem:[%s409 + $0x50] sm:$0xff]
        %v481 = vld [vmem:[%s409 + $0x58] sm:$0xff]
        %v482 = vld [vmem:[%s409 + $0x60] sm:$0xff]
        %v483 = vld [vmem:[%s409 + $0x68] sm:$0xff]
        %v484 = vld [vmem:[%s409 + $0x70] sm:$0xff]
        %v485 = vld [vmem:[%s409 + $0x78] sm:$0xff]
        %v486 = vld [vmem:[%s409 + $0x80] sm:$0xff]
        %v487 = vld [vmem:[%s409 + $0x88] sm:$0xff]
        %v488 = vld [vmem:[%s409 + $0x90] sm:$0xff]
        %v489 = vld [vmem:[%s409 + $0x98] sm:$0xff]
        %v490 = vld [vmem:[%s409 + $0xa0] sm:$0xff]
        %v491 = vld [vmem:[%s409 + $0xa8] sm:$0xff]
        %v492 = vld [vmem:[%s409 + $0xb0] sm:$0xff]
        %v493 = vld [vmem:[%s409 + $0xb8] sm:$0xff]
        %v494 = vld [vmem:[%s409 + $0xc0] sm:$0xff]
        %v495 = vld [vmem:[%s409 + $0xc8] sm:$0xff]
        %v496 = vld [vmem:[%s409 + $0xd0] sm:$0xff]
        %v497 = vld [vmem:[%s409 + $0xd8] sm:$0xff]
        %v498 = vld [vmem:[%s409 + $0xe0] sm:$0xff]
        %v499 = vld [vmem:[%s409 + $0xe8] sm:$0xff]
        %v500 = vld [vmem:[%s409 + $0xf0] sm:$0xff]
        %v501 = vld [vmem:[%s409 + $0xf8] sm:$0xff]
        %v502 = vld [vmem:[%s409 + $0x100] sm:$0xff]
        %v503 = vld [vmem:[%s409 + $0x108] sm:$0xff]
        %v504 = vld [vmem:[%s409 + $0x110] sm:$0xff]
        %v505 = vld [vmem:[%s409 + $0x118] sm:$0xff]
        %v506 = vld [vmem:[%s409 + $0x120] sm:$0xff]
        %v507 = vld [vmem:[%s409 + $0x128] sm:$0xff]
        %v508 = vld [vmem:[%s409 + $0x130] sm:$0xff]
        %v509 = vld [vmem:[%s409 + $0x138] sm:$0xff]
        %v510 = vld [vmem:[%s409 + $0x140] sm:$0xff]
        %v511 = vld [vmem:[%s409 + $0x148] sm:$0xff]
        %v512 = vld [vmem:[%s409 + $0x150] sm:$0xff]
        %v513 = vld [vmem:[%s409 + $0x158] sm:$0xff]
        %v514 = vld [vmem:[%s409 + $0x160] sm:$0xff]
        %v515 = vld [vmem:[%s409 + $0x168] sm:$0xff]
        %v516 = vld [vmem:[%s409 + $0x170] sm:$0xff]
        %v517 = vld [vmem:[%s409 + $0x178] sm:$0xff]
        %v518 = vld [vmem:[%s409 + $0x180] sm:$0xff]
        %v519 = vld [vmem:[%s409 + $0x188] sm:$0xff]
        %v520 = vld [vmem:[%s409 + $0x190] sm:$0xff]
        %v521 = vld [vmem:[%s409 + $0x198] sm:$0xff]
        %v522 = vld [vmem:[%s409 + $0x1a0] sm:$0xff]
        %v523 = vld [vmem:[%s409 + $0x1a8] sm:$0xff]
        %v524 = vld [vmem:[%s409 + $0x1b0] sm:$0xff]
        %v525 = vld [vmem:[%s409 + $0x1b8] sm:$0xff]
        %v526 = vld [vmem:[%s409 + $0x1c0] sm:$0xff]
        %v527 = vld [vmem:[%s409 + $0x1c8] sm:$0xff]
        %v528 = vld [vmem:[%s409 + $0x1d0] sm:$0xff]
        %v529 = vld [vmem:[%s409 + $0x1d8] sm:$0xff]
        %v530 = vld [vmem:[%s409 + $0x1e0] sm:$0xff]
        %v531 = vld [vmem:[%s409 + $0x1e8] sm:$0xff]
        %v532 = vld [vmem:[%s409 + $0x1f0] sm:$0xff]
        %v533 = vld [vmem:[%s409 + $0x1f8] sm:$0xff]
        %v534 = vld [vmem:[#allocation9] sm:$0xff]
        %v535 = vld [vmem:[#allocation9 + $0x8] sm:$0xff]
        %v536 = vld [vmem:[#allocation9 + $0x10] sm:$0xff]
        %v537 = vld [vmem:[#allocation9 + $0x18] sm:$0xff]
        %v538 = vld [vmem:[#allocation9 + $0x20] sm:$0xff]
        %v539 = vld [vmem:[#allocation9 + $0x28] sm:$0xff]
        %v540 = vld [vmem:[#allocation9 + $0x30] sm:$0xff]
        %v541 = vld [vmem:[#allocation9 + $0x38] sm:$0xff]
        %v542 = vld [vmem:[#allocation9 + $0x40] sm:$0xff]
        %v543 = vld [vmem:[#allocation9 + $0x48] sm:$0xff]
        %v544 = vld [vmem:[#allocation9 + $0x50] sm:$0xff]
        %v545 = vld [vmem:[#allocation9 + $0x58] sm:$0xff]
        %v546 = vld [vmem:[#allocation9 + $0x60] sm:$0xff]
        %v547 = vld [vmem:[#allocation9 + $0x68] sm:$0xff]
        %v548 = vld [vmem:[#allocation9 + $0x70] sm:$0xff]
        %v549 = vld [vmem:[#allocation9 + $0x78] sm:$0xff]
        %v550 = vld [vmem:[#allocation9 + $0x80] sm:$0xff]
        %v551 = vld [vmem:[#allocation9 + $0x88] sm:$0xff]
        %v552 = vld [vmem:[#allocation9 + $0x90] sm:$0xff]
        %v553 = vld [vmem:[#allocation9 + $0x98] sm:$0xff]
        %v554 = vld [vmem:[#allocation9 + $0xa0] sm:$0xff]
        %v555 = vld [vmem:[#allocation9 + $0xa8] sm:$0xff]
        %v556 = vld [vmem:[#allocation9 + $0xb0] sm:$0xff]
        %v557 = vld [vmem:[#allocation9 + $0xb8] sm:$0xff]
        %v558 = vld [vmem:[#allocation9 + $0xc0] sm:$0xff]
        %v559 = vld [vmem:[#allocation9 + $0xc8] sm:$0xff]
        %v560 = vld [vmem:[#allocation9 + $0xd0] sm:$0xff]
        %v561 = vld [vmem:[#allocation9 + $0xd8] sm:$0xff]
        %v562 = vld [vmem:[#allocation9 + $0xe0] sm:$0xff]
        %v563 = vld [vmem:[#allocation9 + $0xe8] sm:$0xff]
        %v564 = vld [vmem:[#allocation9 + $0xf0] sm:$0xff]
        %v565 = vld [vmem:[#allocation9 + $0xf8] sm:$0xff]
        %v566 = vld [vmem:[#allocation9 + $0x100] sm:$0xff]
        %v567 = vld [vmem:[#allocation9 + $0x108] sm:$0xff]
        %v568 = vld [vmem:[#allocation9 + $0x110] sm:$0xff]
        %v569 = vld [vmem:[#allocation9 + $0x118] sm:$0xff]
        %v570 = vld [vmem:[#allocation9 + $0x120] sm:$0xff]
        %v571 = vld [vmem:[#allocation9 + $0x128] sm:$0xff]
        %v572 = vld [vmem:[#allocation9 + $0x130] sm:$0xff]
        %v573 = vld [vmem:[#allocation9 + $0x138] sm:$0xff]
        %v574 = vld [vmem:[#allocation9 + $0x140] sm:$0xff]
        %v575 = vld [vmem:[#allocation9 + $0x148] sm:$0xff]
        %v576 = vld [vmem:[#allocation9 + $0x150] sm:$0xff]
        %v577 = vld [vmem:[#allocation9 + $0x158] sm:$0xff]
        %v578 = vld [vmem:[#allocation9 + $0x160] sm:$0xff]
        %v579 = vld [vmem:[#allocation9 + $0x168] sm:$0xff]
        %v580 = vld [vmem:[#allocation9 + $0x170] sm:$0xff]
        %v581 = vld [vmem:[#allocation9 + $0x178] sm:$0xff]
        %v582 = vld [vmem:[#allocation9 + $0x180] sm:$0xff]
        %v583 = vld [vmem:[#allocation9 + $0x188] sm:$0xff]
        %v584 = vld [vmem:[#allocation9 + $0x190] sm:$0xff]
        %v585 = vld [vmem:[#allocation9 + $0x198] sm:$0xff]
        %v586 = vld [vmem:[#allocation9 + $0x1a0] sm:$0xff]
        %v587 = vld [vmem:[#allocation9 + $0x1a8] sm:$0xff]
        %v588 = vld [vmem:[#allocation9 + $0x1b0] sm:$0xff]
        %v589 = vld [vmem:[#allocation9 + $0x1b8] sm:$0xff]
        %v590 = vld [vmem:[#allocation9 + $0x1c0] sm:$0xff]
        %v591 = vld [vmem:[#allocation9 + $0x1c8] sm:$0xff]
        %v592 = vld [vmem:[#allocation9 + $0x1d0] sm:$0xff]
        %v593 = vld [vmem:[#allocation9 + $0x1d8] sm:$0xff]
        %v594 = vld [vmem:[#allocation9 + $0x1e0] sm:$0xff]
        %v595 = vld [vmem:[#allocation9 + $0x1e8] sm:$0xff]
        %v596 = vld [vmem:[#allocation9 + $0x1f0] sm:$0xff]
        %v597 = vld [vmem:[#allocation9 + $0x1f8] sm:$0xff]
        %v598 = vld [vmem:[#allocation9 + $0x200] sm:$0xff]
        %v599 = vld [vmem:[#allocation9 + $0x208] sm:$0xff]
        %v600 = vld [vmem:[#allocation9 + $0x210] sm:$0xff]
        %v601 = vld [vmem:[#allocation9 + $0x218] sm:$0xff]
        %v602 = vld [vmem:[#allocation9 + $0x220] sm:$0xff]
        %v603 = vld [vmem:[#allocation9 + $0x228] sm:$0xff]
        %v604 = vld [vmem:[#allocation9 + $0x230] sm:$0xff]
        %v605 = vld [vmem:[#allocation9 + $0x238] sm:$0xff]
        %v606 = vld [vmem:[#allocation9 + $0x240] sm:$0xff]
        %v607 = vld [vmem:[#allocation9 + $0x248] sm:$0xff]
        %v608 = vld [vmem:[#allocation9 + $0x250] sm:$0xff]
        %v609 = vld [vmem:[#allocation9 + $0x258] sm:$0xff]
        %v610 = vld [vmem:[#allocation9 + $0x260] sm:$0xff]
        %v611 = vld [vmem:[#allocation9 + $0x268] sm:$0xff]
        %v612 = vld [vmem:[#allocation9 + $0x270] sm:$0xff]
        %v613 = vld [vmem:[#allocation9 + $0x278] sm:$0xff]
        %v614 = vld [vmem:[#allocation9 + $0x280] sm:$0xff]
        %v615 = vld [vmem:[#allocation9 + $0x288] sm:$0xff]
        %v616 = vld [vmem:[#allocation9 + $0x290] sm:$0xff]
        %v617 = vld [vmem:[#allocation9 + $0x298] sm:$0xff]
        %v618 = vld [vmem:[#allocation9 + $0x2a0] sm:$0xff]
        %v619 = vld [vmem:[#allocation9 + $0x2a8] sm:$0xff]
        %v620 = vld [vmem:[#allocation9 + $0x2b0] sm:$0xff]
        %v621 = vld [vmem:[#allocation9 + $0x2b8] sm:$0xff]
        %v622 = vld [vmem:[#allocation9 + $0x2c0] sm:$0xff]
        %v623 = vld [vmem:[#allocation9 + $0x2c8] sm:$0xff]
        %v624 = vld [vmem:[#allocation9 + $0x2d0] sm:$0xff]
        %v625 = vld [vmem:[#allocation9 + $0x2d8] sm:$0xff]
        %v626 = vld [vmem:[#allocation9 + $0x2e0] sm:$0xff]
        %v627 = vld [vmem:[#allocation9 + $0x2e8] sm:$0xff]
        %v628 = vld [vmem:[#allocation9 + $0x2f0] sm:$0xff]
        %v629 = vld [vmem:[#allocation9 + $0x2f8] sm:$0xff]
        %v630 = vld [vmem:[#allocation9 + $0x300] sm:$0xff]
        %v631 = vld [vmem:[#allocation9 + $0x308] sm:$0xff]
        %v632 = vld [vmem:[#allocation9 + $0x310] sm:$0xff]
        %v633 = vld [vmem:[#allocation9 + $0x318] sm:$0xff]
        %v634 = vld [vmem:[#allocation9 + $0x320] sm:$0xff]
        %v635 = vld [vmem:[#allocation9 + $0x328] sm:$0xff]
        %v636 = vld [vmem:[#allocation9 + $0x330] sm:$0xff]
        %v637 = vld [vmem:[#allocation9 + $0x338] sm:$0xff]
        %v638 = vld [vmem:[#allocation9 + $0x340] sm:$0xff]
        %v639 = vld [vmem:[#allocation9 + $0x348] sm:$0xff]
        %v640 = vld [vmem:[#allocation9 + $0x350] sm:$0xff]
        %v641 = vld [vmem:[#allocation9 + $0x358] sm:$0xff]
        %v642 = vld [vmem:[#allocation9 + $0x360] sm:$0xff]
        %v643 = vld [vmem:[#allocation9 + $0x368] sm:$0xff]
        %v644 = vld [vmem:[#allocation9 + $0x370] sm:$0xff]
        %v645 = vld [vmem:[#allocation9 + $0x378] sm:$0xff]
        %v646 = vld [vmem:[#allocation9 + $0x380] sm:$0xff]
        %v647 = vld [vmem:[#allocation9 + $0x388] sm:$0xff]
        %v648 = vld [vmem:[#allocation9 + $0x390] sm:$0xff]
        %v649 = vld [vmem:[#allocation9 + $0x398] sm:$0xff]
        %v650 = vld [vmem:[#allocation9 + $0x3a0] sm:$0xff]
        %v651 = vld [vmem:[#allocation9 + $0x3a8] sm:$0xff]
        %v652 = vld [vmem:[#allocation9 + $0x3b0] sm:$0xff]
        %v653 = vld [vmem:[#allocation9 + $0x3b8] sm:$0xff]
        %v654 = vld [vmem:[#allocation9 + $0x3c0] sm:$0xff]
        %v655 = vld [vmem:[#allocation9 + $0x3c8] sm:$0xff]
        %v656 = vld [vmem:[#allocation9 + $0x3d0] sm:$0xff]
        %v657 = vld [vmem:[#allocation9 + $0x3d8] sm:$0xff]
        %v658 = vld [vmem:[#allocation9 + $0x3e0] sm:$0xff]
        %v659 = vld [vmem:[#allocation9 + $0x3e8] sm:$0xff]
        %v660 = vld [vmem:[#allocation9 + $0x3f0] sm:$0xff]
        %v661 = vld [vmem:[#allocation9 + $0x3f8] sm:$0xff]
        %v662 = vld [vmem:[#allocation9 + $0x400] sm:$0xff]
        %v663 = vld [vmem:[#allocation9 + $0x408] sm:$0xff]
        %v664 = vld [vmem:[#allocation9 + $0x410] sm:$0xff]
        %v665 = vld [vmem:[#allocation9 + $0x418] sm:$0xff]
        %v666 = vld [vmem:[#allocation9 + $0x420] sm:$0xff]
        %v667 = vld [vmem:[#allocation9 + $0x428] sm:$0xff]
        %v668 = vld [vmem:[#allocation9 + $0x430] sm:$0xff]
        %v669 = vld [vmem:[#allocation9 + $0x438] sm:$0xff]
        %v670 = vld [vmem:[#allocation9 + $0x440] sm:$0xff]
        %v671 = vld [vmem:[#allocation9 + $0x448] sm:$0xff]
        %v672 = vld [vmem:[#allocation9 + $0x450] sm:$0xff]
        %v673 = vld [vmem:[#allocation9 + $0x458] sm:$0xff]
        %v674 = vld [vmem:[#allocation9 + $0x460] sm:$0xff]
        %v675 = vld [vmem:[#allocation9 + $0x468] sm:$0xff]
        %v676 = vld [vmem:[#allocation9 + $0x470] sm:$0xff]
        %v677 = vld [vmem:[#allocation9 + $0x478] sm:$0xff]
        %v678 = vld [vmem:[#allocation9 + $0x480] sm:$0xff]
        %v679 = vld [vmem:[#allocation9 + $0x488] sm:$0xff]
        %v680 = vld [vmem:[#allocation9 + $0x490] sm:$0xff]
        %v681 = vld [vmem:[#allocation9 + $0x498] sm:$0xff]
        %v682 = vld [vmem:[#allocation9 + $0x4a0] sm:$0xff]
        %v683 = vld [vmem:[#allocation9 + $0x4a8] sm:$0xff]
        %v684 = vld [vmem:[#allocation9 + $0x4b0] sm:$0xff]
        %v685 = vld [vmem:[#allocation9 + $0x4b8] sm:$0xff]
        %v686 = vld [vmem:[#allocation9 + $0x4c0] sm:$0xff]
        %v687 = vld [vmem:[#allocation9 + $0x4c8] sm:$0xff]
        %v688 = vld [vmem:[#allocation9 + $0x4d0] sm:$0xff]
        %v689 = vld [vmem:[#allocation9 + $0x4d8] sm:$0xff]
        %v690 = vld [vmem:[#allocation9 + $0x4e0] sm:$0xff]
        %v691 = vld [vmem:[#allocation9 + $0x4e8] sm:$0xff]
        %v692 = vld [vmem:[#allocation9 + $0x4f0] sm:$0xff]
        %v693 = vld [vmem:[#allocation9 + $0x4f8] sm:$0xff]
        %v694 = vld [vmem:[#allocation9 + $0x500] sm:$0xff]
        %v695 = vld [vmem:[#allocation9 + $0x508] sm:$0xff]
        %v696 = vld [vmem:[#allocation9 + $0x510] sm:$0xff]
        %v697 = vld [vmem:[#allocation9 + $0x518] sm:$0xff]
        %v698 = vld [vmem:[#allocation9 + $0x520] sm:$0xff]
        %v699 = vld [vmem:[#allocation9 + $0x528] sm:$0xff]
        %v700 = vld [vmem:[#allocation9 + $0x530] sm:$0xff]
        %v701 = vld [vmem:[#allocation9 + $0x538] sm:$0xff]
        %v702 = vld [vmem:[#allocation9 + $0x540] sm:$0xff]
        %v703 = vld [vmem:[#allocation9 + $0x548] sm:$0xff]
        %v704 = vld [vmem:[#allocation9 + $0x550] sm:$0xff]
        %v705 = vld [vmem:[#allocation9 + $0x558] sm:$0xff]
        %v706 = vld [vmem:[#allocation9 + $0x560] sm:$0xff]
        %v707 = vld [vmem:[#allocation9 + $0x568] sm:$0xff]
        %v708 = vld [vmem:[#allocation9 + $0x570] sm:$0xff]
        %v709 = vld [vmem:[#allocation9 + $0x578] sm:$0xff]
        %v710 = vld [vmem:[#allocation9 + $0x580] sm:$0xff]
        %v711 = vld [vmem:[#allocation9 + $0x588] sm:$0xff]
        %v712 = vld [vmem:[#allocation9 + $0x590] sm:$0xff]
        %v713 = vld [vmem:[#allocation9 + $0x598] sm:$0xff]
        %v714 = vld [vmem:[#allocation9 + $0x5a0] sm:$0xff]
        %v715 = vld [vmem:[#allocation9 + $0x5a8] sm:$0xff]
        %v716 = vld [vmem:[#allocation9 + $0x5b0] sm:$0xff]
        %v717 = vld [vmem:[#allocation9 + $0x5b8] sm:$0xff]
        %v718 = vld [vmem:[#allocation9 + $0x5c0] sm:$0xff]
        %v719 = vld [vmem:[#allocation9 + $0x5c8] sm:$0xff]
        %v720 = vld [vmem:[#allocation9 + $0x5d0] sm:$0xff]
        %v721 = vld [vmem:[#allocation9 + $0x5d8] sm:$0xff]
        %v722 = vld [vmem:[#allocation9 + $0x5e0] sm:$0xff]
        %v723 = vld [vmem:[#allocation9 + $0x5e8] sm:$0xff]
        %v724 = vld [vmem:[#allocation9 + $0x5f0] sm:$0xff]
        %v725 = vld [vmem:[#allocation9 + $0x5f8] sm:$0xff]
        %v726 = vld [vmem:[#allocation9 + $0x600] sm:$0xff]
        %v727 = vld [vmem:[#allocation9 + $0x608] sm:$0xff]
        %v728 = vld [vmem:[#allocation9 + $0x610] sm:$0xff]
        %v729 = vld [vmem:[#allocation9 + $0x618] sm:$0xff]
        %v730 = vld [vmem:[#allocation9 + $0x620] sm:$0xff]
        %v731 = vld [vmem:[#allocation9 + $0x628] sm:$0xff]
        %v732 = vld [vmem:[#allocation9 + $0x630] sm:$0xff]
        %v733 = vld [vmem:[#allocation9 + $0x638] sm:$0xff]
        %v734 = vld [vmem:[#allocation9 + $0x640] sm:$0xff]
        %v735 = vld [vmem:[#allocation9 + $0x648] sm:$0xff]
        %v736 = vld [vmem:[#allocation9 + $0x650] sm:$0xff]
        %v737 = vld [vmem:[#allocation9 + $0x658] sm:$0xff]
        %v738 = vld [vmem:[#allocation9 + $0x660] sm:$0xff]
        %v739 = vld [vmem:[#allocation9 + $0x668] sm:$0xff]
        %v740 = vld [vmem:[#allocation9 + $0x670] sm:$0xff]
        %v741 = vld [vmem:[#allocation9 + $0x678] sm:$0xff]
        %v742 = vld [vmem:[#allocation9 + $0x680] sm:$0xff]
        %v743 = vld [vmem:[#allocation9 + $0x688] sm:$0xff]
        %v744 = vld [vmem:[#allocation9 + $0x690] sm:$0xff]
        %v745 = vld [vmem:[#allocation9 + $0x698] sm:$0xff]
        %v746 = vld [vmem:[#allocation9 + $0x6a0] sm:$0xff]
        %v747 = vld [vmem:[#allocation9 + $0x6a8] sm:$0xff]
        %v748 = vld [vmem:[#allocation9 + $0x6b0] sm:$0xff]
        %v749 = vld [vmem:[#allocation9 + $0x6b8] sm:$0xff]
        %v750 = vld [vmem:[#allocation9 + $0x6c0] sm:$0xff]
        %v751 = vld [vmem:[#allocation9 + $0x6c8] sm:$0xff]
        %v752 = vld [vmem:[#allocation9 + $0x6d0] sm:$0xff]
        %v753 = vld [vmem:[#allocation9 + $0x6d8] sm:$0xff]
        %v754 = vld [vmem:[#allocation9 + $0x6e0] sm:$0xff]
        %v755 = vld [vmem:[#allocation9 + $0x6e8] sm:$0xff]
        %v756 = vld [vmem:[#allocation9 + $0x6f0] sm:$0xff]
        %v757 = vld [vmem:[#allocation9 + $0x6f8] sm:$0xff]
        %v758 = vld [vmem:[#allocation9 + $0x700] sm:$0xff]
        %v759 = vld [vmem:[#allocation9 + $0x708] sm:$0xff]
        %v760 = vld [vmem:[#allocation9 + $0x710] sm:$0xff]
        %v761 = vld [vmem:[#allocation9 + $0x718] sm:$0xff]
        %v762 = vld [vmem:[#allocation9 + $0x720] sm:$0xff]
        %v763 = vld [vmem:[#allocation9 + $0x728] sm:$0xff]
        %v764 = vld [vmem:[#allocation9 + $0x730] sm:$0xff]
        %v765 = vld [vmem:[#allocation9 + $0x738] sm:$0xff]
        %v766 = vld [vmem:[#allocation9 + $0x740] sm:$0xff]
        %v767 = vld [vmem:[#allocation9 + $0x748] sm:$0xff]
        %v768 = vld [vmem:[#allocation9 + $0x750] sm:$0xff]
        %v769 = vld [vmem:[#allocation9 + $0x758] sm:$0xff]
        %v770 = vld [vmem:[#allocation9 + $0x760] sm:$0xff]
        %v771 = vld [vmem:[#allocation9 + $0x768] sm:$0xff]
        %v772 = vld [vmem:[#allocation9 + $0x770] sm:$0xff]
        %v773 = vld [vmem:[#allocation9 + $0x778] sm:$0xff]
        %v774 = vld [vmem:[#allocation9 + $0x780] sm:$0xff]
        %v775 = vld [vmem:[#allocation9 + $0x788] sm:$0xff]
        %v776 = vld [vmem:[#allocation9 + $0x790] sm:$0xff]
        %v777 = vld [vmem:[#allocation9 + $0x798] sm:$0xff]
        %v778 = vld [vmem:[#allocation9 + $0x7a0] sm:$0xff]
        %v779 = vld [vmem:[#allocation9 + $0x7a8] sm:$0xff]
        %v780 = vld [vmem:[#allocation9 + $0x7b0] sm:$0xff]
        %v781 = vld [vmem:[#allocation9 + $0x7b8] sm:$0xff]
        %v782 = vld [vmem:[#allocation9 + $0x7c0] sm:$0xff]
        %v783 = vld [vmem:[#allocation9 + $0x7c8] sm:$0xff]
        %v784 = vld [vmem:[#allocation9 + $0x7d0] sm:$0xff]
        %v785 = vld [vmem:[#allocation9 + $0x7d8] sm:$0xff]
        %v786 = vld [vmem:[#allocation9 + $0x7e0] sm:$0xff]
        %v787 = vld [vmem:[#allocation9 + $0x7e8] sm:$0xff]
        %v788 = vld [vmem:[#allocation9 + $0x7f0] sm:$0xff]
        %v789 = vld [vmem:[#allocation9 + $0x7f8] sm:$0xff]
        %v790 = vld [vmem:[%s2] sm:$0xf]
        %v792 = vlaneseq
        %v793 = vshrl.u32 %v792, 7
        %v794 = vsub.s32 0, %v793
        %v795 = vrot.slane %v790, %v794
        %v796 = vlaneseq
        %v797 = vshrl.u32 %v796, 7
        %v798 = vsub.s32 1, %v797
        %v799 = vrot.slane %v790, %v798
        %v800 = vlaneseq
        %v801 = vshrl.u32 %v800, 7
        %v802 = vsub.s32 2, %v801
        %v803 = vrot.slane %v790, %v802
        %v804 = vlaneseq
        %v805 = vshrl.u32 %v804, 7
        %v806 = vsub.s32 3, %v805
        %v807 = vrot.slane %v790, %v806
        %v876 = vunpack.c.l.b16 %v470
        %v877 = vunpack.c.h.b16 %v470
        %v878 = vunpack.c.l.b16 %v471
        %v879 = vunpack.c.h.b16 %v471
        %v880 = vunpack.c.l.b16 %v472
        %v881 = vunpack.c.h.b16 %v472
        %v882 = vunpack.c.l.b16 %v473
        %v883 = vunpack.c.h.b16 %v473
        %v884 = vunpack.c.l.b16 %v474
        %v885 = vunpack.c.h.b16 %v474
        %v886 = vunpack.c.l.b16 %v475
        %v887 = vunpack.c.h.b16 %v475
        %v888 = vunpack.c.l.b16 %v476
        %v889 = vunpack.c.h.b16 %v476
        %v890 = vunpack.c.l.b16 %v477
        %v891 = vunpack.c.h.b16 %v477
        %v892 = vunpack.c.l.b16 %v478
        %v893 = vunpack.c.h.b16 %v478
        %v894 = vunpack.c.l.b16 %v479
        %v895 = vunpack.c.h.b16 %v479
        %v896 = vunpack.c.l.b16 %v480
        %v897 = vunpack.c.h.b16 %v480
        %v898 = vunpack.c.l.b16 %v481
        %v899 = vunpack.c.h.b16 %v481
        %v900 = vunpack.c.l.b16 %v482
        %v901 = vunpack.c.h.b16 %v482
        %v902 = vunpack.c.l.b16 %v483
        %v903 = vunpack.c.h.b16 %v483
        %v904 = vunpack.c.l.b16 %v484
        %v905 = vunpack.c.h.b16 %v484
        %v906 = vunpack.c.l.b16 %v485
        %v907 = vunpack.c.h.b16 %v485
        %v908 = vunpack.c.l.b16 %v486
        %v909 = vunpack.c.h.b16 %v486
        %v910 = vunpack.c.l.b16 %v487
        %v911 = vunpack.c.h.b16 %v487
        %v912 = vunpack.c.l.b16 %v488
        %v913 = vunpack.c.h.b16 %v488
        %v914 = vunpack.c.l.b16 %v489
        %v915 = vunpack.c.h.b16 %v489
        %v916 = vunpack.c.l.b16 %v490
        %v917 = vunpack.c.h.b16 %v490
        %v918 = vunpack.c.l.b16 %v491
        %v919 = vunpack.c.h.b16 %v491
        %v920 = vunpack.c.l.b16 %v492
        %v921 = vunpack.c.h.b16 %v492
        %v922 = vunpack.c.l.b16 %v493
        %v923 = vunpack.c.h.b16 %v493
        %v924 = vunpack.c.l.b16 %v494
        %v925 = vunpack.c.h.b16 %v494
        %v926 = vunpack.c.l.b16 %v495
        %v927 = vunpack.c.h.b16 %v495
        %v928 = vunpack.c.l.b16 %v496
        %v929 = vunpack.c.h.b16 %v496
        %v930 = vunpack.c.l.b16 %v497
        %v931 = vunpack.c.h.b16 %v497
        %v932 = vunpack.c.l.b16 %v498
        %v933 = vunpack.c.h.b16 %v498
        %v934 = vunpack.c.l.b16 %v499
        %v935 = vunpack.c.h.b16 %v499
        %v936 = vunpack.c.l.b16 %v500
        %v937 = vunpack.c.h.b16 %v500
        %v938 = vunpack.c.l.b16 %v501
        %v939 = vunpack.c.h.b16 %v501
        %v940 = vunpack.c.l.b16 %v502
        %v941 = vunpack.c.h.b16 %v502
        %v942 = vunpack.c.l.b16 %v503
        %v943 = vunpack.c.h.b16 %v503
        %v944 = vunpack.c.l.b16 %v504
        %v945 = vunpack.c.h.b16 %v504
        %v946 = vunpack.c.l.b16 %v505
        %v947 = vunpack.c.h.b16 %v505
        %v948 = vunpack.c.l.b16 %v506
        %v949 = vunpack.c.h.b16 %v506
        %v950 = vunpack.c.l.b16 %v507
        %v951 = vunpack.c.h.b16 %v507
        %v952 = vunpack.c.l.b16 %v508
        %v953 = vunpack.c.h.b16 %v508
        %v954 = vunpack.c.l.b16 %v509
        %v955 = vunpack.c.h.b16 %v509
        %v956 = vunpack.c.l.b16 %v510
        %v957 = vunpack.c.h.b16 %v510
        %v958 = vunpack.c.l.b16 %v511
        %v959 = vunpack.c.h.b16 %v511
        %v960 = vunpack.c.l.b16 %v512
        %v961 = vunpack.c.h.b16 %v512
        %v962 = vunpack.c.l.b16 %v513
        %v963 = vunpack.c.h.b16 %v513
        %v964 = vunpack.c.l.b16 %v514
        %v965 = vunpack.c.h.b16 %v514
        %v966 = vunpack.c.l.b16 %v515
        %v967 = vunpack.c.h.b16 %v515
        %v968 = vunpack.c.l.b16 %v516
        %v969 = vunpack.c.h.b16 %v516
        %v970 = vunpack.c.l.b16 %v517
        %v971 = vunpack.c.h.b16 %v517
        %v972 = vunpack.c.l.b16 %v518
        %v973 = vunpack.c.h.b16 %v518
        %v974 = vunpack.c.l.b16 %v519
        %v975 = vunpack.c.h.b16 %v519
        %v976 = vunpack.c.l.b16 %v520
        %v977 = vunpack.c.h.b16 %v520
        %v978 = vunpack.c.l.b16 %v521
        %v979 = vunpack.c.h.b16 %v521
        %v980 = vunpack.c.l.b16 %v522
        %v981 = vunpack.c.h.b16 %v522
        %v982 = vunpack.c.l.b16 %v523
        %v983 = vunpack.c.h.b16 %v523
        %v984 = vunpack.c.l.b16 %v524
        %v985 = vunpack.c.h.b16 %v524
        %v986 = vunpack.c.l.b16 %v525
        %v987 = vunpack.c.h.b16 %v525
        %v988 = vunpack.c.l.b16 %v526
        %v989 = vunpack.c.h.b16 %v526
        %v990 = vunpack.c.l.b16 %v527
        %v991 = vunpack.c.h.b16 %v527
        %v992 = vunpack.c.l.b16 %v528
        %v993 = vunpack.c.h.b16 %v528
        %v994 = vunpack.c.l.b16 %v529
        %v995 = vunpack.c.h.b16 %v529
        %v996 = vunpack.c.l.b16 %v530
        %v997 = vunpack.c.h.b16 %v530
        %v998 = vunpack.c.l.b16 %v531
        %v999 = vunpack.c.h.b16 %v531
        %v1000 = vunpack.c.l.b16 %v532
        %v1001 = vunpack.c.h.b16 %v532
        %v1002 = vunpack.c.l.b16 %v533
        %v1003 = vunpack.c.h.b16 %v533
        %v1004 = vpack.c.b16 %v884, %v876
        %v1005 = vpack.c.b16 %v885, %v877
        %v1006 = vpack.c.b16 %v886, %v878
        %v1007 = vpack.c.b16 %v887, %v879
        %v1008 = vpack.c.b16 %v888, %v880
        %v1009 = vpack.c.b16 %v889, %v881
        %v1010 = vpack.c.b16 %v890, %v882
        %v1011 = vpack.c.b16 %v891, %v883
        %v1012 = vpack.c.b16 %v900, %v892
        %v1013 = vpack.c.b16 %v901, %v893
        %v1014 = vpack.c.b16 %v902, %v894
        %v1015 = vpack.c.b16 %v903, %v895
        %v1016 = vpack.c.b16 %v904, %v896
        %v1017 = vpack.c.b16 %v905, %v897
        %v1018 = vpack.c.b16 %v906, %v898
        %v1019 = vpack.c.b16 %v907, %v899
        %v1020 = vpack.c.b16 %v916, %v908
        %v1021 = vpack.c.b16 %v917, %v909
        %v1022 = vpack.c.b16 %v918, %v910
        %v1023 = vpack.c.b16 %v919, %v911
        %v1024 = vpack.c.b16 %v920, %v912
        %v1025 = vpack.c.b16 %v921, %v913
        %v1026 = vpack.c.b16 %v922, %v914
        %v1027 = vpack.c.b16 %v923, %v915
        %v1028 = vpack.c.b16 %v932, %v924
        %v1029 = vpack.c.b16 %v933, %v925
        %v1030 = vpack.c.b16 %v934, %v926
        %v1031 = vpack.c.b16 %v935, %v927
        %v1032 = vpack.c.b16 %v936, %v928
        %v1033 = vpack.c.b16 %v937, %v929
        %v1034 = vpack.c.b16 %v938, %v930
        %v1035 = vpack.c.b16 %v939, %v931
        %v1036 = vpack.c.b16 %v948, %v940
        %v1037 = vpack.c.b16 %v949, %v941
        %v1038 = vpack.c.b16 %v950, %v942
        %v1039 = vpack.c.b16 %v951, %v943
        %v1040 = vpack.c.b16 %v952, %v944
        %v1041 = vpack.c.b16 %v953, %v945
        %v1042 = vpack.c.b16 %v954, %v946
        %v1043 = vpack.c.b16 %v955, %v947
        %v1044 = vpack.c.b16 %v964, %v956
        %v1045 = vpack.c.b16 %v965, %v957
        %v1046 = vpack.c.b16 %v966, %v958
        %v1047 = vpack.c.b16 %v967, %v959
        %v1048 = vpack.c.b16 %v968, %v960
        %v1049 = vpack.c.b16 %v969, %v961
        %v1050 = vpack.c.b16 %v970, %v962
        %v1051 = vpack.c.b16 %v971, %v963
        %v1052 = vpack.c.b16 %v980, %v972
        %v1053 = vpack.c.b16 %v981, %v973
        %v1054 = vpack.c.b16 %v982, %v974
        %v1055 = vpack.c.b16 %v983, %v975
        %v1056 = vpack.c.b16 %v984, %v976
        %v1057 = vpack.c.b16 %v985, %v977
        %v1058 = vpack.c.b16 %v986, %v978
        %v1059 = vpack.c.b16 %v987, %v979
        %v1060 = vpack.c.b16 %v996, %v988
        %v1061 = vpack.c.b16 %v997, %v989
        %v1062 = vpack.c.b16 %v998, %v990
        %v1063 = vpack.c.b16 %v999, %v991
        %v1064 = vpack.c.b16 %v1000, %v992
        %v1065 = vpack.c.b16 %v1001, %v993
        %v1066 = vpack.c.b16 %v1002, %v994
        %v1067 = vpack.c.b16 %v1003, %v995
        %v1388 = vunpack.c.l.b16 %v534
        %v1389 = vunpack.c.h.b16 %v534
        %v1390 = vunpack.c.l.b16 %v535
        %v1391 = vunpack.c.h.b16 %v535
        %v1392 = vunpack.c.l.b16 %v536
        %v1393 = vunpack.c.h.b16 %v536
        %v1394 = vunpack.c.l.b16 %v537
        %v1395 = vunpack.c.h.b16 %v537
        %v1396 = vunpack.c.l.b16 %v538
        %v1397 = vunpack.c.h.b16 %v538
        %v1398 = vunpack.c.l.b16 %v539
        %v1399 = vunpack.c.h.b16 %v539
        %v1400 = vunpack.c.l.b16 %v540
        %v1401 = vunpack.c.h.b16 %v540
        %v1402 = vunpack.c.l.b16 %v541
        %v1403 = vunpack.c.h.b16 %v541
        %v1404 = vunpack.c.l.b16 %v542
        %v1405 = vunpack.c.h.b16 %v542
        %v1406 = vunpack.c.l.b16 %v543
        %v1407 = vunpack.c.h.b16 %v543
        %v1408 = vunpack.c.l.b16 %v544
        %v1409 = vunpack.c.h.b16 %v544
        %v1410 = vunpack.c.l.b16 %v545
        %v1411 = vunpack.c.h.b16 %v545
        %v1412 = vunpack.c.l.b16 %v546
        %v1413 = vunpack.c.h.b16 %v546
        %v1414 = vunpack.c.l.b16 %v547
        %v1415 = vunpack.c.h.b16 %v547
        %v1416 = vunpack.c.l.b16 %v548
        %v1417 = vunpack.c.h.b16 %v548
        %v1418 = vunpack.c.l.b16 %v549
        %v1419 = vunpack.c.h.b16 %v549
        %v1420 = vunpack.c.l.b16 %v550
        %v1421 = vunpack.c.h.b16 %v550
        %v1422 = vunpack.c.l.b16 %v551
        %v1423 = vunpack.c.h.b16 %v551
        %v1424 = vunpack.c.l.b16 %v552
        %v1425 = vunpack.c.h.b16 %v552
        %v1426 = vunpack.c.l.b16 %v553
        %v1427 = vunpack.c.h.b16 %v553
        %v1428 = vunpack.c.l.b16 %v554
        %v1429 = vunpack.c.h.b16 %v554
        %v1430 = vunpack.c.l.b16 %v555
        %v1431 = vunpack.c.h.b16 %v555
        %v1432 = vunpack.c.l.b16 %v556
        %v1433 = vunpack.c.h.b16 %v556
        %v1434 = vunpack.c.l.b16 %v557
        %v1435 = vunpack.c.h.b16 %v557
        %v1436 = vunpack.c.l.b16 %v558
        %v1437 = vunpack.c.h.b16 %v558
        %v1438 = vunpack.c.l.b16 %v559
        %v1439 = vunpack.c.h.b16 %v559
        %v1440 = vunpack.c.l.b16 %v560
        %v1441 = vunpack.c.h.b16 %v560
        %v1442 = vunpack.c.l.b16 %v561
        %v1443 = vunpack.c.h.b16 %v561
        %v1444 = vunpack.c.l.b16 %v562
        %v1445 = vunpack.c.h.b16 %v562
        %v1446 = vunpack.c.l.b16 %v563
        %v1447 = vunpack.c.h.b16 %v563
        %v1448 = vunpack.c.l.b16 %v564
        %v1449 = vunpack.c.h.b16 %v564
        %v1450 = vunpack.c.l.b16 %v565
        %v1451 = vunpack.c.h.b16 %v565
        %v1452 = vunpack.c.l.b16 %v566
        %v1453 = vunpack.c.h.b16 %v566
        %v1454 = vunpack.c.l.b16 %v567
        %v1455 = vunpack.c.h.b16 %v567
        %v1456 = vunpack.c.l.b16 %v568
        %v1457 = vunpack.c.h.b16 %v568
        %v1458 = vunpack.c.l.b16 %v569
        %v1459 = vunpack.c.h.b16 %v569
        %v1460 = vunpack.c.l.b16 %v570
        %v1461 = vunpack.c.h.b16 %v570
        %v1462 = vunpack.c.l.b16 %v571
        %v1463 = vunpack.c.h.b16 %v571
        %v1464 = vunpack.c.l.b16 %v572
        %v1465 = vunpack.c.h.b16 %v572
        %v1466 = vunpack.c.l.b16 %v573
        %v1467 = vunpack.c.h.b16 %v573
        %v1468 = vunpack.c.l.b16 %v574
        %v1469 = vunpack.c.h.b16 %v574
        %v1470 = vunpack.c.l.b16 %v575
        %v1471 = vunpack.c.h.b16 %v575
        %v1472 = vunpack.c.l.b16 %v576
        %v1473 = vunpack.c.h.b16 %v576
        %v1474 = vunpack.c.l.b16 %v577
        %v1475 = vunpack.c.h.b16 %v577
        %v1476 = vunpack.c.l.b16 %v578
        %v1477 = vunpack.c.h.b16 %v578
        %v1478 = vunpack.c.l.b16 %v579
        %v1479 = vunpack.c.h.b16 %v579
        %v1480 = vunpack.c.l.b16 %v580
        %v1481 = vunpack.c.h.b16 %v580
        %v1482 = vunpack.c.l.b16 %v581
        %v1483 = vunpack.c.h.b16 %v581
        %v1484 = vunpack.c.l.b16 %v582
        %v1485 = vunpack.c.h.b16 %v582
        %v1486 = vunpack.c.l.b16 %v583
        %v1487 = vunpack.c.h.b16 %v583
        %v1488 = vunpack.c.l.b16 %v584
        %v1489 = vunpack.c.h.b16 %v584
        %v1490 = vunpack.c.l.b16 %v585
        %v1491 = vunpack.c.h.b16 %v585
        %v1492 = vunpack.c.l.b16 %v586
        %v1493 = vunpack.c.h.b16 %v586
        %v1494 = vunpack.c.l.b16 %v587
        %v1495 = vunpack.c.h.b16 %v587
        %v1496 = vunpack.c.l.b16 %v588
        %v1497 = vunpack.c.h.b16 %v588
        %v1498 = vunpack.c.l.b16 %v589
        %v1499 = vunpack.c.h.b16 %v589
        %v1500 = vunpack.c.l.b16 %v590
        %v1501 = vunpack.c.h.b16 %v590
        %v1502 = vunpack.c.l.b16 %v591
        %v1503 = vunpack.c.h.b16 %v591
        %v1504 = vunpack.c.l.b16 %v592
        %v1505 = vunpack.c.h.b16 %v592
        %v1506 = vunpack.c.l.b16 %v593
        %v1507 = vunpack.c.h.b16 %v593
        %v1508 = vunpack.c.l.b16 %v594
        %v1509 = vunpack.c.h.b16 %v594
        %v1510 = vunpack.c.l.b16 %v595
        %v1511 = vunpack.c.h.b16 %v595
        %v1512 = vunpack.c.l.b16 %v596
        %v1513 = vunpack.c.h.b16 %v596
        %v1514 = vunpack.c.l.b16 %v597
        %v1515 = vunpack.c.h.b16 %v597
        %v1516 = vunpack.c.l.b16 %v598
        %v1517 = vunpack.c.h.b16 %v598
        %v1518 = vunpack.c.l.b16 %v599
        %v1519 = vunpack.c.h.b16 %v599
        %v1520 = vunpack.c.l.b16 %v600
        %v1521 = vunpack.c.h.b16 %v600
        %v1522 = vunpack.c.l.b16 %v601
        %v1523 = vunpack.c.h.b16 %v601
        %v1524 = vunpack.c.l.b16 %v602
        %v1525 = vunpack.c.h.b16 %v602
        %v1526 = vunpack.c.l.b16 %v603
        %v1527 = vunpack.c.h.b16 %v603
        %v1528 = vunpack.c.l.b16 %v604
        %v1529 = vunpack.c.h.b16 %v604
        %v1530 = vunpack.c.l.b16 %v605
        %v1531 = vunpack.c.h.b16 %v605
        %v1532 = vunpack.c.l.b16 %v606
        %v1533 = vunpack.c.h.b16 %v606
        %v1534 = vunpack.c.l.b16 %v607
        %v1535 = vunpack.c.h.b16 %v607
        %v1536 = vunpack.c.l.b16 %v608
        %v1537 = vunpack.c.h.b16 %v608
        %v1538 = vunpack.c.l.b16 %v609
        %v1539 = vunpack.c.h.b16 %v609
        %v1540 = vunpack.c.l.b16 %v610
        %v1541 = vunpack.c.h.b16 %v610
        %v1542 = vunpack.c.l.b16 %v611
        %v1543 = vunpack.c.h.b16 %v611
        %v1544 = vunpack.c.l.b16 %v612
        %v1545 = vunpack.c.h.b16 %v612
        %v1546 = vunpack.c.l.b16 %v613
        %v1547 = vunpack.c.h.b16 %v613
        %v1548 = vunpack.c.l.b16 %v614
        %v1549 = vunpack.c.h.b16 %v614
        %v1550 = vunpack.c.l.b16 %v615
        %v1551 = vunpack.c.h.b16 %v615
        %v1552 = vunpack.c.l.b16 %v616
        %v1553 = vunpack.c.h.b16 %v616
        %v1554 = vunpack.c.l.b16 %v617
        %v1555 = vunpack.c.h.b16 %v617
        %v1556 = vunpack.c.l.b16 %v618
        %v1557 = vunpack.c.h.b16 %v618
        %v1558 = vunpack.c.l.b16 %v619
        %v1559 = vunpack.c.h.b16 %v619
        %v1560 = vunpack.c.l.b16 %v620
        %v1561 = vunpack.c.h.b16 %v620
        %v1562 = vunpack.c.l.b16 %v621
        %v1563 = vunpack.c.h.b16 %v621
        %v1564 = vunpack.c.l.b16 %v622
        %v1565 = vunpack.c.h.b16 %v622
        %v1566 = vunpack.c.l.b16 %v623
        %v1567 = vunpack.c.h.b16 %v623
        %v1568 = vunpack.c.l.b16 %v624
        %v1569 = vunpack.c.h.b16 %v624
        %v1570 = vunpack.c.l.b16 %v625
        %v1571 = vunpack.c.h.b16 %v625
        %v1572 = vunpack.c.l.b16 %v626
        %v1573 = vunpack.c.h.b16 %v626
        %v1574 = vunpack.c.l.b16 %v627
        %v1575 = vunpack.c.h.b16 %v627
        %v1576 = vunpack.c.l.b16 %v628
        %v1577 = vunpack.c.h.b16 %v628
        %v1578 = vunpack.c.l.b16 %v629
        %v1579 = vunpack.c.h.b16 %v629
        %v1580 = vunpack.c.l.b16 %v630
        %v1581 = vunpack.c.h.b16 %v630
        %v1582 = vunpack.c.l.b16 %v631
        %v1583 = vunpack.c.h.b16 %v631
        %v1584 = vunpack.c.l.b16 %v632
        %v1585 = vunpack.c.h.b16 %v632
        %v1586 = vunpack.c.l.b16 %v633
        %v1587 = vunpack.c.h.b16 %v633
        %v1588 = vunpack.c.l.b16 %v634
        %v1589 = vunpack.c.h.b16 %v634
        %v1590 = vunpack.c.l.b16 %v635
        %v1591 = vunpack.c.h.b16 %v635
        %v1592 = vunpack.c.l.b16 %v636
        %v1593 = vunpack.c.h.b16 %v636
        %v1594 = vunpack.c.l.b16 %v637
        %v1595 = vunpack.c.h.b16 %v637
        %v1596 = vunpack.c.l.b16 %v638
        %v1597 = vunpack.c.h.b16 %v638
        %v1598 = vunpack.c.l.b16 %v639
        %v1599 = vunpack.c.h.b16 %v639
        %v1600 = vunpack.c.l.b16 %v640
        %v1601 = vunpack.c.h.b16 %v640
        %v1602 = vunpack.c.l.b16 %v641
        %v1603 = vunpack.c.h.b16 %v641
        %v1604 = vunpack.c.l.b16 %v642
        %v1605 = vunpack.c.h.b16 %v642
        %v1606 = vunpack.c.l.b16 %v643
        %v1607 = vunpack.c.h.b16 %v643
        %v1608 = vunpack.c.l.b16 %v644
        %v1609 = vunpack.c.h.b16 %v644
        %v1610 = vunpack.c.l.b16 %v645
        %v1611 = vunpack.c.h.b16 %v645
        %v1612 = vunpack.c.l.b16 %v646
        %v1613 = vunpack.c.h.b16 %v646
        %v1614 = vunpack.c.l.b16 %v647
        %v1615 = vunpack.c.h.b16 %v647
        %v1616 = vunpack.c.l.b16 %v648
        %v1617 = vunpack.c.h.b16 %v648
        %v1618 = vunpack.c.l.b16 %v649
        %v1619 = vunpack.c.h.b16 %v649
        %v1620 = vunpack.c.l.b16 %v650
        %v1621 = vunpack.c.h.b16 %v650
        %v1622 = vunpack.c.l.b16 %v651
        %v1623 = vunpack.c.h.b16 %v651
        %v1624 = vunpack.c.l.b16 %v652
        %v1625 = vunpack.c.h.b16 %v652
        %v1626 = vunpack.c.l.b16 %v653
        %v1627 = vunpack.c.h.b16 %v653
        %v1628 = vunpack.c.l.b16 %v654
        %v1629 = vunpack.c.h.b16 %v654
        %v1630 = vunpack.c.l.b16 %v655
        %v1631 = vunpack.c.h.b16 %v655
        %v1632 = vunpack.c.l.b16 %v656
        %v1633 = vunpack.c.h.b16 %v656
        %v1634 = vunpack.c.l.b16 %v657
        %v1635 = vunpack.c.h.b16 %v657
        %v1636 = vunpack.c.l.b16 %v658
        %v1637 = vunpack.c.h.b16 %v658
        %v1638 = vunpack.c.l.b16 %v659
        %v1639 = vunpack.c.h.b16 %v659
        %v1640 = vunpack.c.l.b16 %v660
        %v1641 = vunpack.c.h.b16 %v660
        %v1642 = vunpack.c.l.b16 %v661
        %v1643 = vunpack.c.h.b16 %v661
        %v1644 = vunpack.c.l.b16 %v662
        %v1645 = vunpack.c.h.b16 %v662
        %v1646 = vunpack.c.l.b16 %v663
        %v1647 = vunpack.c.h.b16 %v663
        %v1648 = vunpack.c.l.b16 %v664
        %v1649 = vunpack.c.h.b16 %v664
        %v1650 = vunpack.c.l.b16 %v665
        %v1651 = vunpack.c.h.b16 %v665
        %v1652 = vunpack.c.l.b16 %v666
        %v1653 = vunpack.c.h.b16 %v666
        %v1654 = vunpack.c.l.b16 %v667
        %v1655 = vunpack.c.h.b16 %v667
        %v1656 = vunpack.c.l.b16 %v668
        %v1657 = vunpack.c.h.b16 %v668
        %v1658 = vunpack.c.l.b16 %v669
        %v1659 = vunpack.c.h.b16 %v669
        %v1660 = vunpack.c.l.b16 %v670
        %v1661 = vunpack.c.h.b16 %v670
        %v1662 = vunpack.c.l.b16 %v671
        %v1663 = vunpack.c.h.b16 %v671
        %v1664 = vunpack.c.l.b16 %v672
        %v1665 = vunpack.c.h.b16 %v672
        %v1666 = vunpack.c.l.b16 %v673
        %v1667 = vunpack.c.h.b16 %v673
        %v1668 = vunpack.c.l.b16 %v674
        %v1669 = vunpack.c.h.b16 %v674
        %v1670 = vunpack.c.l.b16 %v675
        %v1671 = vunpack.c.h.b16 %v675
        %v1672 = vunpack.c.l.b16 %v676
        %v1673 = vunpack.c.h.b16 %v676
        %v1674 = vunpack.c.l.b16 %v677
        %v1675 = vunpack.c.h.b16 %v677
        %v1676 = vunpack.c.l.b16 %v678
        %v1677 = vunpack.c.h.b16 %v678
        %v1678 = vunpack.c.l.b16 %v679
        %v1679 = vunpack.c.h.b16 %v679
        %v1680 = vunpack.c.l.b16 %v680
        %v1681 = vunpack.c.h.b16 %v680
        %v1682 = vunpack.c.l.b16 %v681
        %v1683 = vunpack.c.h.b16 %v681
        %v1684 = vunpack.c.l.b16 %v682
        %v1685 = vunpack.c.h.b16 %v682
        %v1686 = vunpack.c.l.b16 %v683
        %v1687 = vunpack.c.h.b16 %v683
        %v1688 = vunpack.c.l.b16 %v684
        %v1689 = vunpack.c.h.b16 %v684
        %v1690 = vunpack.c.l.b16 %v685
        %v1691 = vunpack.c.h.b16 %v685
        %v1692 = vunpack.c.l.b16 %v686
        %v1693 = vunpack.c.h.b16 %v686
        %v1694 = vunpack.c.l.b16 %v687
        %v1695 = vunpack.c.h.b16 %v687
        %v1696 = vunpack.c.l.b16 %v688
        %v1697 = vunpack.c.h.b16 %v688
        %v1698 = vunpack.c.l.b16 %v689
        %v1699 = vunpack.c.h.b16 %v689
        %v1700 = vunpack.c.l.b16 %v690
        %v1701 = vunpack.c.h.b16 %v690
        %v1702 = vunpack.c.l.b16 %v691
        %v1703 = vunpack.c.h.b16 %v691
        %v1704 = vunpack.c.l.b16 %v692
        %v1705 = vunpack.c.h.b16 %v692
        %v1706 = vunpack.c.l.b16 %v693
        %v1707 = vunpack.c.h.b16 %v693
        %v1708 = vunpack.c.l.b16 %v694
        %v1709 = vunpack.c.h.b16 %v694
        %v1710 = vunpack.c.l.b16 %v695
        %v1711 = vunpack.c.h.b16 %v695
        %v1712 = vunpack.c.l.b16 %v696
        %v1713 = vunpack.c.h.b16 %v696
        %v1714 = vunpack.c.l.b16 %v697
        %v1715 = vunpack.c.h.b16 %v697
        %v1716 = vunpack.c.l.b16 %v698
        %v1717 = vunpack.c.h.b16 %v698
        %v1718 = vunpack.c.l.b16 %v699
        %v1719 = vunpack.c.h.b16 %v699
        %v1720 = vunpack.c.l.b16 %v700
        %v1721 = vunpack.c.h.b16 %v700
        %v1722 = vunpack.c.l.b16 %v701
        %v1723 = vunpack.c.h.b16 %v701
        %v1724 = vunpack.c.l.b16 %v702
        %v1725 = vunpack.c.h.b16 %v702
        %v1726 = vunpack.c.l.b16 %v703
        %v1727 = vunpack.c.h.b16 %v703
        %v1728 = vunpack.c.l.b16 %v704
        %v1729 = vunpack.c.h.b16 %v704
        %v1730 = vunpack.c.l.b16 %v705
        %v1731 = vunpack.c.h.b16 %v705
        %v1732 = vunpack.c.l.b16 %v706
        %v1733 = vunpack.c.h.b16 %v706
        %v1734 = vunpack.c.l.b16 %v707
        %v1735 = vunpack.c.h.b16 %v707
        %v1736 = vunpack.c.l.b16 %v708
        %v1737 = vunpack.c.h.b16 %v708
        %v1738 = vunpack.c.l.b16 %v709
        %v1739 = vunpack.c.h.b16 %v709
        %v1740 = vunpack.c.l.b16 %v710
        %v1741 = vunpack.c.h.b16 %v710
        %v1742 = vunpack.c.l.b16 %v711
        %v1743 = vunpack.c.h.b16 %v711
        %v1744 = vunpack.c.l.b16 %v712
        %v1745 = vunpack.c.h.b16 %v712
        %v1746 = vunpack.c.l.b16 %v713
        %v1747 = vunpack.c.h.b16 %v713
        %v1748 = vunpack.c.l.b16 %v714
        %v1749 = vunpack.c.h.b16 %v714
        %v1750 = vunpack.c.l.b16 %v715
        %v1751 = vunpack.c.h.b16 %v715
        %v1752 = vunpack.c.l.b16 %v716
        %v1753 = vunpack.c.h.b16 %v716
        %v1754 = vunpack.c.l.b16 %v717
        %v1755 = vunpack.c.h.b16 %v717
        %v1756 = vunpack.c.l.b16 %v718
        %v1757 = vunpack.c.h.b16 %v718
        %v1758 = vunpack.c.l.b16 %v719
        %v1759 = vunpack.c.h.b16 %v719
        %v1760 = vunpack.c.l.b16 %v720
        %v1761 = vunpack.c.h.b16 %v720
        %v1762 = vunpack.c.l.b16 %v721
        %v1763 = vunpack.c.h.b16 %v721
        %v1764 = vunpack.c.l.b16 %v722
        %v1765 = vunpack.c.h.b16 %v722
        %v1766 = vunpack.c.l.b16 %v723
        %v1767 = vunpack.c.h.b16 %v723
        %v1768 = vunpack.c.l.b16 %v724
        %v1769 = vunpack.c.h.b16 %v724
        %v1770 = vunpack.c.l.b16 %v725
        %v1771 = vunpack.c.h.b16 %v725
        %v1772 = vunpack.c.l.b16 %v726
        %v1773 = vunpack.c.h.b16 %v726
        %v1774 = vunpack.c.l.b16 %v727
        %v1775 = vunpack.c.h.b16 %v727
        %v1776 = vunpack.c.l.b16 %v728
        %v1777 = vunpack.c.h.b16 %v728
        %v1778 = vunpack.c.l.b16 %v729
        %v1779 = vunpack.c.h.b16 %v729
        %v1780 = vunpack.c.l.b16 %v730
        %v1781 = vunpack.c.h.b16 %v730
        %v1782 = vunpack.c.l.b16 %v731
        %v1783 = vunpack.c.h.b16 %v731
        %v1784 = vunpack.c.l.b16 %v732
        %v1785 = vunpack.c.h.b16 %v732
        %v1786 = vunpack.c.l.b16 %v733
        %v1787 = vunpack.c.h.b16 %v733
        %v1788 = vunpack.c.l.b16 %v734
        %v1789 = vunpack.c.h.b16 %v734
        %v1790 = vunpack.c.l.b16 %v735
        %v1791 = vunpack.c.h.b16 %v735
        %v1792 = vunpack.c.l.b16 %v736
        %v1793 = vunpack.c.h.b16 %v736
        %v1794 = vunpack.c.l.b16 %v737
        %v1795 = vunpack.c.h.b16 %v737
        %v1796 = vunpack.c.l.b16 %v738
        %v1797 = vunpack.c.h.b16 %v738
        %v1798 = vunpack.c.l.b16 %v739
        %v1799 = vunpack.c.h.b16 %v739
        %v1800 = vunpack.c.l.b16 %v740
        %v1801 = vunpack.c.h.b16 %v740
        %v1802 = vunpack.c.l.b16 %v741
        %v1803 = vunpack.c.h.b16 %v741
        %v1804 = vunpack.c.l.b16 %v742
        %v1805 = vunpack.c.h.b16 %v742
        %v1806 = vunpack.c.l.b16 %v743
        %v1807 = vunpack.c.h.b16 %v743
        %v1808 = vunpack.c.l.b16 %v744
        %v1809 = vunpack.c.h.b16 %v744
        %v1810 = vunpack.c.l.b16 %v745
        %v1811 = vunpack.c.h.b16 %v745
        %v1812 = vunpack.c.l.b16 %v746
        %v1813 = vunpack.c.h.b16 %v746
        %v1814 = vunpack.c.l.b16 %v747
        %v1815 = vunpack.c.h.b16 %v747
        %v1816 = vunpack.c.l.b16 %v748
        %v1817 = vunpack.c.h.b16 %v748
        %v1818 = vunpack.c.l.b16 %v749
        %v1819 = vunpack.c.h.b16 %v749
        %v1820 = vunpack.c.l.b16 %v750
        %v1821 = vunpack.c.h.b16 %v750
        %v1822 = vunpack.c.l.b16 %v751
        %v1823 = vunpack.c.h.b16 %v751
        %v1824 = vunpack.c.l.b16 %v752
        %v1825 = vunpack.c.h.b16 %v752
        %v1826 = vunpack.c.l.b16 %v753
        %v1827 = vunpack.c.h.b16 %v753
        %v1828 = vunpack.c.l.b16 %v754
        %v1829 = vunpack.c.h.b16 %v754
        %v1830 = vunpack.c.l.b16 %v755
        %v1831 = vunpack.c.h.b16 %v755
        %v1832 = vunpack.c.l.b16 %v756
        %v1833 = vunpack.c.h.b16 %v756
        %v1834 = vunpack.c.l.b16 %v757
        %v1835 = vunpack.c.h.b16 %v757
        %v1836 = vunpack.c.l.b16 %v758
        %v1837 = vunpack.c.h.b16 %v758
        %v1838 = vunpack.c.l.b16 %v759
        %v1839 = vunpack.c.h.b16 %v759
        %v1840 = vunpack.c.l.b16 %v760
        %v1841 = vunpack.c.h.b16 %v760
        %v1842 = vunpack.c.l.b16 %v761
        %v1843 = vunpack.c.h.b16 %v761
        %v1844 = vunpack.c.l.b16 %v762
        %v1845 = vunpack.c.h.b16 %v762
        %v1846 = vunpack.c.l.b16 %v763
        %v1847 = vunpack.c.h.b16 %v763
        %v1848 = vunpack.c.l.b16 %v764
        %v1849 = vunpack.c.h.b16 %v764
        %v1850 = vunpack.c.l.b16 %v765
        %v1851 = vunpack.c.h.b16 %v765
        %v1852 = vunpack.c.l.b16 %v766
        %v1853 = vunpack.c.h.b16 %v766
        %v1854 = vunpack.c.l.b16 %v767
        %v1855 = vunpack.c.h.b16 %v767
        %v1856 = vunpack.c.l.b16 %v768
        %v1857 = vunpack.c.h.b16 %v768
        %v1858 = vunpack.c.l.b16 %v769
        %v1859 = vunpack.c.h.b16 %v769
        %v1860 = vunpack.c.l.b16 %v770
        %v1861 = vunpack.c.h.b16 %v770
        %v1862 = vunpack.c.l.b16 %v771
        %v1863 = vunpack.c.h.b16 %v771
        %v1864 = vunpack.c.l.b16 %v772
        %v1865 = vunpack.c.h.b16 %v772
        %v1866 = vunpack.c.l.b16 %v773
        %v1867 = vunpack.c.h.b16 %v773
        %v1868 = vunpack.c.l.b16 %v774
        %v1869 = vunpack.c.h.b16 %v774
        %v1870 = vunpack.c.l.b16 %v775
        %v1871 = vunpack.c.h.b16 %v775
        %v1872 = vunpack.c.l.b16 %v776
        %v1873 = vunpack.c.h.b16 %v776
        %v1874 = vunpack.c.l.b16 %v777
        %v1875 = vunpack.c.h.b16 %v777
        %v1876 = vunpack.c.l.b16 %v778
        %v1877 = vunpack.c.h.b16 %v778
        %v1878 = vunpack.c.l.b16 %v779
        %v1879 = vunpack.c.h.b16 %v779
        %v1880 = vunpack.c.l.b16 %v780
        %v1881 = vunpack.c.h.b16 %v780
        %v1882 = vunpack.c.l.b16 %v781
        %v1883 = vunpack.c.h.b16 %v781
        %v1884 = vunpack.c.l.b16 %v782
        %v1885 = vunpack.c.h.b16 %v782
        %v1886 = vunpack.c.l.b16 %v783
        %v1887 = vunpack.c.h.b16 %v783
        %v1888 = vunpack.c.l.b16 %v784
        %v1889 = vunpack.c.h.b16 %v784
        %v1890 = vunpack.c.l.b16 %v785
        %v1891 = vunpack.c.h.b16 %v785
        %v1892 = vunpack.c.l.b16 %v786
        %v1893 = vunpack.c.h.b16 %v786
        %v1894 = vunpack.c.l.b16 %v787
        %v1895 = vunpack.c.h.b16 %v787
        %v1896 = vunpack.c.l.b16 %v788
        %v1897 = vunpack.c.h.b16 %v788
        %v1898 = vunpack.c.l.b16 %v789
        %v1899 = vunpack.c.h.b16 %v789
        %v1900 = vpack.c.b16 %v1392, %v1388
        %v1901 = vpack.c.b16 %v1393, %v1389
        %v1902 = vpack.c.b16 %v1394, %v1390
        %v1903 = vpack.c.b16 %v1395, %v1391
        %v1904 = vpack.c.b16 %v1400, %v1396
        %v1905 = vpack.c.b16 %v1401, %v1397
        %v1906 = vpack.c.b16 %v1402, %v1398
        %v1907 = vpack.c.b16 %v1403, %v1399
        %v1908 = vpack.c.b16 %v1408, %v1404
        %v1909 = vpack.c.b16 %v1409, %v1405
        %v1910 = vpack.c.b16 %v1410, %v1406
        %v1911 = vpack.c.b16 %v1411, %v1407
        %v1912 = vpack.c.b16 %v1416, %v1412
        %v1913 = vpack.c.b16 %v1417, %v1413
        %v1914 = vpack.c.b16 %v1418, %v1414
        %v1915 = vpack.c.b16 %v1419, %v1415
        %v1916 = vpack.c.b16 %v1424, %v1420
        %v1917 = vpack.c.b16 %v1425, %v1421
        %v1918 = vpack.c.b16 %v1426, %v1422
        %v1919 = vpack.c.b16 %v1427, %v1423
        %v1920 = vpack.c.b16 %v1432, %v1428
        %v1921 = vpack.c.b16 %v1433, %v1429
        %v1922 = vpack.c.b16 %v1434, %v1430
        %v1923 = vpack.c.b16 %v1435, %v1431
        %v1924 = vpack.c.b16 %v1440, %v1436
        %v1925 = vpack.c.b16 %v1441, %v1437
        %v1926 = vpack.c.b16 %v1442, %v1438
        %v1927 = vpack.c.b16 %v1443, %v1439
        %v1928 = vpack.c.b16 %v1448, %v1444
        %v1929 = vpack.c.b16 %v1449, %v1445
        %v1930 = vpack.c.b16 %v1450, %v1446
        %v1931 = vpack.c.b16 %v1451, %v1447
        %v1932 = vpack.c.b16 %v1456, %v1452
        %v1933 = vpack.c.b16 %v1457, %v1453
        %v1934 = vpack.c.b16 %v1458, %v1454
        %v1935 = vpack.c.b16 %v1459, %v1455
        %v1936 = vpack.c.b16 %v1464, %v1460
        %v1937 = vpack.c.b16 %v1465, %v1461
        %v1938 = vpack.c.b16 %v1466, %v1462
        %v1939 = vpack.c.b16 %v1467, %v1463
        %v1940 = vpack.c.b16 %v1472, %v1468
        %v1941 = vpack.c.b16 %v1473, %v1469
        %v1942 = vpack.c.b16 %v1474, %v1470
        %v1943 = vpack.c.b16 %v1475, %v1471
        %v1944 = vpack.c.b16 %v1480, %v1476
        %v1945 = vpack.c.b16 %v1481, %v1477
        %v1946 = vpack.c.b16 %v1482, %v1478
        %v1947 = vpack.c.b16 %v1483, %v1479
        %v1948 = vpack.c.b16 %v1488, %v1484
        %v1949 = vpack.c.b16 %v1489, %v1485
        %v1950 = vpack.c.b16 %v1490, %v1486
        %v1951 = vpack.c.b16 %v1491, %v1487
        %v1952 = vpack.c.b16 %v1496, %v1492
        %v1953 = vpack.c.b16 %v1497, %v1493
        %v1954 = vpack.c.b16 %v1498, %v1494
        %v1955 = vpack.c.b16 %v1499, %v1495
        %v1956 = vpack.c.b16 %v1504, %v1500
        %v1957 = vpack.c.b16 %v1505, %v1501
        %v1958 = vpack.c.b16 %v1506, %v1502
        %v1959 = vpack.c.b16 %v1507, %v1503
        %v1960 = vpack.c.b16 %v1512, %v1508
        %v1961 = vpack.c.b16 %v1513, %v1509
        %v1962 = vpack.c.b16 %v1514, %v1510
        %v1963 = vpack.c.b16 %v1515, %v1511
        %v1964 = vpack.c.b16 %v1520, %v1516
        %v1965 = vpack.c.b16 %v1521, %v1517
        %v1966 = vpack.c.b16 %v1522, %v1518
        %v1967 = vpack.c.b16 %v1523, %v1519
        %v1968 = vpack.c.b16 %v1528, %v1524
        %v1969 = vpack.c.b16 %v1529, %v1525
        %v1970 = vpack.c.b16 %v1530, %v1526
        %v1971 = vpack.c.b16 %v1531, %v1527
        %v1972 = vpack.c.b16 %v1536, %v1532
        %v1973 = vpack.c.b16 %v1537, %v1533
        %v1974 = vpack.c.b16 %v1538, %v1534
        %v1975 = vpack.c.b16 %v1539, %v1535
        %v1976 = vpack.c.b16 %v1544, %v1540
        %v1977 = vpack.c.b16 %v1545, %v1541
        %v1978 = vpack.c.b16 %v1546, %v1542
        %v1979 = vpack.c.b16 %v1547, %v1543
        %v1980 = vpack.c.b16 %v1552, %v1548
        %v1981 = vpack.c.b16 %v1553, %v1549
        %v1982 = vpack.c.b16 %v1554, %v1550
        %v1983 = vpack.c.b16 %v1555, %v1551
        %v1984 = vpack.c.b16 %v1560, %v1556
        %v1985 = vpack.c.b16 %v1561, %v1557
        %v1986 = vpack.c.b16 %v1562, %v1558
        %v1987 = vpack.c.b16 %v1563, %v1559
        %v1988 = vpack.c.b16 %v1568, %v1564
        %v1989 = vpack.c.b16 %v1569, %v1565
        %v1990 = vpack.c.b16 %v1570, %v1566
        %v1991 = vpack.c.b16 %v1571, %v1567
        %v1992 = vpack.c.b16 %v1576, %v1572
        %v1993 = vpack.c.b16 %v1577, %v1573
        %v1994 = vpack.c.b16 %v1578, %v1574
        %v1995 = vpack.c.b16 %v1579, %v1575
        %v1996 = vpack.c.b16 %v1584, %v1580
        %v1997 = vpack.c.b16 %v1585, %v1581
        %v1998 = vpack.c.b16 %v1586, %v1582
        %v1999 = vpack.c.b16 %v1587, %v1583
        %v2000 = vpack.c.b16 %v1592, %v1588
        %v2001 = vpack.c.b16 %v1593, %v1589
        %v2002 = vpack.c.b16 %v1594, %v1590
        %v2003 = vpack.c.b16 %v1595, %v1591
        %v2004 = vpack.c.b16 %v1600, %v1596
        %v2005 = vpack.c.b16 %v1601, %v1597
        %v2006 = vpack.c.b16 %v1602, %v1598
        %v2007 = vpack.c.b16 %v1603, %v1599
        %v2008 = vpack.c.b16 %v1608, %v1604
        %v2009 = vpack.c.b16 %v1609, %v1605
        %v2010 = vpack.c.b16 %v1610, %v1606
        %v2011 = vpack.c.b16 %v1611, %v1607
        %v2012 = vpack.c.b16 %v1616, %v1612
        %v2013 = vpack.c.b16 %v1617, %v1613
        %v2014 = vpack.c.b16 %v1618, %v1614
        %v2015 = vpack.c.b16 %v1619, %v1615
        %v2016 = vpack.c.b16 %v1624, %v1620
        %v2017 = vpack.c.b16 %v1625, %v1621
        %v2018 = vpack.c.b16 %v1626, %v1622
        %v2019 = vpack.c.b16 %v1627, %v1623
        %v2020 = vpack.c.b16 %v1632, %v1628
        %v2021 = vpack.c.b16 %v1633, %v1629
        %v2022 = vpack.c.b16 %v1634, %v1630
        %v2023 = vpack.c.b16 %v1635, %v1631
        %v2024 = vpack.c.b16 %v1640, %v1636
        %v2025 = vpack.c.b16 %v1641, %v1637
        %v2026 = vpack.c.b16 %v1642, %v1638
        %v2027 = vpack.c.b16 %v1643, %v1639
        %v2028 = vpack.c.b16 %v1648, %v1644
        %v2029 = vpack.c.b16 %v1649, %v1645
        %v2030 = vpack.c.b16 %v1650, %v1646
        %v2031 = vpack.c.b16 %v1651, %v1647
        %v2032 = vpack.c.b16 %v1656, %v1652
        %v2033 = vpack.c.b16 %v1657, %v1653
        %v2034 = vpack.c.b16 %v1658, %v1654
        %v2035 = vpack.c.b16 %v1659, %v1655
        %v2036 = vpack.c.b16 %v1664, %v1660
        %v2037 = vpack.c.b16 %v1665, %v1661
        %v2038 = vpack.c.b16 %v1666, %v1662
        %v2039 = vpack.c.b16 %v1667, %v1663
        %v2040 = vpack.c.b16 %v1672, %v1668
        %v2041 = vpack.c.b16 %v1673, %v1669
        %v2042 = vpack.c.b16 %v1674, %v1670
        %v2043 = vpack.c.b16 %v1675, %v1671
        %v2044 = vpack.c.b16 %v1680, %v1676
        %v2045 = vpack.c.b16 %v1681, %v1677
        %v2046 = vpack.c.b16 %v1682, %v1678
        %v2047 = vpack.c.b16 %v1683, %v1679
        %v2048 = vpack.c.b16 %v1688, %v1684
        %v2049 = vpack.c.b16 %v1689, %v1685
        %v2050 = vpack.c.b16 %v1690, %v1686
        %v2051 = vpack.c.b16 %v1691, %v1687
        %v2052 = vpack.c.b16 %v1696, %v1692
        %v2053 = vpack.c.b16 %v1697, %v1693
        %v2054 = vpack.c.b16 %v1698, %v1694
        %v2055 = vpack.c.b16 %v1699, %v1695
        %v2056 = vpack.c.b16 %v1704, %v1700
        %v2057 = vpack.c.b16 %v1705, %v1701
        %v2058 = vpack.c.b16 %v1706, %v1702
        %v2059 = vpack.c.b16 %v1707, %v1703
        %v2060 = vpack.c.b16 %v1712, %v1708
        %v2061 = vpack.c.b16 %v1713, %v1709
        %v2062 = vpack.c.b16 %v1714, %v1710
        %v2063 = vpack.c.b16 %v1715, %v1711
        %v2064 = vpack.c.b16 %v1720, %v1716
        %v2065 = vpack.c.b16 %v1721, %v1717
        %v2066 = vpack.c.b16 %v1722, %v1718
        %v2067 = vpack.c.b16 %v1723, %v1719
        %v2068 = vpack.c.b16 %v1728, %v1724
        %v2069 = vpack.c.b16 %v1729, %v1725
        %v2070 = vpack.c.b16 %v1730, %v1726
        %v2071 = vpack.c.b16 %v1731, %v1727
        %v2072 = vpack.c.b16 %v1736, %v1732
        %v2073 = vpack.c.b16 %v1737, %v1733
        %v2074 = vpack.c.b16 %v1738, %v1734
        %v2075 = vpack.c.b16 %v1739, %v1735
        %v2076 = vpack.c.b16 %v1744, %v1740
        %v2077 = vpack.c.b16 %v1745, %v1741
        %v2078 = vpack.c.b16 %v1746, %v1742
        %v2079 = vpack.c.b16 %v1747, %v1743
        %v2080 = vpack.c.b16 %v1752, %v1748
        %v2081 = vpack.c.b16 %v1753, %v1749
        %v2082 = vpack.c.b16 %v1754, %v1750
        %v2083 = vpack.c.b16 %v1755, %v1751
        %v2084 = vpack.c.b16 %v1760, %v1756
        %v2085 = vpack.c.b16 %v1761, %v1757
        %v2086 = vpack.c.b16 %v1762, %v1758
        %v2087 = vpack.c.b16 %v1763, %v1759
        %v2088 = vpack.c.b16 %v1768, %v1764
        %v2089 = vpack.c.b16 %v1769, %v1765
        %v2090 = vpack.c.b16 %v1770, %v1766
        %v2091 = vpack.c.b16 %v1771, %v1767
        %v2092 = vpack.c.b16 %v1776, %v1772
        %v2093 = vpack.c.b16 %v1777, %v1773
        %v2094 = vpack.c.b16 %v1778, %v1774
        %v2095 = vpack.c.b16 %v1779, %v1775
        %v2096 = vpack.c.b16 %v1784, %v1780
        %v2097 = vpack.c.b16 %v1785, %v1781
        %v2098 = vpack.c.b16 %v1786, %v1782
        %v2099 = vpack.c.b16 %v1787, %v1783
        %v2100 = vpack.c.b16 %v1792, %v1788
        %v2101 = vpack.c.b16 %v1793, %v1789
        %v2102 = vpack.c.b16 %v1794, %v1790
        %v2103 = vpack.c.b16 %v1795, %v1791
        %v2104 = vpack.c.b16 %v1800, %v1796
        %v2105 = vpack.c.b16 %v1801, %v1797
        %v2106 = vpack.c.b16 %v1802, %v1798
        %v2107 = vpack.c.b16 %v1803, %v1799
        %v2108 = vpack.c.b16 %v1808, %v1804
        %v2109 = vpack.c.b16 %v1809, %v1805
        %v2110 = vpack.c.b16 %v1810, %v1806
        %v2111 = vpack.c.b16 %v1811, %v1807
        %v2112 = vpack.c.b16 %v1816, %v1812
        %v2113 = vpack.c.b16 %v1817, %v1813
        %v2114 = vpack.c.b16 %v1818, %v1814
        %v2115 = vpack.c.b16 %v1819, %v1815
        %v2116 = vpack.c.b16 %v1824, %v1820
        %v2117 = vpack.c.b16 %v1825, %v1821
        %v2118 = vpack.c.b16 %v1826, %v1822
        %v2119 = vpack.c.b16 %v1827, %v1823
        %v2120 = vpack.c.b16 %v1832, %v1828
        %v2121 = vpack.c.b16 %v1833, %v1829
        %v2122 = vpack.c.b16 %v1834, %v1830
        %v2123 = vpack.c.b16 %v1835, %v1831
        %v2124 = vpack.c.b16 %v1840, %v1836
        %v2125 = vpack.c.b16 %v1841, %v1837
        %v2126 = vpack.c.b16 %v1842, %v1838
        %v2127 = vpack.c.b16 %v1843, %v1839
        %v2128 = vpack.c.b16 %v1848, %v1844
        %v2129 = vpack.c.b16 %v1849, %v1845
        %v2130 = vpack.c.b16 %v1850, %v1846
        %v2131 = vpack.c.b16 %v1851, %v1847
        %v2132 = vpack.c.b16 %v1856, %v1852
        %v2133 = vpack.c.b16 %v1857, %v1853
        %v2134 = vpack.c.b16 %v1858, %v1854
        %v2135 = vpack.c.b16 %v1859, %v1855
        %v2136 = vpack.c.b16 %v1864, %v1860
        %v2137 = vpack.c.b16 %v1865, %v1861
        %v2138 = vpack.c.b16 %v1866, %v1862
        %v2139 = vpack.c.b16 %v1867, %v1863
        %v2140 = vpack.c.b16 %v1872, %v1868
        %v2141 = vpack.c.b16 %v1873, %v1869
        %v2142 = vpack.c.b16 %v1874, %v1870
        %v2143 = vpack.c.b16 %v1875, %v1871
        %v2144 = vpack.c.b16 %v1880, %v1876
        %v2145 = vpack.c.b16 %v1881, %v1877
        %v2146 = vpack.c.b16 %v1882, %v1878
        %v2147 = vpack.c.b16 %v1883, %v1879
        %v2148 = vpack.c.b16 %v1888, %v1884
        %v2149 = vpack.c.b16 %v1889, %v1885
        %v2150 = vpack.c.b16 %v1890, %v1886
        %v2151 = vpack.c.b16 %v1891, %v1887
        %v2152 = vpack.c.b16 %v1896, %v1892
        %v2153 = vpack.c.b16 %v1897, %v1893
        %v2154 = vpack.c.b16 %v1898, %v1894
        %v2155 = vpack.c.b16 %v1899, %v1895
        %2412 = vmatprep.subr.bf16.mxu0 %v1901
        %2413 = vmatpush1.bf16.msra.mxu0 %v1900
        %2414 = vmatprep.subr.bf16.mxu0 %v1905
        %2415 = vmatpush1.bf16.msra.mxu0 %v1904
        %2416 = vmatprep.subr.bf16.mxu0 %v1909
        %2417 = vmatpush1.bf16.msra.mxu0 %v1908
        %2418 = vmatprep.subr.bf16.mxu0 %v1913
        %2419 = vmatpush1.bf16.msra.mxu0 %v1912
        %2420 = vmatprep.subr.bf16.mxu0 %v1917
        %2421 = vmatpush1.bf16.msra.mxu0 %v1916
        %2422 = vmatprep.subr.bf16.mxu0 %v1921
        %2423 = vmatpush1.bf16.msra.mxu0 %v1920
        %2424 = vmatprep.subr.bf16.mxu0 %v1925
        %2425 = vmatpush1.bf16.msra.mxu0 %v1924
        %2426 = vmatprep.subr.bf16.mxu0 %v1929
        %2427 = vmatpush1.bf16.msra.mxu0 %v1928
        %2428 = vmatprep.subr.bf16.mxu0 %v1933
        %2429 = vmatpush1.bf16.msra.mxu0 %v1932
        %2430 = vmatprep.subr.bf16.mxu0 %v1937
        %2431 = vmatpush1.bf16.msra.mxu0 %v1936
        %2432 = vmatprep.subr.bf16.mxu0 %v1941
        %2433 = vmatpush1.bf16.msra.mxu0 %v1940
        %2434 = vmatprep.subr.bf16.mxu0 %v1945
        %2435 = vmatpush1.bf16.msra.mxu0 %v1944
        %2436 = vmatprep.subr.bf16.mxu0 %v1949
        %2437 = vmatpush1.bf16.msra.mxu0 %v1948
        %2438 = vmatprep.subr.bf16.mxu0 %v1953
        %2439 = vmatpush1.bf16.msra.mxu0 %v1952
        %2440 = vmatprep.subr.bf16.mxu0 %v1957
        %2441 = vmatpush1.bf16.msra.mxu0 %v1956
        %2442 = vmatprep.subr.bf16.mxu0 %v1961
        %2443 = vmatpush1.bf16.msra.mxu0 %v1960
        %2444 = vmatprep.mubr.bf16.mxu0 %v1005
        %2445 = vmatmul.mubr.bf16.gmra.mrb[0].mxu0 %v1004
        %v2446 = vpop.f32.mrb[0].mxu0
        %v2447 = vadd.f32 %v795, %v2446
        %v2448 = vpop.f32.mrb[0].mxu0
        %v2449 = vadd.f32 %v799, %v2448
        %v2450 = vpop.f32.mrb[0].mxu0
        %v2451 = vadd.f32 %v795, %v2450
        %v2452 = vpop.f32.mrb[0].mxu0
        %v2453 = vadd.f32 %v799, %v2452
        %2454 = vmatprep.mubr.bf16.mxu0 %v1013
        %2455 = vmatmul.mubr.bf16.gmra.mrb[0].mxu0 %v1012
        %v2456 = vpop.f32.mrb[0].mxu0
        %v2457 = vadd.f32 %v795, %v2456
        %v2458 = vpop.f32.mrb[0].mxu0
        %v2459 = vadd.f32 %v799, %v2458
        %v2460 = vpop.f32.mrb[0].mxu0
        %v2461 = vadd.f32 %v795, %v2460
        %v2462 = vpop.f32.mrb[0].mxu0
        %v2463 = vadd.f32 %v799, %v2462
        %2464 = vmatprep.mubr.bf16.mxu0 %v1021
        %2465 = vmatmul.mubr.bf16.gmra.mrb[0].mxu0 %v1020
        %v2466 = vpop.f32.mrb[0].mxu0
        %v2467 = vadd.f32 %v795, %v2466
        %v2468 = vpop.f32.mrb[0].mxu0
        %v2469 = vadd.f32 %v799, %v2468
        %v2470 = vpop.f32.mrb[0].mxu0
        %v2471 = vadd.f32 %v795, %v2470
        %v2472 = vpop.f32.mrb[0].mxu0
        %v2473 = vadd.f32 %v799, %v2472
        %2474 = vmatprep.mubr.bf16.mxu0 %v1029
        %2475 = vmatmul.mubr.bf16.gmra.mrb[0].mxu0 %v1028
        %v2476 = vpop.f32.mrb[0].mxu0
        %v2477 = vadd.f32 %v795, %v2476
        %v2478 = vpop.f32.mrb[0].mxu0
        %v2479 = vadd.f32 %v799, %v2478
        %v2480 = vpop.f32.mrb[0].mxu0
        %v2481 = vadd.f32 %v795, %v2480
        %v2482 = vpop.f32.mrb[0].mxu0
        %v2483 = vadd.f32 %v799, %v2482
        %2484 = vmatprep.mubr.bf16.mxu0 %v1037
        %2485 = vmatmul.mubr.bf16.gmra.mrb[0].mxu0 %v1036
        %v2486 = vpop.f32.mrb[0].mxu0
        %v2487 = vadd.f32 %v795, %v2486
        %v2488 = vpop.f32.mrb[0].mxu0
        %v2489 = vadd.f32 %v799, %v2488
        %v2490 = vpop.f32.mrb[0].mxu0
        %v2491 = vadd.f32 %v795, %v2490
        %v2492 = vpop.f32.mrb[0].mxu0
        %v2493 = vadd.f32 %v799, %v2492
        %2494 = vmatprep.mubr.bf16.mxu0 %v1045
        %2495 = vmatmul.mubr.bf16.gmra.mrb[0].mxu0 %v1044
        %v2496 = vpop.f32.mrb[0].mxu0
        %v2497 = vadd.f32 %v795, %v2496
        %v2498 = vpop.f32.mrb[0].mxu0
        %v2499 = vadd.f32 %v799, %v2498
        %v2500 = vpop.f32.mrb[0].mxu0
        %v2501 = vadd.f32 %v795, %v2500
        %v2502 = vpop.f32.mrb[0].mxu0
        %v2503 = vadd.f32 %v799, %v2502
        %2504 = vmatprep.mubr.bf16.mxu0 %v1053
        %2505 = vmatmul.mubr.bf16.gmra.mrb[0].mxu0 %v1052
        %v2506 = vpop.f32.mrb[0].mxu0
        %v2507 = vadd.f32 %v795, %v2506
        %v2508 = vpop.f32.mrb[0].mxu0
        %v2509 = vadd.f32 %v799, %v2508
        %v2510 = vpop.f32.mrb[0].mxu0
        %v2511 = vadd.f32 %v795, %v2510
        %v2512 = vpop.f32.mrb[0].mxu0
        %v2513 = vadd.f32 %v799, %v2512
        %2514 = vmatprep.mubr.bf16.mxu0 %v1061
        %2515 = vmatmul.mubr.bf16.gmra.mrb[0].mxu0 %v1060
        %v2516 = vpop.f32.mrb[0].mxu0
        %v2517 = vadd.f32 %v795, %v2516
        %v2518 = vpop.f32.mrb[0].mxu0
        %v2519 = vadd.f32 %v799, %v2518
        %v2520 = vpop.f32.mrb[0].mxu0
        %v2521 = vadd.f32 %v795, %v2520
        %v2522 = vpop.f32.mrb[0].mxu0
        %v2523 = vadd.f32 %v799, %v2522
        %2524 = vdwg.mxu0
        %2525 = vmatprep.subr.bf16.mxu0 %v1965
        %2526 = vmatpush1.bf16.msra.mxu0 %v1964
        %2527 = vmatprep.subr.bf16.mxu0 %v1969
        %2528 = vmatpush1.bf16.msra.mxu0 %v1968
        %2529 = vmatprep.subr.bf16.mxu0 %v1973
        %2530 = vmatpush1.bf16.msra.mxu0 %v1972
        %2531 = vmatprep.subr.bf16.mxu0 %v1977
        %2532 = vmatpush1.bf16.msra.mxu0 %v1976
        %2533 = vmatprep.subr.bf16.mxu0 %v1981
        %2534 = vmatpush1.bf16.msra.mxu0 %v1980
        %2535 = vmatprep.subr.bf16.mxu0 %v1985
        %2536 = vmatpush1.bf16.msra.mxu0 %v1984
        %2537 = vmatprep.subr.bf16.mxu0 %v1989
        %2538 = vmatpush1.bf16.msra.mxu0 %v1988
        %2539 = vmatprep.subr.bf16.mxu0 %v1993
        %2540 = vmatpush1.bf16.msra.mxu0 %v1992
        %2541 = vmatprep.subr.bf16.mxu0 %v1997
        %2542 = vmatpush1.bf16.msra.mxu0 %v1996
        %2543 = vmatprep.subr.bf16.mxu0 %v2001
        %2544 = vmatpush1.bf16.msra.mxu0 %v2000
        %2545 = vmatprep.subr.bf16.mxu0 %v2005
        %2546 = vmatpush1.bf16.msra.mxu0 %v2004
        %2547 = vmatprep.subr.bf16.mxu0 %v2009
        %2548 = vmatpush1.bf16.msra.mxu0 %v2008
        %2549 = vmatprep.subr.bf16.mxu0 %v2013
        %2550 = vmatpush1.bf16.msra.mxu0 %v2012
        %2551 = vmatprep.subr.bf16.mxu0 %v2017
        %2552 = vmatpush1.bf16.msra.mxu0 %v2016
        %2553 = vmatprep.subr.bf16.mxu0 %v2021
        %2554 = vmatpush1.bf16.msra.mxu0 %v2020
        %2555 = vmatprep.subr.bf16.mxu0 %v2025
        %2556 = vmatpush1.bf16.msra.mxu0 %v2024
        %2557 = vmatprep.mubr.bf16.mxu0 %v1007
        %2558 = vmatmul.mubr.bf16.gmra.mrb[0].mxu0 %v1006
        %v2559 = vpop.f32.mrb[0].mxu0
        %v2560 = vadd.f32 %v2447, %v2559
        %v2561 = vpop.f32.mrb[0].mxu0
        %v2562 = vadd.f32 %v2449, %v2561
        %v2563 = vpop.f32.mrb[0].mxu0
        %v2564 = vadd.f32 %v2451, %v2563
        %v2565 = vpop.f32.mrb[0].mxu0
        %v2566 = vadd.f32 %v2453, %v2565
        %2567 = vmatprep.mubr.bf16.mxu0 %v1015
        %2568 = vmatmul.mubr.bf16.gmra.mrb[0].mxu0 %v1014
        %v2569 = vpop.f32.mrb[0].mxu0
        %v2570 = vadd.f32 %v2457, %v2569
        %v2571 = vpop.f32.mrb[0].mxu0
        %v2572 = vadd.f32 %v2459, %v2571
        %v2573 = vpop.f32.mrb[0].mxu0
        %v2574 = vadd.f32 %v2461, %v2573
        %v2575 = vpop.f32.mrb[0].mxu0
        %v2576 = vadd.f32 %v2463, %v2575
        %2577 = vmatprep.mubr.bf16.mxu0 %v1023
        %2578 = vmatmul.mubr.bf16.gmra.mrb[0].mxu0 %v1022
        %v2579 = vpop.f32.mrb[0].mxu0
        %v2580 = vadd.f32 %v2467, %v2579
        %v2581 = vpop.f32.mrb[0].mxu0
        %v2582 = vadd.f32 %v2469, %v2581
        %v2583 = vpop.f32.mrb[0].mxu0
        %v2584 = vadd.f32 %v2471, %v2583
        %v2585 = vpop.f32.mrb[0].mxu0
        %v2586 = vadd.f32 %v2473, %v2585
        %2587 = vmatprep.mubr.bf16.mxu0 %v1031
        %2588 = vmatmul.mubr.bf16.gmra.mrb[0].mxu0 %v1030
        %v2589 = vpop.f32.mrb[0].mxu0
        %v2590 = vadd.f32 %v2477, %v2589
        %v2591 = vpop.f32.mrb[0].mxu0
        %v2592 = vadd.f32 %v2479, %v2591
        %v2593 = vpop.f32.mrb[0].mxu0
        %v2594 = vadd.f32 %v2481, %v2593
        %v2595 = vpop.f32.mrb[0].mxu0
        %v2596 = vadd.f32 %v2483, %v2595
        %2597 = vmatprep.mubr.bf16.mxu0 %v1039
        %2598 = vmatmul.mubr.bf16.gmra.mrb[0].mxu0 %v1038
        %v2599 = vpop.f32.mrb[0].mxu0
        %v2600 = vadd.f32 %v2487, %v2599
        %v2601 = vpop.f32.mrb[0].mxu0
        %v2602 = vadd.f32 %v2489, %v2601
        %v2603 = vpop.f32.mrb[0].mxu0
        %v2604 = vadd.f32 %v2491, %v2603
        %v2605 = vpop.f32.mrb[0].mxu0
        %v2606 = vadd.f32 %v2493, %v2605
        %2607 = vmatprep.mubr.bf16.mxu0 %v1047
        %2608 = vmatmul.mubr.bf16.gmra.mrb[0].mxu0 %v1046
        %v2609 = vpop.f32.mrb[0].mxu0
        %v2610 = vadd.f32 %v2497, %v2609
        %v2611 = vpop.f32.mrb[0].mxu0
        %v2612 = vadd.f32 %v2499, %v2611
        %v2613 = vpop.f32.mrb[0].mxu0
        %v2614 = vadd.f32 %v2501, %v2613
        %v2615 = vpop.f32.mrb[0].mxu0
        %v2616 = vadd.f32 %v2503, %v2615
        %2617 = vmatprep.mubr.bf16.mxu0 %v1055
        %2618 = vmatmul.mubr.bf16.gmra.mrb[0].mxu0 %v1054
        %v2619 = vpop.f32.mrb[0].mxu0
        %v2620 = vadd.f32 %v2507, %v2619
        %v2621 = vpop.f32.mrb[0].mxu0
        %v2622 = vadd.f32 %v2509, %v2621
        %v2623 = vpop.f32.mrb[0].mxu0
        %v2624 = vadd.f32 %v2511, %v2623
        %v2625 = vpop.f32.mrb[0].mxu0
        %v2626 = vadd.f32 %v2513, %v2625
        %2627 = vmatprep.mubr.bf16.mxu0 %v1063
        %2628 = vmatmul.mubr.bf16.gmra.mrb[0].mxu0 %v1062
        %v2629 = vpop.f32.mrb[0].mxu0
        %v2630 = vadd.f32 %v2517, %v2629
        %v2631 = vpop.f32.mrb[0].mxu0
        %v2632 = vadd.f32 %v2519, %v2631
        %v2633 = vpop.f32.mrb[0].mxu0
        %v2634 = vadd.f32 %v2521, %v2633
        %v2635 = vpop.f32.mrb[0].mxu0
        %v2636 = vadd.f32 %v2523, %v2635
        %2637 = vdwg.mxu0
        %2638 = vmatprep.subr.bf16.mxu0 %v2029
        %2639 = vmatpush1.bf16.msra.mxu0 %v2028
        %2640 = vmatprep.subr.bf16.mxu0 %v2033
        %2641 = vmatpush1.bf16.msra.mxu0 %v2032
        %2642 = vmatprep.subr.bf16.mxu0 %v2037
        %2643 = vmatpush1.bf16.msra.mxu0 %v2036
        %2644 = vmatprep.subr.bf16.mxu0 %v2041
        %2645 = vmatpush1.bf16.msra.mxu0 %v2040
        %2646 = vmatprep.subr.bf16.mxu0 %v2045
        %2647 = vmatpush1.bf16.msra.mxu0 %v2044
        %2648 = vmatprep.subr.bf16.mxu0 %v2049
        %2649 = vmatpush1.bf16.msra.mxu0 %v2048
        %2650 = vmatprep.subr.bf16.mxu0 %v2053
        %2651 = vmatpush1.bf16.msra.mxu0 %v2052
        %2652 = vmatprep.subr.bf16.mxu0 %v2057
        %2653 = vmatpush1.bf16.msra.mxu0 %v2056
        %2654 = vmatprep.subr.bf16.mxu0 %v2061
        %2655 = vmatpush1.bf16.msra.mxu0 %v2060
        %2656 = vmatprep.subr.bf16.mxu0 %v2065
        %2657 = vmatpush1.bf16.msra.mxu0 %v2064
        %2658 = vmatprep.subr.bf16.mxu0 %v2069
        %2659 = vmatpush1.bf16.msra.mxu0 %v2068
        %2660 = vmatprep.subr.bf16.mxu0 %v2073
        %2661 = vmatpush1.bf16.msra.mxu0 %v2072
        %2662 = vmatprep.subr.bf16.mxu0 %v2077
        %2663 = vmatpush1.bf16.msra.mxu0 %v2076
        %2664 = vmatprep.subr.bf16.mxu0 %v2081
        %2665 = vmatpush1.bf16.msra.mxu0 %v2080
        %2666 = vmatprep.subr.bf16.mxu0 %v2085
        %2667 = vmatpush1.bf16.msra.mxu0 %v2084
        %2668 = vmatprep.subr.bf16.mxu0 %v2089
        %2669 = vmatpush1.bf16.msra.mxu0 %v2088
        %2670 = vmatprep.mubr.bf16.mxu0 %v1009
        %2671 = vmatmul.mubr.bf16.gmra.mrb[0].mxu0 %v1008
        %v2672 = vpop.f32.mrb[0].mxu0
        %v2673 = vadd.f32 %v2560, %v2672
        %v2674 = vpop.f32.mrb[0].mxu0
        %v2675 = vadd.f32 %v2562, %v2674
        %v2676 = vpop.f32.mrb[0].mxu0
        %v2677 = vadd.f32 %v2564, %v2676
        %v2678 = vpop.f32.mrb[0].mxu0
        %v2679 = vadd.f32 %v2566, %v2678
        %2680 = vmatprep.mubr.bf16.mxu0 %v1017
        %2681 = vmatmul.mubr.bf16.gmra.mrb[0].mxu0 %v1016
        %v2682 = vpop.f32.mrb[0].mxu0
        %v2683 = vadd.f32 %v2570, %v2682
        %v2684 = vpop.f32.mrb[0].mxu0
        %v2685 = vadd.f32 %v2572, %v2684
        %v2686 = vpop.f32.mrb[0].mxu0
        %v2687 = vadd.f32 %v2574, %v2686
        %v2688 = vpop.f32.mrb[0].mxu0
        %v2689 = vadd.f32 %v2576, %v2688
        %2690 = vmatprep.mubr.bf16.mxu0 %v1025
        %2691 = vmatmul.mubr.bf16.gmra.mrb[0].mxu0 %v1024
        %v2692 = vpop.f32.mrb[0].mxu0
        %v2693 = vadd.f32 %v2580, %v2692
        %v2694 = vpop.f32.mrb[0].mxu0
        %v2695 = vadd.f32 %v2582, %v2694
        %v2696 = vpop.f32.mrb[0].mxu0
        %v2697 = vadd.f32 %v2584, %v2696
        %v2698 = vpop.f32.mrb[0].mxu0
        %v2699 = vadd.f32 %v2586, %v2698
        %2700 = vmatprep.mubr.bf16.mxu0 %v1033
        %2701 = vmatmul.mubr.bf16.gmra.mrb[0].mxu0 %v1032
        %v2702 = vpop.f32.mrb[0].mxu0
        %v2703 = vadd.f32 %v2590, %v2702
        %v2704 = vpop.f32.mrb[0].mxu0
        %v2705 = vadd.f32 %v2592, %v2704
        %v2706 = vpop.f32.mrb[0].mxu0
        %v2707 = vadd.f32 %v2594, %v2706
        %v2708 = vpop.f32.mrb[0].mxu0
        %v2709 = vadd.f32 %v2596, %v2708
        %2710 = vmatprep.mubr.bf16.mxu0 %v1041
        %2711 = vmatmul.mubr.bf16.gmra.mrb[0].mxu0 %v1040
        %v2712 = vpop.f32.mrb[0].mxu0
        %v2713 = vadd.f32 %v2600, %v2712
        %v2714 = vpop.f32.mrb[0].mxu0
        %v2715 = vadd.f32 %v2602, %v2714
        %v2716 = vpop.f32.mrb[0].mxu0
        %v2717 = vadd.f32 %v2604, %v2716
        %v2718 = vpop.f32.mrb[0].mxu0
        %v2719 = vadd.f32 %v2606, %v2718
        %2720 = vmatprep.mubr.bf16.mxu0 %v1049
        %2721 = vmatmul.mubr.bf16.gmra.mrb[0].mxu0 %v1048
        %v2722 = vpop.f32.mrb[0].mxu0
        %v2723 = vadd.f32 %v2610, %v2722
        %v2724 = vpop.f32.mrb[0].mxu0
        %v2725 = vadd.f32 %v2612, %v2724
        %v2726 = vpop.f32.mrb[0].mxu0
        %v2727 = vadd.f32 %v2614, %v2726
        %v2728 = vpop.f32.mrb[0].mxu0
        %v2729 = vadd.f32 %v2616, %v2728
        %2730 = vmatprep.mubr.bf16.mxu0 %v1057
        %2731 = vmatmul.mubr.bf16.gmra.mrb[0].mxu0 %v1056
        %v2732 = vpop.f32.mrb[0].mxu0
        %v2733 = vadd.f32 %v2620, %v2732
        %v2734 = vpop.f32.mrb[0].mxu0
        %v2735 = vadd.f32 %v2622, %v2734
        %v2736 = vpop.f32.mrb[0].mxu0
        %v2737 = vadd.f32 %v2624, %v2736
        %v2738 = vpop.f32.mrb[0].mxu0
        %v2739 = vadd.f32 %v2626, %v2738
        %2740 = vmatprep.mubr.bf16.mxu0 %v1065
        %2741 = vmatmul.mubr.bf16.gmra.mrb[0].mxu0 %v1064
        %v2742 = vpop.f32.mrb[0].mxu0
        %v2743 = vadd.f32 %v2630, %v2742
        %v2744 = vpop.f32.mrb[0].mxu0
        %v2745 = vadd.f32 %v2632, %v2744
        %v2746 = vpop.f32.mrb[0].mxu0
        %v2747 = vadd.f32 %v2634, %v2746
        %v2748 = vpop.f32.mrb[0].mxu0
        %v2749 = vadd.f32 %v2636, %v2748
        %2750 = vdwg.mxu0
        %2751 = vmatprep.subr.bf16.mxu0 %v2093
        %2752 = vmatpush1.bf16.msra.mxu0 %v2092
        %2753 = vmatprep.subr.bf16.mxu0 %v2097
        %2754 = vmatpush1.bf16.msra.mxu0 %v2096
        %2755 = vmatprep.subr.bf16.mxu0 %v2101
        %2756 = vmatpush1.bf16.msra.mxu0 %v2100
        %2757 = vmatprep.subr.bf16.mxu0 %v2105
        %2758 = vmatpush1.bf16.msra.mxu0 %v2104
        %2759 = vmatprep.subr.bf16.mxu0 %v2109
        %2760 = vmatpush1.bf16.msra.mxu0 %v2108
        %2761 = vmatprep.subr.bf16.mxu0 %v2113
        %2762 = vmatpush1.bf16.msra.mxu0 %v2112
        %2763 = vmatprep.subr.bf16.mxu0 %v2117
        %2764 = vmatpush1.bf16.msra.mxu0 %v2116
        %2765 = vmatprep.subr.bf16.mxu0 %v2121
        %2766 = vmatpush1.bf16.msra.mxu0 %v2120
        %2767 = vmatprep.subr.bf16.mxu0 %v2125
        %2768 = vmatpush1.bf16.msra.mxu0 %v2124
        %2769 = vmatprep.subr.bf16.mxu0 %v2129
        %2770 = vmatpush1.bf16.msra.mxu0 %v2128
        %2771 = vmatprep.subr.bf16.mxu0 %v2133
        %2772 = vmatpush1.bf16.msra.mxu0 %v2132
        %2773 = vmatprep.subr.bf16.mxu0 %v2137
        %2774 = vmatpush1.bf16.msra.mxu0 %v2136
        %2775 = vmatprep.subr.bf16.mxu0 %v2141
        %2776 = vmatpush1.bf16.msra.mxu0 %v2140
        %2777 = vmatprep.subr.bf16.mxu0 %v2145
        %2778 = vmatpush1.bf16.msra.mxu0 %v2144
        %2779 = vmatprep.subr.bf16.mxu0 %v2149
        %2780 = vmatpush1.bf16.msra.mxu0 %v2148
        %2781 = vmatprep.subr.bf16.mxu0 %v2153
        %2782 = vmatpush1.bf16.msra.mxu0 %v2152
        %2783 = vmatprep.mubr.bf16.mxu0 %v1011
        %2784 = vmatmul.mubr.bf16.gmra.mrb[0].mxu0 %v1010
        %v2785 = vpop.f32.mrb[0].mxu0
        %v2786 = vadd.f32 %v2673, %v2785
        %v2787 = vpop.f32.mrb[0].mxu0
        %v2788 = vadd.f32 %v2675, %v2787
        %v2789 = vpop.f32.mrb[0].mxu0
        %v2790 = vadd.f32 %v2677, %v2789
        %v2791 = vpop.f32.mrb[0].mxu0
        %v2792 = vadd.f32 %v2679, %v2791
        %2793 = vmatprep.mubr.bf16.mxu0 %v1019
        %2794 = vmatmul.mubr.bf16.gmra.mrb[0].mxu0 %v1018
        %v2795 = vpop.f32.mrb[0].mxu0
        %v2796 = vadd.f32 %v2683, %v2795
        %v2797 = vpop.f32.mrb[0].mxu0
        %v2798 = vadd.f32 %v2685, %v2797
        %v2799 = vpop.f32.mrb[0].mxu0
        %v2800 = vadd.f32 %v2687, %v2799
        %v2801 = vpop.f32.mrb[0].mxu0
        %v2802 = vadd.f32 %v2689, %v2801
        %2803 = vmatprep.mubr.bf16.mxu0 %v1027
        %2804 = vmatmul.mubr.bf16.gmra.mrb[0].mxu0 %v1026
        %v2805 = vpop.f32.mrb[0].mxu0
        %v2806 = vadd.f32 %v2693, %v2805
        %v2807 = vpop.f32.mrb[0].mxu0
        %v2808 = vadd.f32 %v2695, %v2807
        %v2809 = vpop.f32.mrb[0].mxu0
        %v2810 = vadd.f32 %v2697, %v2809
        %v2811 = vpop.f32.mrb[0].mxu0
        %v2812 = vadd.f32 %v2699, %v2811
        %2813 = vmatprep.mubr.bf16.mxu0 %v1035
        %2814 = vmatmul.mubr.bf16.gmra.mrb[0].mxu0 %v1034
        %v2815 = vpop.f32.mrb[0].mxu0
        %v2816 = vadd.f32 %v2703, %v2815
        %v2817 = vpop.f32.mrb[0].mxu0
        %v2818 = vadd.f32 %v2705, %v2817
        %v2819 = vpop.f32.mrb[0].mxu0
        %v2820 = vadd.f32 %v2707, %v2819
        %v2821 = vpop.f32.mrb[0].mxu0
        %v2822 = vadd.f32 %v2709, %v2821
        %2823 = vmatprep.mubr.bf16.mxu0 %v1043
        %2824 = vmatmul.mubr.bf16.gmra.mrb[0].mxu0 %v1042
        %v2825 = vpop.f32.mrb[0].mxu0
        %v2826 = vadd.f32 %v2713, %v2825
        %v2827 = vpop.f32.mrb[0].mxu0
        %v2828 = vadd.f32 %v2715, %v2827
        %v2829 = vpop.f32.mrb[0].mxu0
        %v2830 = vadd.f32 %v2717, %v2829
        %v2831 = vpop.f32.mrb[0].mxu0
        %v2832 = vadd.f32 %v2719, %v2831
        %2833 = vmatprep.mubr.bf16.mxu0 %v1051
        %2834 = vmatmul.mubr.bf16.gmra.mrb[0].mxu0 %v1050
        %v2835 = vpop.f32.mrb[0].mxu0
        %v2836 = vadd.f32 %v2723, %v2835
        %v2837 = vpop.f32.mrb[0].mxu0
        %v2838 = vadd.f32 %v2725, %v2837
        %v2839 = vpop.f32.mrb[0].mxu0
        %v2840 = vadd.f32 %v2727, %v2839
        %v2841 = vpop.f32.mrb[0].mxu0
        %v2842 = vadd.f32 %v2729, %v2841
        %2843 = vmatprep.mubr.bf16.mxu0 %v1059
        %2844 = vmatmul.mubr.bf16.gmra.mrb[0].mxu0 %v1058
        %v2845 = vpop.f32.mrb[0].mxu0
        %v2846 = vadd.f32 %v2733, %v2845
        %v2847 = vpop.f32.mrb[0].mxu0
        %v2848 = vadd.f32 %v2735, %v2847
        %v2849 = vpop.f32.mrb[0].mxu0
        %v2850 = vadd.f32 %v2737, %v2849
        %v2851 = vpop.f32.mrb[0].mxu0
        %v2852 = vadd.f32 %v2739, %v2851
        %2853 = vmatprep.mubr.bf16.mxu0 %v1067
        %2854 = vmatmul.mubr.bf16.gmra.mrb[0].mxu0 %v1066
        %v2855 = vpop.f32.mrb[0].mxu0
        %v2856 = vadd.f32 %v2743, %v2855
        %v2857 = vpop.f32.mrb[0].mxu0
        %v2858 = vadd.f32 %v2745, %v2857
        %v2859 = vpop.f32.mrb[0].mxu0
        %v2860 = vadd.f32 %v2747, %v2859
        %v2861 = vpop.f32.mrb[0].mxu0
        %v2862 = vadd.f32 %v2749, %v2861
        %2863 = vdwg.mxu0
        %2864 = vmatprep.subr.bf16.mxu0 %v1903
        %2865 = vmatpush1.bf16.msra.mxu0 %v1902
        %2866 = vmatprep.subr.bf16.mxu0 %v1907
        %2867 = vmatpush1.bf16.msra.mxu0 %v1906
        %2868 = vmatprep.subr.bf16.mxu0 %v1911
        %2869 = vmatpush1.bf16.msra.mxu0 %v1910
        %2870 = vmatprep.subr.bf16.mxu0 %v1915
        %2871 = vmatpush1.bf16.msra.mxu0 %v1914
        %2872 = vmatprep.subr.bf16.mxu0 %v1919
        %2873 = vmatpush1.bf16.msra.mxu0 %v1918
        %2874 = vmatprep.subr.bf16.mxu0 %v1923
        %2875 = vmatpush1.bf16.msra.mxu0 %v1922
        %2876 = vmatprep.subr.bf16.mxu0 %v1927
        %2877 = vmatpush1.bf16.msra.mxu0 %v1926
        %2878 = vmatprep.subr.bf16.mxu0 %v1931
        %2879 = vmatpush1.bf16.msra.mxu0 %v1930
        %2880 = vmatprep.subr.bf16.mxu0 %v1935
        %2881 = vmatpush1.bf16.msra.mxu0 %v1934
        %2882 = vmatprep.subr.bf16.mxu0 %v1939
        %2883 = vmatpush1.bf16.msra.mxu0 %v1938
        %2884 = vmatprep.subr.bf16.mxu0 %v1943
        %2885 = vmatpush1.bf16.msra.mxu0 %v1942
        %2886 = vmatprep.subr.bf16.mxu0 %v1947
        %2887 = vmatpush1.bf16.msra.mxu0 %v1946
        %2888 = vmatprep.subr.bf16.mxu0 %v1951
        %2889 = vmatpush1.bf16.msra.mxu0 %v1950
        %2890 = vmatprep.subr.bf16.mxu0 %v1955
        %2891 = vmatpush1.bf16.msra.mxu0 %v1954
        %2892 = vmatprep.subr.bf16.mxu0 %v1959
        %2893 = vmatpush1.bf16.msra.mxu0 %v1958
        %2894 = vmatprep.subr.bf16.mxu0 %v1963
        %2895 = vmatpush1.bf16.msra.mxu0 %v1962
        %2896 = vmatprep.mubr.bf16.mxu0 %v1005
        %2897 = vmatmul.mubr.bf16.gmra.mrb[0].mxu0 %v1004
        %v2898 = vpop.f32.mrb[0].mxu0
        %v2899 = vadd.f32 %v803, %v2898
        %v2900 = vpop.f32.mrb[0].mxu0
        %v2901 = vadd.f32 %v807, %v2900
        %v2902 = vpop.f32.mrb[0].mxu0
        %v2903 = vadd.f32 %v803, %v2902
        %v2904 = vpop.f32.mrb[0].mxu0
        %v2905 = vadd.f32 %v807, %v2904
        %2906 = vmatprep.mubr.bf16.mxu0 %v1013
        %2907 = vmatmul.mubr.bf16.gmra.mrb[0].mxu0 %v1012
        %v2908 = vpop.f32.mrb[0].mxu0
        %v2909 = vadd.f32 %v803, %v2908
        %v2910 = vpop.f32.mrb[0].mxu0
        %v2911 = vadd.f32 %v807, %v2910
        %v2912 = vpop.f32.mrb[0].mxu0
        %v2913 = vadd.f32 %v803, %v2912
        %v2914 = vpop.f32.mrb[0].mxu0
        %v2915 = vadd.f32 %v807, %v2914
        %2916 = vmatprep.mubr.bf16.mxu0 %v1021
        %2917 = vmatmul.mubr.bf16.gmra.mrb[0].mxu0 %v1020
        %v2918 = vpop.f32.mrb[0].mxu0
        %v2919 = vadd.f32 %v803, %v2918
        %v2920 = vpop.f32.mrb[0].mxu0
        %v2921 = vadd.f32 %v807, %v2920
        %v2922 = vpop.f32.mrb[0].mxu0
        %v2923 = vadd.f32 %v803, %v2922
        %v2924 = vpop.f32.mrb[0].mxu0
        %v2925 = vadd.f32 %v807, %v2924
        %2926 = vmatprep.mubr.bf16.mxu0 %v1029
        %2927 = vmatmul.mubr.bf16.gmra.mrb[0].mxu0 %v1028
        %v2928 = vpop.f32.mrb[0].mxu0
        %v2929 = vadd.f32 %v803, %v2928
        %v2930 = vpop.f32.mrb[0].mxu0
        %v2931 = vadd.f32 %v807, %v2930
        %v2932 = vpop.f32.mrb[0].mxu0
        %v2933 = vadd.f32 %v803, %v2932
        %v2934 = vpop.f32.mrb[0].mxu0
        %v2935 = vadd.f32 %v807, %v2934
        %2936 = vmatprep.mubr.bf16.mxu0 %v1037
        %2937 = vmatmul.mubr.bf16.gmra.mrb[0].mxu0 %v1036
        %v2938 = vpop.f32.mrb[0].mxu0
        %v2939 = vadd.f32 %v803, %v2938
        %v2940 = vpop.f32.mrb[0].mxu0
        %v2941 = vadd.f32 %v807, %v2940
        %v2942 = vpop.f32.mrb[0].mxu0
        %v2943 = vadd.f32 %v803, %v2942
        %v2944 = vpop.f32.mrb[0].mxu0
        %v2945 = vadd.f32 %v807, %v2944
        %2946 = vmatprep.mubr.bf16.mxu0 %v1045
        %2947 = vmatmul.mubr.bf16.gmra.mrb[0].mxu0 %v1044
        %v2948 = vpop.f32.mrb[0].mxu0
        %v2949 = vadd.f32 %v803, %v2948
        %v2950 = vpop.f32.mrb[0].mxu0
        %v2951 = vadd.f32 %v807, %v2950
        %v2952 = vpop.f32.mrb[0].mxu0
        %v2953 = vadd.f32 %v803, %v2952
        %v2954 = vpop.f32.mrb[0].mxu0
        %v2955 = vadd.f32 %v807, %v2954
        %2956 = vmatprep.mubr.bf16.mxu0 %v1053
        %2957 = vmatmul.mubr.bf16.gmra.mrb[0].mxu0 %v1052
        %v2958 = vpop.f32.mrb[0].mxu0
        %v2959 = vadd.f32 %v803, %v2958
        %v2960 = vpop.f32.mrb[0].mxu0
        %v2961 = vadd.f32 %v807, %v2960
        %v2962 = vpop.f32.mrb[0].mxu0
        %v2963 = vadd.f32 %v803, %v2962
        %v2964 = vpop.f32.mrb[0].mxu0
        %v2965 = vadd.f32 %v807, %v2964
        %2966 = vmatprep.mubr.bf16.mxu0 %v1061
        %2967 = vmatmul.mubr.bf16.gmra.mrb[0].mxu0 %v1060
        %v2968 = vpop.f32.mrb[0].mxu0
        %v2969 = vadd.f32 %v803, %v2968
        %v2970 = vpop.f32.mrb[0].mxu0
        %v2971 = vadd.f32 %v807, %v2970
        %v2972 = vpop.f32.mrb[0].mxu0
        %v2973 = vadd.f32 %v803, %v2972
        %v2974 = vpop.f32.mrb[0].mxu0
        %v2975 = vadd.f32 %v807, %v2974
        %2976 = vdwg.mxu0
        %2977 = vmatprep.subr.bf16.mxu0 %v1967
        %2978 = vmatpush1.bf16.msra.mxu0 %v1966
        %2979 = vmatprep.subr.bf16.mxu0 %v1971
        %2980 = vmatpush1.bf16.msra.mxu0 %v1970
        %2981 = vmatprep.subr.bf16.mxu0 %v1975
        %2982 = vmatpush1.bf16.msra.mxu0 %v1974
        %2983 = vmatprep.subr.bf16.mxu0 %v1979
        %2984 = vmatpush1.bf16.msra.mxu0 %v1978
        %2985 = vmatprep.subr.bf16.mxu0 %v1983
        %2986 = vmatpush1.bf16.msra.mxu0 %v1982
        %2987 = vmatprep.subr.bf16.mxu0 %v1987
        %2988 = vmatpush1.bf16.msra.mxu0 %v1986
        %2989 = vmatprep.subr.bf16.mxu0 %v1991
        %2990 = vmatpush1.bf16.msra.mxu0 %v1990
        %2991 = vmatprep.subr.bf16.mxu0 %v1995
        %2992 = vmatpush1.bf16.msra.mxu0 %v1994
        %2993 = vmatprep.subr.bf16.mxu0 %v1999
        %2994 = vmatpush1.bf16.msra.mxu0 %v1998
        %2995 = vmatprep.subr.bf16.mxu0 %v2003
        %2996 = vmatpush1.bf16.msra.mxu0 %v2002
        %2997 = vmatprep.subr.bf16.mxu0 %v2007
        %2998 = vmatpush1.bf16.msra.mxu0 %v2006
        %2999 = vmatprep.subr.bf16.mxu0 %v2011
        %3000 = vmatpush1.bf16.msra.mxu0 %v2010
        %3001 = vmatprep.subr.bf16.mxu0 %v2015
        %3002 = vmatpush1.bf16.msra.mxu0 %v2014
        %3003 = vmatprep.subr.bf16.mxu0 %v2019
        %3004 = vmatpush1.bf16.msra.mxu0 %v2018
        %3005 = vmatprep.subr.bf16.mxu0 %v2023
        %3006 = vmatpush1.bf16.msra.mxu0 %v2022
        %3007 = vmatprep.subr.bf16.mxu0 %v2027
        %3008 = vmatpush1.bf16.msra.mxu0 %v2026
        %3009 = vmatprep.mubr.bf16.mxu0 %v1007
        %3010 = vmatmul.mubr.bf16.gmra.mrb[0].mxu0 %v1006
        %v3011 = vpop.f32.mrb[0].mxu0
        %v3012 = vadd.f32 %v2899, %v3011
        %v3013 = vpop.f32.mrb[0].mxu0
        %v3014 = vadd.f32 %v2901, %v3013
        %v3015 = vpop.f32.mrb[0].mxu0
        %v3016 = vadd.f32 %v2903, %v3015
        %v3017 = vpop.f32.mrb[0].mxu0
        %v3018 = vadd.f32 %v2905, %v3017
        %3019 = vmatprep.mubr.bf16.mxu0 %v1015
        %3020 = vmatmul.mubr.bf16.gmra.mrb[0].mxu0 %v1014
        %v3021 = vpop.f32.mrb[0].mxu0
        %v3022 = vadd.f32 %v2909, %v3021
        %v3023 = vpop.f32.mrb[0].mxu0
        %v3024 = vadd.f32 %v2911, %v3023
        %v3025 = vpop.f32.mrb[0].mxu0
        %v3026 = vadd.f32 %v2913, %v3025
        %v3027 = vpop.f32.mrb[0].mxu0
        %v3028 = vadd.f32 %v2915, %v3027
        %3029 = vmatprep.mubr.bf16.mxu0 %v1023
        %3030 = vmatmul.mubr.bf16.gmra.mrb[0].mxu0 %v1022
        %v3031 = vpop.f32.mrb[0].mxu0
        %v3032 = vadd.f32 %v2919, %v3031
        %v3033 = vpop.f32.mrb[0].mxu0
        %v3034 = vadd.f32 %v2921, %v3033
        %v3035 = vpop.f32.mrb[0].mxu0
        %v3036 = vadd.f32 %v2923, %v3035
        %v3037 = vpop.f32.mrb[0].mxu0
        %v3038 = vadd.f32 %v2925, %v3037
        %3039 = vmatprep.mubr.bf16.mxu0 %v1031
        %3040 = vmatmul.mubr.bf16.gmra.mrb[0].mxu0 %v1030
        %v3041 = vpop.f32.mrb[0].mxu0
        %v3042 = vadd.f32 %v2929, %v3041
        %v3043 = vpop.f32.mrb[0].mxu0
        %v3044 = vadd.f32 %v2931, %v3043
        %v3045 = vpop.f32.mrb[0].mxu0
        %v3046 = vadd.f32 %v2933, %v3045
        %v3047 = vpop.f32.mrb[0].mxu0
        %v3048 = vadd.f32 %v2935, %v3047
        %3049 = vmatprep.mubr.bf16.mxu0 %v1039
        %3050 = vmatmul.mubr.bf16.gmra.mrb[0].mxu0 %v1038
        %v3051 = vpop.f32.mrb[0].mxu0
        %v3052 = vadd.f32 %v2939, %v3051
        %v3053 = vpop.f32.mrb[0].mxu0
        %v3054 = vadd.f32 %v2941, %v3053
        %v3055 = vpop.f32.mrb[0].mxu0
        %v3056 = vadd.f32 %v2943, %v3055
        %v3057 = vpop.f32.mrb[0].mxu0
        %v3058 = vadd.f32 %v2945, %v3057
        %3059 = vmatprep.mubr.bf16.mxu0 %v1047
        %3060 = vmatmul.mubr.bf16.gmra.mrb[0].mxu0 %v1046
        %v3061 = vpop.f32.mrb[0].mxu0
        %v3062 = vadd.f32 %v2949, %v3061
        %v3063 = vpop.f32.mrb[0].mxu0
        %v3064 = vadd.f32 %v2951, %v3063
        %v3065 = vpop.f32.mrb[0].mxu0
        %v3066 = vadd.f32 %v2953, %v3065
        %v3067 = vpop.f32.mrb[0].mxu0
        %v3068 = vadd.f32 %v2955, %v3067
        %3069 = vmatprep.mubr.bf16.mxu0 %v1055
        %3070 = vmatmul.mubr.bf16.gmra.mrb[0].mxu0 %v1054
        %v3071 = vpop.f32.mrb[0].mxu0
        %v3072 = vadd.f32 %v2959, %v3071
        %v3073 = vpop.f32.mrb[0].mxu0
        %v3074 = vadd.f32 %v2961, %v3073
        %v3075 = vpop.f32.mrb[0].mxu0
        %v3076 = vadd.f32 %v2963, %v3075
        %v3077 = vpop.f32.mrb[0].mxu0
        %v3078 = vadd.f32 %v2965, %v3077
        %3079 = vmatprep.mubr.bf16.mxu0 %v1063
        %3080 = vmatmul.mubr.bf16.gmra.mrb[0].mxu0 %v1062
        %v3081 = vpop.f32.mrb[0].mxu0
        %v3082 = vadd.f32 %v2969, %v3081
        %v3083 = vpop.f32.mrb[0].mxu0
        %v3084 = vadd.f32 %v2971, %v3083
        %v3085 = vpop.f32.mrb[0].mxu0
        %v3086 = vadd.f32 %v2973, %v3085
        %v3087 = vpop.f32.mrb[0].mxu0
        %v3088 = vadd.f32 %v2975, %v3087
        %3089 = vdwg.mxu0
        %3090 = vmatprep.subr.bf16.mxu0 %v2031
        %3091 = vmatpush1.bf16.msra.mxu0 %v2030
        %3092 = vmatprep.subr.bf16.mxu0 %v2035
        %3093 = vmatpush1.bf16.msra.mxu0 %v2034
        %3094 = vmatprep.subr.bf16.mxu0 %v2039
        %3095 = vmatpush1.bf16.msra.mxu0 %v2038
        %3096 = vmatprep.subr.bf16.mxu0 %v2043
        %3097 = vmatpush1.bf16.msra.mxu0 %v2042
        %3098 = vmatprep.subr.bf16.mxu0 %v2047
        %3099 = vmatpush1.bf16.msra.mxu0 %v2046
        %3100 = vmatprep.subr.bf16.mxu0 %v2051
        %3101 = vmatpush1.bf16.msra.mxu0 %v2050
        %3102 = vmatprep.subr.bf16.mxu0 %v2055
        %3103 = vmatpush1.bf16.msra.mxu0 %v2054
        %3104 = vmatprep.subr.bf16.mxu0 %v2059
        %3105 = vmatpush1.bf16.msra.mxu0 %v2058
        %3106 = vmatprep.subr.bf16.mxu0 %v2063
        %3107 = vmatpush1.bf16.msra.mxu0 %v2062
        %3108 = vmatprep.subr.bf16.mxu0 %v2067
        %3109 = vmatpush1.bf16.msra.mxu0 %v2066
        %3110 = vmatprep.subr.bf16.mxu0 %v2071
        %3111 = vmatpush1.bf16.msra.mxu0 %v2070
        %3112 = vmatprep.subr.bf16.mxu0 %v2075
        %3113 = vmatpush1.bf16.msra.mxu0 %v2074
        %3114 = vmatprep.subr.bf16.mxu0 %v2079
        %3115 = vmatpush1.bf16.msra.mxu0 %v2078
        %3116 = vmatprep.subr.bf16.mxu0 %v2083
        %3117 = vmatpush1.bf16.msra.mxu0 %v2082
        %3118 = vmatprep.subr.bf16.mxu0 %v2087
        %3119 = vmatpush1.bf16.msra.mxu0 %v2086
        %3120 = vmatprep.subr.bf16.mxu0 %v2091
        %3121 = vmatpush1.bf16.msra.mxu0 %v2090
        %3122 = vmatprep.mubr.bf16.mxu0 %v1009
        %3123 = vmatmul.mubr.bf16.gmra.mrb[0].mxu0 %v1008
        %v3124 = vpop.f32.mrb[0].mxu0
        %v3125 = vadd.f32 %v3012, %v3124
        %v3126 = vpop.f32.mrb[0].mxu0
        %v3127 = vadd.f32 %v3014, %v3126
        %v3128 = vpop.f32.mrb[0].mxu0
        %v3129 = vadd.f32 %v3016, %v3128
        %v3130 = vpop.f32.mrb[0].mxu0
        %v3131 = vadd.f32 %v3018, %v3130
        %3132 = vmatprep.mubr.bf16.mxu0 %v1017
        %3133 = vmatmul.mubr.bf16.gmra.mrb[0].mxu0 %v1016
        %v3134 = vpop.f32.mrb[0].mxu0
        %v3135 = vadd.f32 %v3022, %v3134
        %v3136 = vpop.f32.mrb[0].mxu0
        %v3137 = vadd.f32 %v3024, %v3136
        %v3138 = vpop.f32.mrb[0].mxu0
        %v3139 = vadd.f32 %v3026, %v3138
        %v3140 = vpop.f32.mrb[0].mxu0
        %v3141 = vadd.f32 %v3028, %v3140
        %3142 = vmatprep.mubr.bf16.mxu0 %v1025
        %3143 = vmatmul.mubr.bf16.gmra.mrb[0].mxu0 %v1024
        %v3144 = vpop.f32.mrb[0].mxu0
        %v3145 = vadd.f32 %v3032, %v3144
        %v3146 = vpop.f32.mrb[0].mxu0
        %v3147 = vadd.f32 %v3034, %v3146
        %v3148 = vpop.f32.mrb[0].mxu0
        %v3149 = vadd.f32 %v3036, %v3148
        %v3150 = vpop.f32.mrb[0].mxu0
        %v3151 = vadd.f32 %v3038, %v3150
        %3152 = vmatprep.mubr.bf16.mxu0 %v1033
        %3153 = vmatmul.mubr.bf16.gmra.mrb[0].mxu0 %v1032
        %v3154 = vpop.f32.mrb[0].mxu0
        %v3155 = vadd.f32 %v3042, %v3154
        %v3156 = vpop.f32.mrb[0].mxu0
        %v3157 = vadd.f32 %v3044, %v3156
        %v3158 = vpop.f32.mrb[0].mxu0
        %v3159 = vadd.f32 %v3046, %v3158
        %v3160 = vpop.f32.mrb[0].mxu0
        %v3161 = vadd.f32 %v3048, %v3160
        %3162 = vmatprep.mubr.bf16.mxu0 %v1041
        %3163 = vmatmul.mubr.bf16.gmra.mrb[0].mxu0 %v1040
        %v3164 = vpop.f32.mrb[0].mxu0
        %v3165 = vadd.f32 %v3052, %v3164
        %v3166 = vpop.f32.mrb[0].mxu0
        %v3167 = vadd.f32 %v3054, %v3166
        %v3168 = vpop.f32.mrb[0].mxu0
        %v3169 = vadd.f32 %v3056, %v3168
        %v3170 = vpop.f32.mrb[0].mxu0
        %v3171 = vadd.f32 %v3058, %v3170
        %3172 = vmatprep.mubr.bf16.mxu0 %v1049
        %3173 = vmatmul.mubr.bf16.gmra.mrb[0].mxu0 %v1048
        %v3174 = vpop.f32.mrb[0].mxu0
        %v3175 = vadd.f32 %v3062, %v3174
        %v3176 = vpop.f32.mrb[0].mxu0
        %v3177 = vadd.f32 %v3064, %v3176
        %v3178 = vpop.f32.mrb[0].mxu0
        %v3179 = vadd.f32 %v3066, %v3178
        %v3180 = vpop.f32.mrb[0].mxu0
        %v3181 = vadd.f32 %v3068, %v3180
        %3182 = vmatprep.mubr.bf16.mxu0 %v1057
        %3183 = vmatmul.mubr.bf16.gmra.mrb[0].mxu0 %v1056
        %v3184 = vpop.f32.mrb[0].mxu0
        %v3185 = vadd.f32 %v3072, %v3184
        %v3186 = vpop.f32.mrb[0].mxu0
        %v3187 = vadd.f32 %v3074, %v3186
        %v3188 = vpop.f32.mrb[0].mxu0
        %v3189 = vadd.f32 %v3076, %v3188
        %v3190 = vpop.f32.mrb[0].mxu0
        %v3191 = vadd.f32 %v3078, %v3190
        %3192 = vmatprep.mubr.bf16.mxu0 %v1065
        %3193 = vmatmul.mubr.bf16.gmra.mrb[0].mxu0 %v1064
        %v3194 = vpop.f32.mrb[0].mxu0
        %v3195 = vadd.f32 %v3082, %v3194
        %v3196 = vpop.f32.mrb[0].mxu0
        %v3197 = vadd.f32 %v3084, %v3196
        %v3198 = vpop.f32.mrb[0].mxu0
        %v3199 = vadd.f32 %v3086, %v3198
        %v3200 = vpop.f32.mrb[0].mxu0
        %v3201 = vadd.f32 %v3088, %v3200
        %3202 = vdwg.mxu0
        %3203 = vmatprep.subr.bf16.mxu0 %v2095
        %3204 = vmatpush1.bf16.msra.mxu0 %v2094
        %3205 = vmatprep.subr.bf16.mxu0 %v2099
        %3206 = vmatpush1.bf16.msra.mxu0 %v2098
        %3207 = vmatprep.subr.bf16.mxu0 %v2103
        %3208 = vmatpush1.bf16.msra.mxu0 %v2102
        %3209 = vmatprep.subr.bf16.mxu0 %v2107
        %3210 = vmatpush1.bf16.msra.mxu0 %v2106
        %3211 = vmatprep.subr.bf16.mxu0 %v2111
        %3212 = vmatpush1.bf16.msra.mxu0 %v2110
        %3213 = vmatprep.subr.bf16.mxu0 %v2115
        %3214 = vmatpush1.bf16.msra.mxu0 %v2114
        %3215 = vmatprep.subr.bf16.mxu0 %v2119
        %3216 = vmatpush1.bf16.msra.mxu0 %v2118
        %3217 = vmatprep.subr.bf16.mxu0 %v2123
        %3218 = vmatpush1.bf16.msra.mxu0 %v2122
        %3219 = vmatprep.subr.bf16.mxu0 %v2127
        %3220 = vmatpush1.bf16.msra.mxu0 %v2126
        %3221 = vmatprep.subr.bf16.mxu0 %v2131
        %3222 = vmatpush1.bf16.msra.mxu0 %v2130
        %3223 = vmatprep.subr.bf16.mxu0 %v2135
        %3224 = vmatpush1.bf16.msra.mxu0 %v2134
        %3225 = vmatprep.subr.bf16.mxu0 %v2139
        %3226 = vmatpush1.bf16.msra.mxu0 %v2138
        %3227 = vmatprep.subr.bf16.mxu0 %v2143
        %3228 = vmatpush1.bf16.msra.mxu0 %v2142
        %3229 = vmatprep.subr.bf16.mxu0 %v2147
        %3230 = vmatpush1.bf16.msra.mxu0 %v2146
        %3231 = vmatprep.subr.bf16.mxu0 %v2151
        %3232 = vmatpush1.bf16.msra.mxu0 %v2150
        %3233 = vmatprep.subr.bf16.mxu0 %v2155
        %3234 = vmatpush1.bf16.msra.mxu0 %v2154
        %3235 = vmatprep.mubr.bf16.mxu0 %v1011
        %3236 = vmatmul.mubr.bf16.gmra.mrb[0].mxu0 %v1010
        %v3237 = vpop.f32.mrb[0].mxu0
        %v3238 = vadd.f32 %v3125, %v3237
        %v3239 = vpop.f32.mrb[0].mxu0
        %v3240 = vadd.f32 %v3127, %v3239
        %v3241 = vpop.f32.mrb[0].mxu0
        %v3242 = vadd.f32 %v3129, %v3241
        %v3243 = vpop.f32.mrb[0].mxu0
        %v3244 = vadd.f32 %v3131, %v3243
        %3245 = vmatprep.mubr.bf16.mxu0 %v1019
        %3246 = vmatmul.mubr.bf16.gmra.mrb[0].mxu0 %v1018
        %v3247 = vpop.f32.mrb[0].mxu0
        %v3248 = vadd.f32 %v3135, %v3247
        %v3249 = vpop.f32.mrb[0].mxu0
        %v3250 = vadd.f32 %v3137, %v3249
        %v3251 = vpop.f32.mrb[0].mxu0
        %v3252 = vadd.f32 %v3139, %v3251
        %v3253 = vpop.f32.mrb[0].mxu0
        %v3254 = vadd.f32 %v3141, %v3253
        %3255 = vmatprep.mubr.bf16.mxu0 %v1027
        %3256 = vmatmul.mubr.bf16.gmra.mrb[0].mxu0 %v1026
        %v3257 = vpop.f32.mrb[0].mxu0
        %v3258 = vadd.f32 %v3145, %v3257
        %v3259 = vpop.f32.mrb[0].mxu0
        %v3260 = vadd.f32 %v3147, %v3259
        %v3261 = vpop.f32.mrb[0].mxu0
        %v3262 = vadd.f32 %v3149, %v3261
        %v3263 = vpop.f32.mrb[0].mxu0
        %v3264 = vadd.f32 %v3151, %v3263
        %3265 = vmatprep.mubr.bf16.mxu0 %v1035
        %3266 = vmatmul.mubr.bf16.gmra.mrb[0].mxu0 %v1034
        %v3267 = vpop.f32.mrb[0].mxu0
        %v3268 = vadd.f32 %v3155, %v3267
        %v3269 = vpop.f32.mrb[0].mxu0
        %v3270 = vadd.f32 %v3157, %v3269
        %v3271 = vpop.f32.mrb[0].mxu0
        %v3272 = vadd.f32 %v3159, %v3271
        %v3273 = vpop.f32.mrb[0].mxu0
        %v3274 = vadd.f32 %v3161, %v3273
        %3275 = vmatprep.mubr.bf16.mxu0 %v1043
        %3276 = vmatmul.mubr.bf16.gmra.mrb[0].mxu0 %v1042
        %v3277 = vpop.f32.mrb[0].mxu0
        %v3278 = vadd.f32 %v3165, %v3277
        %v3279 = vpop.f32.mrb[0].mxu0
        %v3280 = vadd.f32 %v3167, %v3279
        %v3281 = vpop.f32.mrb[0].mxu0
        %v3282 = vadd.f32 %v3169, %v3281
        %v3283 = vpop.f32.mrb[0].mxu0
        %v3284 = vadd.f32 %v3171, %v3283
        %3285 = vmatprep.mubr.bf16.mxu0 %v1051
        %3286 = vmatmul.mubr.bf16.gmra.mrb[0].mxu0 %v1050
        %v3287 = vpop.f32.mrb[0].mxu0
        %v3288 = vadd.f32 %v3175, %v3287
        %v3289 = vpop.f32.mrb[0].mxu0
        %v3290 = vadd.f32 %v3177, %v3289
        %v3291 = vpop.f32.mrb[0].mxu0
        %v3292 = vadd.f32 %v3179, %v3291
        %v3293 = vpop.f32.mrb[0].mxu0
        %v3294 = vadd.f32 %v3181, %v3293
        %3295 = vmatprep.mubr.bf16.mxu0 %v1059
        %3296 = vmatmul.mubr.bf16.gmra.mrb[0].mxu0 %v1058
        %v3297 = vpop.f32.mrb[0].mxu0
        %v3298 = vadd.f32 %v3185, %v3297
        %v3299 = vpop.f32.mrb[0].mxu0
        %v3300 = vadd.f32 %v3187, %v3299
        %v3301 = vpop.f32.mrb[0].mxu0
        %v3302 = vadd.f32 %v3189, %v3301
        %v3303 = vpop.f32.mrb[0].mxu0
        %v3304 = vadd.f32 %v3191, %v3303
        %3305 = vmatprep.mubr.bf16.mxu0 %v1067
        %3306 = vmatmul.mubr.bf16.gmra.mrb[0].mxu0 %v1066
        %v3307 = vpop.f32.mrb[0].mxu0
        %v3308 = vadd.f32 %v3195, %v3307
        %v3309 = vpop.f32.mrb[0].mxu0
        %v3310 = vadd.f32 %v3197, %v3309
        %v3311 = vpop.f32.mrb[0].mxu0
        %v3312 = vadd.f32 %v3199, %v3311
        %v3313 = vpop.f32.mrb[0].mxu0
        %v3314 = vadd.f32 %v3201, %v3313
        %3315 = vdwg.mxu0
        %v3316 = vmax.f32 %v2786, 0.0
        %v3317 = vmax.f32 %v2788, 0.0
        %v3318 = vmax.f32 %v3238, 0.0
        %v3319 = vmax.f32 %v3240, 0.0
        %v3320 = vmax.f32 %v2790, 0.0
        %v3321 = vmax.f32 %v2792, 0.0
        %v3322 = vmax.f32 %v3242, 0.0
        %v3323 = vmax.f32 %v3244, 0.0
        %v3324 = vmax.f32 %v2796, 0.0
        %v3325 = vmax.f32 %v2798, 0.0
        %v3326 = vmax.f32 %v3248, 0.0
        %v3327 = vmax.f32 %v3250, 0.0
        %v3328 = vmax.f32 %v2800, 0.0
        %v3329 = vmax.f32 %v2802, 0.0
        %v3330 = vmax.f32 %v3252, 0.0
        %v3331 = vmax.f32 %v3254, 0.0
        %v3332 = vmax.f32 %v2806, 0.0
        %v3333 = vmax.f32 %v2808, 0.0
        %v3334 = vmax.f32 %v3258, 0.0
        %v3335 = vmax.f32 %v3260, 0.0
        %v3336 = vmax.f32 %v2810, 0.0
        %v3337 = vmax.f32 %v2812, 0.0
        %v3338 = vmax.f32 %v3262, 0.0
        %v3339 = vmax.f32 %v3264, 0.0
        %v3340 = vmax.f32 %v2816, 0.0
        %v3341 = vmax.f32 %v2818, 0.0
        %v3342 = vmax.f32 %v3268, 0.0
        %v3343 = vmax.f32 %v3270, 0.0
        %v3344 = vmax.f32 %v2820, 0.0
        %v3345 = vmax.f32 %v2822, 0.0
        %v3346 = vmax.f32 %v3272, 0.0
        %v3347 = vmax.f32 %v3274, 0.0
        %v3348 = vmax.f32 %v2826, 0.0
        %v3349 = vmax.f32 %v2828, 0.0
        %v3350 = vmax.f32 %v3278, 0.0
        %v3351 = vmax.f32 %v3280, 0.0
        %v3352 = vmax.f32 %v2830, 0.0
        %v3353 = vmax.f32 %v2832, 0.0
        %v3354 = vmax.f32 %v3282, 0.0
        %v3355 = vmax.f32 %v3284, 0.0
        %v3356 = vmax.f32 %v2836, 0.0
        %v3357 = vmax.f32 %v2838, 0.0
        %v3358 = vmax.f32 %v3288, 0.0
        %v3359 = vmax.f32 %v3290, 0.0
        %v3360 = vmax.f32 %v2840, 0.0
        %v3361 = vmax.f32 %v2842, 0.0
        %v3362 = vmax.f32 %v3292, 0.0
        %v3363 = vmax.f32 %v3294, 0.0
        %v3364 = vmax.f32 %v2846, 0.0
        %v3365 = vmax.f32 %v2848, 0.0
        %v3366 = vmax.f32 %v3298, 0.0
        %v3367 = vmax.f32 %v3300, 0.0
        %v3368 = vmax.f32 %v2850, 0.0
        %v3369 = vmax.f32 %v2852, 0.0
        %v3370 = vmax.f32 %v3302, 0.0
        %v3371 = vmax.f32 %v3304, 0.0
        %v3372 = vmax.f32 %v2856, 0.0
        %v3373 = vmax.f32 %v2858, 0.0
        %v3374 = vmax.f32 %v3308, 0.0
        %v3375 = vmax.f32 %v3310, 0.0
        %v3376 = vmax.f32 %v2860, 0.0
        %v3377 = vmax.f32 %v2862, 0.0
        %v3378 = vmax.f32 %v3312, 0.0
        %v3379 = vmax.f32 %v3314, 0.0
        %v3380 = vpack.c.bf16 %v3320, %v3316
        %v3381 = vpack.c.bf16 %v3321, %v3317
        %v3382 = vpack.c.bf16 %v3322, %v3318
        %v3383 = vpack.c.bf16 %v3323, %v3319
        %v3384 = vpack.c.bf16 %v3328, %v3324
        %v3385 = vpack.c.bf16 %v3329, %v3325
        %v3386 = vpack.c.bf16 %v3330, %v3326
        %v3387 = vpack.c.bf16 %v3331, %v3327
        %v3388 = vpack.c.bf16 %v3336, %v3332
        %v3389 = vpack.c.bf16 %v3337, %v3333
        %v3390 = vpack.c.bf16 %v3338, %v3334
        %v3391 = vpack.c.bf16 %v3339, %v3335
        %v3392 = vpack.c.bf16 %v3344, %v3340
        %v3393 = vpack.c.bf16 %v3345, %v3341
        %v3394 = vpack.c.bf16 %v3346, %v3342
        %v3395 = vpack.c.bf16 %v3347, %v3343
        %v3396 = vpack.c.bf16 %v3352, %v3348
        %v3397 = vpack.c.bf16 %v3353, %v3349
        %v3398 = vpack.c.bf16 %v3354, %v3350
        %v3399 = vpack.c.bf16 %v3355, %v3351
        %v3400 = vpack.c.bf16 %v3360, %v3356
        %v3401 = vpack.c.bf16 %v3361, %v3357
        %v3402 = vpack.c.bf16 %v3362, %v3358
        %v3403 = vpack.c.bf16 %v3363, %v3359
        %v3404 = vpack.c.bf16 %v3368, %v3364
        %v3405 = vpack.c.bf16 %v3369, %v3365
        %v3406 = vpack.c.bf16 %v3370, %v3366
        %v3407 = vpack.c.bf16 %v3371, %v3367
        %v3408 = vpack.c.bf16 %v3376, %v3372
        %v3409 = vpack.c.bf16 %v3377, %v3373
        %v3410 = vpack.c.bf16 %v3378, %v3374
        %v3411 = vpack.c.bf16 %v3379, %v3375
        %v3412 = vld [vmem:[#allocation11] sm:$0xff]
        %v3413 = vld [vmem:[#allocation11 + $0x8] sm:$0xff]
        %v3414 = vld [vmem:[#allocation11 + $0x10] sm:$0xff]
        %v3415 = vld [vmem:[#allocation11 + $0x18] sm:$0xff]
        %v3416 = vld [vmem:[#allocation11 + $0x20] sm:$0xff]
        %v3417 = vld [vmem:[#allocation11 + $0x28] sm:$0xff]
        %v3418 = vld [vmem:[#allocation11 + $0x30] sm:$0xff]
        %v3419 = vld [vmem:[#allocation11 + $0x38] sm:$0xff]
        %v3420 = vld [vmem:[#allocation11 + $0x40] sm:$0xff]
        %v3421 = vld [vmem:[#allocation11 + $0x48] sm:$0xff]
        %v3422 = vld [vmem:[#allocation11 + $0x50] sm:$0xff]
        %v3423 = vld [vmem:[#allocation11 + $0x58] sm:$0xff]
        %v3424 = vld [vmem:[#allocation11 + $0x60] sm:$0xff]
        %v3425 = vld [vmem:[#allocation11 + $0x68] sm:$0xff]
        %v3426 = vld [vmem:[#allocation11 + $0x70] sm:$0xff]
        %v3427 = vld [vmem:[#allocation11 + $0x78] sm:$0xff]
        %v3428 = vld [vmem:[#allocation11 + $0x80] sm:$0xff]
        %v3429 = vld [vmem:[#allocation11 + $0x88] sm:$0xff]
        %v3430 = vld [vmem:[#allocation11 + $0x90] sm:$0xff]
        %v3431 = vld [vmem:[#allocation11 + $0x98] sm:$0xff]
        %v3432 = vld [vmem:[#allocation11 + $0xa0] sm:$0xff]
        %v3433 = vld [vmem:[#allocation11 + $0xa8] sm:$0xff]
        %v3434 = vld [vmem:[#allocation11 + $0xb0] sm:$0xff]
        %v3435 = vld [vmem:[#allocation11 + $0xb8] sm:$0xff]
        %v3436 = vld [vmem:[#allocation11 + $0xc0] sm:$0xff]
        %v3437 = vld [vmem:[#allocation11 + $0xc8] sm:$0xff]
        %v3438 = vld [vmem:[#allocation11 + $0xd0] sm:$0xff]
        %v3439 = vld [vmem:[#allocation11 + $0xd8] sm:$0xff]
        %v3440 = vld [vmem:[#allocation11 + $0xe0] sm:$0xff]
        %v3441 = vld [vmem:[#allocation11 + $0xe8] sm:$0xff]
        %v3442 = vld [vmem:[#allocation11 + $0xf0] sm:$0xff]
        %v3443 = vld [vmem:[#allocation11 + $0xf8] sm:$0xff]
        %v3444 = vld [vmem:[#allocation11 + $0x100] sm:$0xff]
        %v3445 = vld [vmem:[#allocation11 + $0x108] sm:$0xff]
        %v3446 = vld [vmem:[#allocation11 + $0x110] sm:$0xff]
        %v3447 = vld [vmem:[#allocation11 + $0x118] sm:$0xff]
        %v3448 = vld [vmem:[#allocation11 + $0x120] sm:$0xff]
        %v3449 = vld [vmem:[#allocation11 + $0x128] sm:$0xff]
        %v3450 = vld [vmem:[#allocation11 + $0x130] sm:$0xff]
        %v3451 = vld [vmem:[#allocation11 + $0x138] sm:$0xff]
        %v3452 = vld [vmem:[#allocation11 + $0x140] sm:$0xff]
        %v3453 = vld [vmem:[#allocation11 + $0x148] sm:$0xff]
        %v3454 = vld [vmem:[#allocation11 + $0x150] sm:$0xff]
        %v3455 = vld [vmem:[#allocation11 + $0x158] sm:$0xff]
        %v3456 = vld [vmem:[#allocation11 + $0x160] sm:$0xff]
        %v3457 = vld [vmem:[#allocation11 + $0x168] sm:$0xff]
        %v3458 = vld [vmem:[#allocation11 + $0x170] sm:$0xff]
        %v3459 = vld [vmem:[#allocation11 + $0x178] sm:$0xff]
        %v3460 = vld [vmem:[#allocation11 + $0x180] sm:$0xff]
        %v3461 = vld [vmem:[#allocation11 + $0x188] sm:$0xff]
        %v3462 = vld [vmem:[#allocation11 + $0x190] sm:$0xff]
        %v3463 = vld [vmem:[#allocation11 + $0x198] sm:$0xff]
        %v3464 = vld [vmem:[#allocation11 + $0x1a0] sm:$0xff]
        %v3465 = vld [vmem:[#allocation11 + $0x1a8] sm:$0xff]
        %v3466 = vld [vmem:[#allocation11 + $0x1b0] sm:$0xff]
        %v3467 = vld [vmem:[#allocation11 + $0x1b8] sm:$0xff]
        %v3468 = vld [vmem:[#allocation11 + $0x1c0] sm:$0xff]
        %v3469 = vld [vmem:[#allocation11 + $0x1c8] sm:$0xff]
        %v3470 = vld [vmem:[#allocation11 + $0x1d0] sm:$0xff]
        %v3471 = vld [vmem:[#allocation11 + $0x1d8] sm:$0xff]
        %v3472 = vld [vmem:[#allocation11 + $0x1e0] sm:$0xff]
        %v3473 = vld [vmem:[#allocation11 + $0x1e8] sm:$0xff]
        %v3474 = vld [vmem:[#allocation11 + $0x1f0] sm:$0xff]
        %v3475 = vld [vmem:[#allocation11 + $0x1f8] sm:$0xff]
        %v3476 = vld [vmem:[#allocation11 + $0x200] sm:$0xff]
        %v3477 = vld [vmem:[#allocation11 + $0x208] sm:$0xff]
        %v3478 = vld [vmem:[#allocation11 + $0x210] sm:$0xff]
        %v3479 = vld [vmem:[#allocation11 + $0x218] sm:$0xff]
        %v3480 = vld [vmem:[#allocation11 + $0x220] sm:$0xff]
        %v3481 = vld [vmem:[#allocation11 + $0x228] sm:$0xff]
        %v3482 = vld [vmem:[#allocation11 + $0x230] sm:$0xff]
        %v3483 = vld [vmem:[#allocation11 + $0x238] sm:$0xff]
        %v3484 = vld [vmem:[#allocation11 + $0x240] sm:$0xff]
        %v3485 = vld [vmem:[#allocation11 + $0x248] sm:$0xff]
        %v3486 = vld [vmem:[#allocation11 + $0x250] sm:$0xff]
        %v3487 = vld [vmem:[#allocation11 + $0x258] sm:$0xff]
        %v3488 = vld [vmem:[#allocation11 + $0x260] sm:$0xff]
        %v3489 = vld [vmem:[#allocation11 + $0x268] sm:$0xff]
        %v3490 = vld [vmem:[#allocation11 + $0x270] sm:$0xff]
        %v3491 = vld [vmem:[#allocation11 + $0x278] sm:$0xff]
        %v3492 = vld [vmem:[#allocation11 + $0x280] sm:$0xff]
        %v3493 = vld [vmem:[#allocation11 + $0x288] sm:$0xff]
        %v3494 = vld [vmem:[#allocation11 + $0x290] sm:$0xff]
        %v3495 = vld [vmem:[#allocation11 + $0x298] sm:$0xff]
        %v3496 = vld [vmem:[#allocation11 + $0x2a0] sm:$0xff]
        %v3497 = vld [vmem:[#allocation11 + $0x2a8] sm:$0xff]
        %v3498 = vld [vmem:[#allocation11 + $0x2b0] sm:$0xff]
        %v3499 = vld [vmem:[#allocation11 + $0x2b8] sm:$0xff]
        %v3500 = vld [vmem:[#allocation11 + $0x2c0] sm:$0xff]
        %v3501 = vld [vmem:[#allocation11 + $0x2c8] sm:$0xff]
        %v3502 = vld [vmem:[#allocation11 + $0x2d0] sm:$0xff]
        %v3503 = vld [vmem:[#allocation11 + $0x2d8] sm:$0xff]
        %v3504 = vld [vmem:[#allocation11 + $0x2e0] sm:$0xff]
        %v3505 = vld [vmem:[#allocation11 + $0x2e8] sm:$0xff]
        %v3506 = vld [vmem:[#allocation11 + $0x2f0] sm:$0xff]
        %v3507 = vld [vmem:[#allocation11 + $0x2f8] sm:$0xff]
        %v3508 = vld [vmem:[#allocation11 + $0x300] sm:$0xff]
        %v3509 = vld [vmem:[#allocation11 + $0x308] sm:$0xff]
        %v3510 = vld [vmem:[#allocation11 + $0x310] sm:$0xff]
        %v3511 = vld [vmem:[#allocation11 + $0x318] sm:$0xff]
        %v3512 = vld [vmem:[#allocation11 + $0x320] sm:$0xff]
        %v3513 = vld [vmem:[#allocation11 + $0x328] sm:$0xff]
        %v3514 = vld [vmem:[#allocation11 + $0x330] sm:$0xff]
        %v3515 = vld [vmem:[#allocation11 + $0x338] sm:$0xff]
        %v3516 = vld [vmem:[#allocation11 + $0x340] sm:$0xff]
        %v3517 = vld [vmem:[#allocation11 + $0x348] sm:$0xff]
        %v3518 = vld [vmem:[#allocation11 + $0x350] sm:$0xff]
        %v3519 = vld [vmem:[#allocation11 + $0x358] sm:$0xff]
        %v3520 = vld [vmem:[#allocation11 + $0x360] sm:$0xff]
        %v3521 = vld [vmem:[#allocation11 + $0x368] sm:$0xff]
        %v3522 = vld [vmem:[#allocation11 + $0x370] sm:$0xff]
        %v3523 = vld [vmem:[#allocation11 + $0x378] sm:$0xff]
        %v3524 = vld [vmem:[#allocation11 + $0x380] sm:$0xff]
        %v3525 = vld [vmem:[#allocation11 + $0x388] sm:$0xff]
        %v3526 = vld [vmem:[#allocation11 + $0x390] sm:$0xff]
        %v3527 = vld [vmem:[#allocation11 + $0x398] sm:$0xff]
        %v3528 = vld [vmem:[#allocation11 + $0x3a0] sm:$0xff]
        %v3529 = vld [vmem:[#allocation11 + $0x3a8] sm:$0xff]
        %v3530 = vld [vmem:[#allocation11 + $0x3b0] sm:$0xff]
        %v3531 = vld [vmem:[#allocation11 + $0x3b8] sm:$0xff]
        %v3532 = vld [vmem:[#allocation11 + $0x3c0] sm:$0xff]
        %v3533 = vld [vmem:[#allocation11 + $0x3c8] sm:$0xff]
        %v3534 = vld [vmem:[#allocation11 + $0x3d0] sm:$0xff]
        %v3535 = vld [vmem:[#allocation11 + $0x3d8] sm:$0xff]
        %v3536 = vld [vmem:[#allocation11 + $0x3e0] sm:$0xff]
        %v3537 = vld [vmem:[#allocation11 + $0x3e8] sm:$0xff]
        %v3538 = vld [vmem:[#allocation11 + $0x3f0] sm:$0xff]
        %v3539 = vld [vmem:[#allocation11 + $0x3f8] sm:$0xff]
        %v3540 = vld [vmem:[%s4] sm:$0xf]
        %v3542 = vlaneseq
        %v3543 = vshrl.u32 %v3542, 7
        %v3544 = vsub.s32 0, %v3543
        %v3545 = vrot.slane %v3540, %v3544
        %v3546 = vlaneseq
        %v3547 = vshrl.u32 %v3546, 7
        %v3548 = vsub.s32 1, %v3547
        %v3549 = vrot.slane %v3540, %v3548
        %v3550 = vlaneseq
        %v3551 = vshrl.u32 %v3550, 7
        %v3552 = vsub.s32 2, %v3551
        %v3553 = vrot.slane %v3540, %v3552
        %v3554 = vlaneseq
        %v3555 = vshrl.u32 %v3554, 7
        %v3556 = vsub.s32 3, %v3555
        %v3557 = vrot.slane %v3540, %v3556
        %v3690 = vunpack.c.l.b16 %v3412
        %v3691 = vunpack.c.h.b16 %v3412
        %v3692 = vunpack.c.l.b16 %v3413
        %v3693 = vunpack.c.h.b16 %v3413
        %v3694 = vunpack.c.l.b16 %v3414
        %v3695 = vunpack.c.h.b16 %v3414
        %v3696 = vunpack.c.l.b16 %v3415
        %v3697 = vunpack.c.h.b16 %v3415
        %v3698 = vunpack.c.l.b16 %v3416
        %v3699 = vunpack.c.h.b16 %v3416
        %v3700 = vunpack.c.l.b16 %v3417
        %v3701 = vunpack.c.h.b16 %v3417
        %v3702 = vunpack.c.l.b16 %v3418
        %v3703 = vunpack.c.h.b16 %v3418
        %v3704 = vunpack.c.l.b16 %v3419
        %v3705 = vunpack.c.h.b16 %v3419
        %v3706 = vunpack.c.l.b16 %v3420
        %v3707 = vunpack.c.h.b16 %v3420
        %v3708 = vunpack.c.l.b16 %v3421
        %v3709 = vunpack.c.h.b16 %v3421
        %v3710 = vunpack.c.l.b16 %v3422
        %v3711 = vunpack.c.h.b16 %v3422
        %v3712 = vunpack.c.l.b16 %v3423
        %v3713 = vunpack.c.h.b16 %v3423
        %v3714 = vunpack.c.l.b16 %v3424
        %v3715 = vunpack.c.h.b16 %v3424
        %v3716 = vunpack.c.l.b16 %v3425
        %v3717 = vunpack.c.h.b16 %v3425
        %v3718 = vunpack.c.l.b16 %v3426
        %v3719 = vunpack.c.h.b16 %v3426
        %v3720 = vunpack.c.l.b16 %v3427
        %v3721 = vunpack.c.h.b16 %v3427
        %v3722 = vunpack.c.l.b16 %v3428
        %v3723 = vunpack.c.h.b16 %v3428
        %v3724 = vunpack.c.l.b16 %v3429
        %v3725 = vunpack.c.h.b16 %v3429
        %v3726 = vunpack.c.l.b16 %v3430
        %v3727 = vunpack.c.h.b16 %v3430
        %v3728 = vunpack.c.l.b16 %v3431
        %v3729 = vunpack.c.h.b16 %v3431
        %v3730 = vunpack.c.l.b16 %v3432
        %v3731 = vunpack.c.h.b16 %v3432
        %v3732 = vunpack.c.l.b16 %v3433
        %v3733 = vunpack.c.h.b16 %v3433
        %v3734 = vunpack.c.l.b16 %v3434
        %v3735 = vunpack.c.h.b16 %v3434
        %v3736 = vunpack.c.l.b16 %v3435
        %v3737 = vunpack.c.h.b16 %v3435
        %v3738 = vunpack.c.l.b16 %v3436
        %v3739 = vunpack.c.h.b16 %v3436
        %v3740 = vunpack.c.l.b16 %v3437
        %v3741 = vunpack.c.h.b16 %v3437
        %v3742 = vunpack.c.l.b16 %v3438
        %v3743 = vunpack.c.h.b16 %v3438
        %v3744 = vunpack.c.l.b16 %v3439
        %v3745 = vunpack.c.h.b16 %v3439
        %v3746 = vunpack.c.l.b16 %v3440
        %v3747 = vunpack.c.h.b16 %v3440
        %v3748 = vunpack.c.l.b16 %v3441
        %v3749 = vunpack.c.h.b16 %v3441
        %v3750 = vunpack.c.l.b16 %v3442
        %v3751 = vunpack.c.h.b16 %v3442
        %v3752 = vunpack.c.l.b16 %v3443
        %v3753 = vunpack.c.h.b16 %v3443
        %v3754 = vunpack.c.l.b16 %v3444
        %v3755 = vunpack.c.h.b16 %v3444
        %v3756 = vunpack.c.l.b16 %v3445
        %v3757 = vunpack.c.h.b16 %v3445
        %v3758 = vunpack.c.l.b16 %v3446
        %v3759 = vunpack.c.h.b16 %v3446
        %v3760 = vunpack.c.l.b16 %v3447
        %v3761 = vunpack.c.h.b16 %v3447
        %v3762 = vunpack.c.l.b16 %v3448
        %v3763 = vunpack.c.h.b16 %v3448
        %v3764 = vunpack.c.l.b16 %v3449
        %v3765 = vunpack.c.h.b16 %v3449
        %v3766 = vunpack.c.l.b16 %v3450
        %v3767 = vunpack.c.h.b16 %v3450
        %v3768 = vunpack.c.l.b16 %v3451
        %v3769 = vunpack.c.h.b16 %v3451
        %v3770 = vunpack.c.l.b16 %v3452
        %v3771 = vunpack.c.h.b16 %v3452
        %v3772 = vunpack.c.l.b16 %v3453
        %v3773 = vunpack.c.h.b16 %v3453
        %v3774 = vunpack.c.l.b16 %v3454
        %v3775 = vunpack.c.h.b16 %v3454
        %v3776 = vunpack.c.l.b16 %v3455
        %v3777 = vunpack.c.h.b16 %v3455
        %v3778 = vunpack.c.l.b16 %v3456
        %v3779 = vunpack.c.h.b16 %v3456
        %v3780 = vunpack.c.l.b16 %v3457
        %v3781 = vunpack.c.h.b16 %v3457
        %v3782 = vunpack.c.l.b16 %v3458
        %v3783 = vunpack.c.h.b16 %v3458
        %v3784 = vunpack.c.l.b16 %v3459
        %v3785 = vunpack.c.h.b16 %v3459
        %v3786 = vunpack.c.l.b16 %v3460
        %v3787 = vunpack.c.h.b16 %v3460
        %v3788 = vunpack.c.l.b16 %v3461
        %v3789 = vunpack.c.h.b16 %v3461
        %v3790 = vunpack.c.l.b16 %v3462
        %v3791 = vunpack.c.h.b16 %v3462
        %v3792 = vunpack.c.l.b16 %v3463
        %v3793 = vunpack.c.h.b16 %v3463
        %v3794 = vunpack.c.l.b16 %v3464
        %v3795 = vunpack.c.h.b16 %v3464
        %v3796 = vunpack.c.l.b16 %v3465
        %v3797 = vunpack.c.h.b16 %v3465
        %v3798 = vunpack.c.l.b16 %v3466
        %v3799 = vunpack.c.h.b16 %v3466
        %v3800 = vunpack.c.l.b16 %v3467
        %v3801 = vunpack.c.h.b16 %v3467
        %v3802 = vunpack.c.l.b16 %v3468
        %v3803 = vunpack.c.h.b16 %v3468
        %v3804 = vunpack.c.l.b16 %v3469
        %v3805 = vunpack.c.h.b16 %v3469
        %v3806 = vunpack.c.l.b16 %v3470
        %v3807 = vunpack.c.h.b16 %v3470
        %v3808 = vunpack.c.l.b16 %v3471
        %v3809 = vunpack.c.h.b16 %v3471
        %v3810 = vunpack.c.l.b16 %v3472
        %v3811 = vunpack.c.h.b16 %v3472
        %v3812 = vunpack.c.l.b16 %v3473
        %v3813 = vunpack.c.h.b16 %v3473
        %v3814 = vunpack.c.l.b16 %v3474
        %v3815 = vunpack.c.h.b16 %v3474
        %v3816 = vunpack.c.l.b16 %v3475
        %v3817 = vunpack.c.h.b16 %v3475
        %v3818 = vunpack.c.l.b16 %v3476
        %v3819 = vunpack.c.h.b16 %v3476
        %v3820 = vunpack.c.l.b16 %v3477
        %v3821 = vunpack.c.h.b16 %v3477
        %v3822 = vunpack.c.l.b16 %v3478
        %v3823 = vunpack.c.h.b16 %v3478
        %v3824 = vunpack.c.l.b16 %v3479
        %v3825 = vunpack.c.h.b16 %v3479
        %v3826 = vunpack.c.l.b16 %v3480
        %v3827 = vunpack.c.h.b16 %v3480
        %v3828 = vunpack.c.l.b16 %v3481
        %v3829 = vunpack.c.h.b16 %v3481
        %v3830 = vunpack.c.l.b16 %v3482
        %v3831 = vunpack.c.h.b16 %v3482
        %v3832 = vunpack.c.l.b16 %v3483
        %v3833 = vunpack.c.h.b16 %v3483
        %v3834 = vunpack.c.l.b16 %v3484
        %v3835 = vunpack.c.h.b16 %v3484
        %v3836 = vunpack.c.l.b16 %v3485
        %v3837 = vunpack.c.h.b16 %v3485
        %v3838 = vunpack.c.l.b16 %v3486
        %v3839 = vunpack.c.h.b16 %v3486
        %v3840 = vunpack.c.l.b16 %v3487
        %v3841 = vunpack.c.h.b16 %v3487
        %v3842 = vunpack.c.l.b16 %v3488
        %v3843 = vunpack.c.h.b16 %v3488
        %v3844 = vunpack.c.l.b16 %v3489
        %v3845 = vunpack.c.h.b16 %v3489
        %v3846 = vunpack.c.l.b16 %v3490
        %v3847 = vunpack.c.h.b16 %v3490
        %v3848 = vunpack.c.l.b16 %v3491
        %v3849 = vunpack.c.h.b16 %v3491
        %v3850 = vunpack.c.l.b16 %v3492
        %v3851 = vunpack.c.h.b16 %v3492
        %v3852 = vunpack.c.l.b16 %v3493
        %v3853 = vunpack.c.h.b16 %v3493
        %v3854 = vunpack.c.l.b16 %v3494
        %v3855 = vunpack.c.h.b16 %v3494
        %v3856 = vunpack.c.l.b16 %v3495
        %v3857 = vunpack.c.h.b16 %v3495
        %v3858 = vunpack.c.l.b16 %v3496
        %v3859 = vunpack.c.h.b16 %v3496
        %v3860 = vunpack.c.l.b16 %v3497
        %v3861 = vunpack.c.h.b16 %v3497
        %v3862 = vunpack.c.l.b16 %v3498
        %v3863 = vunpack.c.h.b16 %v3498
        %v3864 = vunpack.c.l.b16 %v3499
        %v3865 = vunpack.c.h.b16 %v3499
        %v3866 = vunpack.c.l.b16 %v3500
        %v3867 = vunpack.c.h.b16 %v3500
        %v3868 = vunpack.c.l.b16 %v3501
        %v3869 = vunpack.c.h.b16 %v3501
        %v3870 = vunpack.c.l.b16 %v3502
        %v3871 = vunpack.c.h.b16 %v3502
        %v3872 = vunpack.c.l.b16 %v3503
        %v3873 = vunpack.c.h.b16 %v3503
        %v3874 = vunpack.c.l.b16 %v3504
        %v3875 = vunpack.c.h.b16 %v3504
        %v3876 = vunpack.c.l.b16 %v3505
        %v3877 = vunpack.c.h.b16 %v3505
        %v3878 = vunpack.c.l.b16 %v3506
        %v3879 = vunpack.c.h.b16 %v3506
        %v3880 = vunpack.c.l.b16 %v3507
        %v3881 = vunpack.c.h.b16 %v3507
        %v3882 = vunpack.c.l.b16 %v3508
        %v3883 = vunpack.c.h.b16 %v3508
        %v3884 = vunpack.c.l.b16 %v3509
        %v3885 = vunpack.c.h.b16 %v3509
        %v3886 = vunpack.c.l.b16 %v3510
        %v3887 = vunpack.c.h.b16 %v3510
        %v3888 = vunpack.c.l.b16 %v3511
        %v3889 = vunpack.c.h.b16 %v3511
        %v3890 = vunpack.c.l.b16 %v3512
        %v3891 = vunpack.c.h.b16 %v3512
        %v3892 = vunpack.c.l.b16 %v3513
        %v3893 = vunpack.c.h.b16 %v3513
        %v3894 = vunpack.c.l.b16 %v3514
        %v3895 = vunpack.c.h.b16 %v3514
        %v3896 = vunpack.c.l.b16 %v3515
        %v3897 = vunpack.c.h.b16 %v3515
        %v3898 = vunpack.c.l.b16 %v3516
        %v3899 = vunpack.c.h.b16 %v3516
        %v3900 = vunpack.c.l.b16 %v3517
        %v3901 = vunpack.c.h.b16 %v3517
        %v3902 = vunpack.c.l.b16 %v3518
        %v3903 = vunpack.c.h.b16 %v3518
        %v3904 = vunpack.c.l.b16 %v3519
        %v3905 = vunpack.c.h.b16 %v3519
        %v3906 = vunpack.c.l.b16 %v3520
        %v3907 = vunpack.c.h.b16 %v3520
        %v3908 = vunpack.c.l.b16 %v3521
        %v3909 = vunpack.c.h.b16 %v3521
        %v3910 = vunpack.c.l.b16 %v3522
        %v3911 = vunpack.c.h.b16 %v3522
        %v3912 = vunpack.c.l.b16 %v3523
        %v3913 = vunpack.c.h.b16 %v3523
        %v3914 = vunpack.c.l.b16 %v3524
        %v3915 = vunpack.c.h.b16 %v3524
        %v3916 = vunpack.c.l.b16 %v3525
        %v3917 = vunpack.c.h.b16 %v3525
        %v3918 = vunpack.c.l.b16 %v3526
        %v3919 = vunpack.c.h.b16 %v3526
        %v3920 = vunpack.c.l.b16 %v3527
        %v3921 = vunpack.c.h.b16 %v3527
        %v3922 = vunpack.c.l.b16 %v3528
        %v3923 = vunpack.c.h.b16 %v3528
        %v3924 = vunpack.c.l.b16 %v3529
        %v3925 = vunpack.c.h.b16 %v3529
        %v3926 = vunpack.c.l.b16 %v3530
        %v3927 = vunpack.c.h.b16 %v3530
        %v3928 = vunpack.c.l.b16 %v3531
        %v3929 = vunpack.c.h.b16 %v3531
        %v3930 = vunpack.c.l.b16 %v3532
        %v3931 = vunpack.c.h.b16 %v3532
        %v3932 = vunpack.c.l.b16 %v3533
        %v3933 = vunpack.c.h.b16 %v3533
        %v3934 = vunpack.c.l.b16 %v3534
        %v3935 = vunpack.c.h.b16 %v3534
        %v3936 = vunpack.c.l.b16 %v3535
        %v3937 = vunpack.c.h.b16 %v3535
        %v3938 = vunpack.c.l.b16 %v3536
        %v3939 = vunpack.c.h.b16 %v3536
        %v3940 = vunpack.c.l.b16 %v3537
        %v3941 = vunpack.c.h.b16 %v3537
        %v3942 = vunpack.c.l.b16 %v3538
        %v3943 = vunpack.c.h.b16 %v3538
        %v3944 = vunpack.c.l.b16 %v3539
        %v3945 = vunpack.c.h.b16 %v3539
        %v3946 = vpack.c.b16 %v3694, %v3690
        %v3947 = vpack.c.b16 %v3695, %v3691
        %v3948 = vpack.c.b16 %v3696, %v3692
        %v3949 = vpack.c.b16 %v3697, %v3693
        %v3950 = vpack.c.b16 %v3702, %v3698
        %v3951 = vpack.c.b16 %v3703, %v3699
        %v3952 = vpack.c.b16 %v3704, %v3700
        %v3953 = vpack.c.b16 %v3705, %v3701
        %v3954 = vpack.c.b16 %v3710, %v3706
        %v3955 = vpack.c.b16 %v3711, %v3707
        %v3956 = vpack.c.b16 %v3712, %v3708
        %v3957 = vpack.c.b16 %v3713, %v3709
        %v3958 = vpack.c.b16 %v3718, %v3714
        %v3959 = vpack.c.b16 %v3719, %v3715
        %v3960 = vpack.c.b16 %v3720, %v3716
        %v3961 = vpack.c.b16 %v3721, %v3717
        %v3962 = vpack.c.b16 %v3726, %v3722
        %v3963 = vpack.c.b16 %v3727, %v3723
        %v3964 = vpack.c.b16 %v3728, %v3724
        %v3965 = vpack.c.b16 %v3729, %v3725
        %v3966 = vpack.c.b16 %v3734, %v3730
        %v3967 = vpack.c.b16 %v3735, %v3731
        %v3968 = vpack.c.b16 %v3736, %v3732
        %v3969 = vpack.c.b16 %v3737, %v3733
        %v3970 = vpack.c.b16 %v3742, %v3738
        %v3971 = vpack.c.b16 %v3743, %v3739
        %v3972 = vpack.c.b16 %v3744, %v3740
        %v3973 = vpack.c.b16 %v3745, %v3741
        %v3974 = vpack.c.b16 %v3750, %v3746
        %v3975 = vpack.c.b16 %v3751, %v3747
        %v3976 = vpack.c.b16 %v3752, %v3748
        %v3977 = vpack.c.b16 %v3753, %v3749
        %v3978 = vpack.c.b16 %v3758, %v3754
        %v3979 = vpack.c.b16 %v3759, %v3755
        %v3980 = vpack.c.b16 %v3760, %v3756
        %v3981 = vpack.c.b16 %v3761, %v3757
        %v3982 = vpack.c.b16 %v3766, %v3762
        %v3983 = vpack.c.b16 %v3767, %v3763
        %v3984 = vpack.c.b16 %v3768, %v3764
        %v3985 = vpack.c.b16 %v3769, %v3765
        %v3986 = vpack.c.b16 %v3774, %v3770
        %v3987 = vpack.c.b16 %v3775, %v3771
        %v3988 = vpack.c.b16 %v3776, %v3772
        %v3989 = vpack.c.b16 %v3777, %v3773
        %v3990 = vpack.c.b16 %v3782, %v3778
        %v3991 = vpack.c.b16 %v3783, %v3779
        %v3992 = vpack.c.b16 %v3784, %v3780
        %v3993 = vpack.c.b16 %v3785, %v3781
        %v3994 = vpack.c.b16 %v3790, %v3786
        %v3995 = vpack.c.b16 %v3791, %v3787
        %v3996 = vpack.c.b16 %v3792, %v3788
        %v3997 = vpack.c.b16 %v3793, %v3789
        %v3998 = vpack.c.b16 %v3798, %v3794
        %v3999 = vpack.c.b16 %v3799, %v3795
        %v4000 = vpack.c.b16 %v3800, %v3796
        %v4001 = vpack.c.b16 %v3801, %v3797
        %v4002 = vpack.c.b16 %v3806, %v3802
        %v4003 = vpack.c.b16 %v3807, %v3803
        %v4004 = vpack.c.b16 %v3808, %v3804
        %v4005 = vpack.c.b16 %v3809, %v3805
        %v4006 = vpack.c.b16 %v3814, %v3810
        %v4007 = vpack.c.b16 %v3815, %v3811
        %v4008 = vpack.c.b16 %v3816, %v3812
        %v4009 = vpack.c.b16 %v3817, %v3813
        %v4010 = vpack.c.b16 %v3822, %v3818
        %v4011 = vpack.c.b16 %v3823, %v3819
        %v4012 = vpack.c.b16 %v3824, %v3820
        %v4013 = vpack.c.b16 %v3825, %v3821
        %v4014 = vpack.c.b16 %v3830, %v3826
        %v4015 = vpack.c.b16 %v3831, %v3827
        %v4016 = vpack.c.b16 %v3832, %v3828
        %v4017 = vpack.c.b16 %v3833, %v3829
        %v4018 = vpack.c.b16 %v3838, %v3834
        %v4019 = vpack.c.b16 %v3839, %v3835
        %v4020 = vpack.c.b16 %v3840, %v3836
        %v4021 = vpack.c.b16 %v3841, %v3837
        %v4022 = vpack.c.b16 %v3846, %v3842
        %v4023 = vpack.c.b16 %v3847, %v3843
        %v4024 = vpack.c.b16 %v3848, %v3844
        %v4025 = vpack.c.b16 %v3849, %v3845
        %v4026 = vpack.c.b16 %v3854, %v3850
        %v4027 = vpack.c.b16 %v3855, %v3851
        %v4028 = vpack.c.b16 %v3856, %v3852
        %v4029 = vpack.c.b16 %v3857, %v3853
        %v4030 = vpack.c.b16 %v3862, %v3858
        %v4031 = vpack.c.b16 %v3863, %v3859
        %v4032 = vpack.c.b16 %v3864, %v3860
        %v4033 = vpack.c.b16 %v3865, %v3861
        %v4034 = vpack.c.b16 %v3870, %v3866
        %v4035 = vpack.c.b16 %v3871, %v3867
        %v4036 = vpack.c.b16 %v3872, %v3868
        %v4037 = vpack.c.b16 %v3873, %v3869
        %v4038 = vpack.c.b16 %v3878, %v3874
        %v4039 = vpack.c.b16 %v3879, %v3875
        %v4040 = vpack.c.b16 %v3880, %v3876
        %v4041 = vpack.c.b16 %v3881, %v3877
        %v4042 = vpack.c.b16 %v3886, %v3882
        %v4043 = vpack.c.b16 %v3887, %v3883
        %v4044 = vpack.c.b16 %v3888, %v3884
        %v4045 = vpack.c.b16 %v3889, %v3885
        %v4046 = vpack.c.b16 %v3894, %v3890
        %v4047 = vpack.c.b16 %v3895, %v3891
        %v4048 = vpack.c.b16 %v3896, %v3892
        %v4049 = vpack.c.b16 %v3897, %v3893
        %v4050 = vpack.c.b16 %v3902, %v3898
        %v4051 = vpack.c.b16 %v3903, %v3899
        %v4052 = vpack.c.b16 %v3904, %v3900
        %v4053 = vpack.c.b16 %v3905, %v3901
        %v4054 = vpack.c.b16 %v3910, %v3906
        %v4055 = vpack.c.b16 %v3911, %v3907
        %v4056 = vpack.c.b16 %v3912, %v3908
        %v4057 = vpack.c.b16 %v3913, %v3909
        %v4058 = vpack.c.b16 %v3918, %v3914
        %v4059 = vpack.c.b16 %v3919, %v3915
        %v4060 = vpack.c.b16 %v3920, %v3916
        %v4061 = vpack.c.b16 %v3921, %v3917
        %v4062 = vpack.c.b16 %v3926, %v3922
        %v4063 = vpack.c.b16 %v3927, %v3923
        %v4064 = vpack.c.b16 %v3928, %v3924
        %v4065 = vpack.c.b16 %v3929, %v3925
        %v4066 = vpack.c.b16 %v3934, %v3930
        %v4067 = vpack.c.b16 %v3935, %v3931
        %v4068 = vpack.c.b16 %v3936, %v3932
        %v4069 = vpack.c.b16 %v3937, %v3933
        %v4070 = vpack.c.b16 %v3942, %v3938
        %v4071 = vpack.c.b16 %v3943, %v3939
        %v4072 = vpack.c.b16 %v3944, %v3940
        %v4073 = vpack.c.b16 %v3945, %v3941
        %4202 = vmatprep.subr.bf16.mxu0 %v3947
        %4203 = vmatpush1.bf16.msra.mxu0 %v3946
        %4204 = vmatprep.subr.bf16.mxu0 %v3951
        %4205 = vmatpush1.bf16.msra.mxu0 %v3950
        %4206 = vmatprep.subr.bf16.mxu0 %v3955
        %4207 = vmatpush1.bf16.msra.mxu0 %v3954
        %4208 = vmatprep.subr.bf16.mxu0 %v3959
        %4209 = vmatpush1.bf16.msra.mxu0 %v3958
        %4210 = vmatprep.subr.bf16.mxu0 %v3963
        %4211 = vmatpush1.bf16.msra.mxu0 %v3962
        %4212 = vmatprep.subr.bf16.mxu0 %v3967
        %4213 = vmatpush1.bf16.msra.mxu0 %v3966
        %4214 = vmatprep.subr.bf16.mxu0 %v3971
        %4215 = vmatpush1.bf16.msra.mxu0 %v3970
        %4216 = vmatprep.subr.bf16.mxu0 %v3975
        %4217 = vmatpush1.bf16.msra.mxu0 %v3974
        %4218 = vmatprep.subr.bf16.mxu0 %v3979
        %4219 = vmatpush1.bf16.msra.mxu0 %v3978
        %4220 = vmatprep.subr.bf16.mxu0 %v3983
        %4221 = vmatpush1.bf16.msra.mxu0 %v3982
        %4222 = vmatprep.subr.bf16.mxu0 %v3987
        %4223 = vmatpush1.bf16.msra.mxu0 %v3986
        %4224 = vmatprep.subr.bf16.mxu0 %v3991
        %4225 = vmatpush1.bf16.msra.mxu0 %v3990
        %4226 = vmatprep.subr.bf16.mxu0 %v3995
        %4227 = vmatpush1.bf16.msra.mxu0 %v3994
        %4228 = vmatprep.subr.bf16.mxu0 %v3999
        %4229 = vmatpush1.bf16.msra.mxu0 %v3998
        %4230 = vmatprep.subr.bf16.mxu0 %v4003
        %4231 = vmatpush1.bf16.msra.mxu0 %v4002
        %4232 = vmatprep.subr.bf16.mxu0 %v4007
        %4233 = vmatpush1.bf16.msra.mxu0 %v4006
        %4234 = vmatprep.mubr.bf16.mxu0 %v3381
        %4235 = vmatmul.mubr.bf16.gmra.mrb[0].mxu0 %v3380
        %v4236 = vpop.f32.mrb[0].mxu0
        %v4237 = vadd.f32 %v3545, %v4236
        %v4238 = vpop.f32.mrb[0].mxu0
        %v4239 = vadd.f32 %v3549, %v4238
        %v4240 = vpop.f32.mrb[0].mxu0
        %v4241 = vadd.f32 %v3545, %v4240
        %v4242 = vpop.f32.mrb[0].mxu0
        %v4243 = vadd.f32 %v3549, %v4242
        %4244 = vmatprep.mubr.bf16.mxu0 %v3385
        %4245 = vmatmul.mubr.bf16.gmra.mrb[0].mxu0 %v3384
        %v4246 = vpop.f32.mrb[0].mxu0
        %v4247 = vadd.f32 %v3545, %v4246
        %v4248 = vpop.f32.mrb[0].mxu0
        %v4249 = vadd.f32 %v3549, %v4248
        %v4250 = vpop.f32.mrb[0].mxu0
        %v4251 = vadd.f32 %v3545, %v4250
        %v4252 = vpop.f32.mrb[0].mxu0
        %v4253 = vadd.f32 %v3549, %v4252
        %4254 = vmatprep.mubr.bf16.mxu0 %v3389
        %4255 = vmatmul.mubr.bf16.gmra.mrb[0].mxu0 %v3388
        %v4256 = vpop.f32.mrb[0].mxu0
        %v4257 = vadd.f32 %v3545, %v4256
        %v4258 = vpop.f32.mrb[0].mxu0
        %v4259 = vadd.f32 %v3549, %v4258
        %v4260 = vpop.f32.mrb[0].mxu0
        %v4261 = vadd.f32 %v3545, %v4260
        %v4262 = vpop.f32.mrb[0].mxu0
        %v4263 = vadd.f32 %v3549, %v4262
        %4264 = vmatprep.mubr.bf16.mxu0 %v3393
        %4265 = vmatmul.mubr.bf16.gmra.mrb[0].mxu0 %v3392
        %v4266 = vpop.f32.mrb[0].mxu0
        %v4267 = vadd.f32 %v3545, %v4266
        %v4268 = vpop.f32.mrb[0].mxu0
        %v4269 = vadd.f32 %v3549, %v4268
        %v4270 = vpop.f32.mrb[0].mxu0
        %v4271 = vadd.f32 %v3545, %v4270
        %v4272 = vpop.f32.mrb[0].mxu0
        %v4273 = vadd.f32 %v3549, %v4272
        %4274 = vmatprep.mubr.bf16.mxu0 %v3397
        %4275 = vmatmul.mubr.bf16.gmra.mrb[0].mxu0 %v3396
        %v4276 = vpop.f32.mrb[0].mxu0
        %v4277 = vadd.f32 %v3545, %v4276
        %v4278 = vpop.f32.mrb[0].mxu0
        %v4279 = vadd.f32 %v3549, %v4278
        %v4280 = vpop.f32.mrb[0].mxu0
        %v4281 = vadd.f32 %v3545, %v4280
        %v4282 = vpop.f32.mrb[0].mxu0
        %v4283 = vadd.f32 %v3549, %v4282
        %4284 = vmatprep.mubr.bf16.mxu0 %v3401
        %4285 = vmatmul.mubr.bf16.gmra.mrb[0].mxu0 %v3400
        %v4286 = vpop.f32.mrb[0].mxu0
        %v4287 = vadd.f32 %v3545, %v4286
        %v4288 = vpop.f32.mrb[0].mxu0
        %v4289 = vadd.f32 %v3549, %v4288
        %v4290 = vpop.f32.mrb[0].mxu0
        %v4291 = vadd.f32 %v3545, %v4290
        %v4292 = vpop.f32.mrb[0].mxu0
        %v4293 = vadd.f32 %v3549, %v4292
        %4294 = vmatprep.mubr.bf16.mxu0 %v3405
        %4295 = vmatmul.mubr.bf16.gmra.mrb[0].mxu0 %v3404
        %v4296 = vpop.f32.mrb[0].mxu0
        %v4297 = vadd.f32 %v3545, %v4296
        %v4298 = vpop.f32.mrb[0].mxu0
        %v4299 = vadd.f32 %v3549, %v4298
        %v4300 = vpop.f32.mrb[0].mxu0
        %v4301 = vadd.f32 %v3545, %v4300
        %v4302 = vpop.f32.mrb[0].mxu0
        %v4303 = vadd.f32 %v3549, %v4302
        %4304 = vmatprep.mubr.bf16.mxu0 %v3409
        %4305 = vmatmul.mubr.bf16.gmra.mrb[0].mxu0 %v3408
        %v4306 = vpop.f32.mrb[0].mxu0
        %v4307 = vadd.f32 %v3545, %v4306
        %v4308 = vpop.f32.mrb[0].mxu0
        %v4309 = vadd.f32 %v3549, %v4308
        %v4310 = vpop.f32.mrb[0].mxu0
        %v4311 = vadd.f32 %v3545, %v4310
        %v4312 = vpop.f32.mrb[0].mxu0
        %v4313 = vadd.f32 %v3549, %v4312
        %4314 = vdwg.mxu0
        %4315 = vmatprep.subr.bf16.mxu0 %v4011
        %4316 = vmatpush1.bf16.msra.mxu0 %v4010
        %4317 = vmatprep.subr.bf16.mxu0 %v4015
        %4318 = vmatpush1.bf16.msra.mxu0 %v4014
        %4319 = vmatprep.subr.bf16.mxu0 %v4019
        %4320 = vmatpush1.bf16.msra.mxu0 %v4018
        %4321 = vmatprep.subr.bf16.mxu0 %v4023
        %4322 = vmatpush1.bf16.msra.mxu0 %v4022
        %4323 = vmatprep.subr.bf16.mxu0 %v4027
        %4324 = vmatpush1.bf16.msra.mxu0 %v4026
        %4325 = vmatprep.subr.bf16.mxu0 %v4031
        %4326 = vmatpush1.bf16.msra.mxu0 %v4030
        %4327 = vmatprep.subr.bf16.mxu0 %v4035
        %4328 = vmatpush1.bf16.msra.mxu0 %v4034
        %4329 = vmatprep.subr.bf16.mxu0 %v4039
        %4330 = vmatpush1.bf16.msra.mxu0 %v4038
        %4331 = vmatprep.subr.bf16.mxu0 %v4043
        %4332 = vmatpush1.bf16.msra.mxu0 %v4042
        %4333 = vmatprep.subr.bf16.mxu0 %v4047
        %4334 = vmatpush1.bf16.msra.mxu0 %v4046
        %4335 = vmatprep.subr.bf16.mxu0 %v4051
        %4336 = vmatpush1.bf16.msra.mxu0 %v4050
        %4337 = vmatprep.subr.bf16.mxu0 %v4055
        %4338 = vmatpush1.bf16.msra.mxu0 %v4054
        %4339 = vmatprep.subr.bf16.mxu0 %v4059
        %4340 = vmatpush1.bf16.msra.mxu0 %v4058
        %4341 = vmatprep.subr.bf16.mxu0 %v4063
        %4342 = vmatpush1.bf16.msra.mxu0 %v4062
        %4343 = vmatprep.subr.bf16.mxu0 %v4067
        %4344 = vmatpush1.bf16.msra.mxu0 %v4066
        %4345 = vmatprep.subr.bf16.mxu0 %v4071
        %4346 = vmatpush1.bf16.msra.mxu0 %v4070
        %4347 = vmatprep.mubr.bf16.mxu0 %v3383
        %4348 = vmatmul.mubr.bf16.gmra.mrb[0].mxu0 %v3382
        %v4349 = vpop.f32.mrb[0].mxu0
        %v4350 = vadd.f32 %v4237, %v4349
        %v4351 = vpop.f32.mrb[0].mxu0
        %v4352 = vadd.f32 %v4239, %v4351
        %v4353 = vpop.f32.mrb[0].mxu0
        %v4354 = vadd.f32 %v4241, %v4353
        %v4355 = vpop.f32.mrb[0].mxu0
        %v4356 = vadd.f32 %v4243, %v4355
        %4357 = vmatprep.mubr.bf16.mxu0 %v3387
        %4358 = vmatmul.mubr.bf16.gmra.mrb[0].mxu0 %v3386
        %v4359 = vpop.f32.mrb[0].mxu0
        %v4360 = vadd.f32 %v4247, %v4359
        %v4361 = vpop.f32.mrb[0].mxu0
        %v4362 = vadd.f32 %v4249, %v4361
        %v4363 = vpop.f32.mrb[0].mxu0
        %v4364 = vadd.f32 %v4251, %v4363
        %v4365 = vpop.f32.mrb[0].mxu0
        %v4366 = vadd.f32 %v4253, %v4365
        %4367 = vmatprep.mubr.bf16.mxu0 %v3391
        %4368 = vmatmul.mubr.bf16.gmra.mrb[0].mxu0 %v3390
        %v4369 = vpop.f32.mrb[0].mxu0
        %v4370 = vadd.f32 %v4257, %v4369
        %v4371 = vpop.f32.mrb[0].mxu0
        %v4372 = vadd.f32 %v4259, %v4371
        %v4373 = vpop.f32.mrb[0].mxu0
        %v4374 = vadd.f32 %v4261, %v4373
        %v4375 = vpop.f32.mrb[0].mxu0
        %v4376 = vadd.f32 %v4263, %v4375
        %4377 = vmatprep.mubr.bf16.mxu0 %v3395
        %4378 = vmatmul.mubr.bf16.gmra.mrb[0].mxu0 %v3394
        %v4379 = vpop.f32.mrb[0].mxu0
        %v4380 = vadd.f32 %v4267, %v4379
        %v4381 = vpop.f32.mrb[0].mxu0
        %v4382 = vadd.f32 %v4269, %v4381
        %v4383 = vpop.f32.mrb[0].mxu0
        %v4384 = vadd.f32 %v4271, %v4383
        %v4385 = vpop.f32.mrb[0].mxu0
        %v4386 = vadd.f32 %v4273, %v4385
        %4387 = vmatprep.mubr.bf16.mxu0 %v3399
        %4388 = vmatmul.mubr.bf16.gmra.mrb[0].mxu0 %v3398
        %v4389 = vpop.f32.mrb[0].mxu0
        %v4390 = vadd.f32 %v4277, %v4389
        %v4391 = vpop.f32.mrb[0].mxu0
        %v4392 = vadd.f32 %v4279, %v4391
        %v4393 = vpop.f32.mrb[0].mxu0
        %v4394 = vadd.f32 %v4281, %v4393
        %v4395 = vpop.f32.mrb[0].mxu0
        %v4396 = vadd.f32 %v4283, %v4395
        %4397 = vmatprep.mubr.bf16.mxu0 %v3403
        %4398 = vmatmul.mubr.bf16.gmra.mrb[0].mxu0 %v3402
        %v4399 = vpop.f32.mrb[0].mxu0
        %v4400 = vadd.f32 %v4287, %v4399
        %v4401 = vpop.f32.mrb[0].mxu0
        %v4402 = vadd.f32 %v4289, %v4401
        %v4403 = vpop.f32.mrb[0].mxu0
        %v4404 = vadd.f32 %v4291, %v4403
        %v4405 = vpop.f32.mrb[0].mxu0
        %v4406 = vadd.f32 %v4293, %v4405
        %4407 = vmatprep.mubr.bf16.mxu0 %v3407
        %4408 = vmatmul.mubr.bf16.gmra.mrb[0].mxu0 %v3406
        %v4409 = vpop.f32.mrb[0].mxu0
        %v4410 = vadd.f32 %v4297, %v4409
        %v4411 = vpop.f32.mrb[0].mxu0
        %v4412 = vadd.f32 %v4299, %v4411
        %v4413 = vpop.f32.mrb[0].mxu0
        %v4414 = vadd.f32 %v4301, %v4413
        %v4415 = vpop.f32.mrb[0].mxu0
        %v4416 = vadd.f32 %v4303, %v4415
        %4417 = vmatprep.mubr.bf16.mxu0 %v3411
        %4418 = vmatmul.mubr.bf16.gmra.mrb[0].mxu0 %v3410
        %v4419 = vpop.f32.mrb[0].mxu0
        %v4420 = vadd.f32 %v4307, %v4419
        %v4421 = vpop.f32.mrb[0].mxu0
        %v4422 = vadd.f32 %v4309, %v4421
        %v4423 = vpop.f32.mrb[0].mxu0
        %v4424 = vadd.f32 %v4311, %v4423
        %v4425 = vpop.f32.mrb[0].mxu0
        %v4426 = vadd.f32 %v4313, %v4425
        %4427 = vdwg.mxu0
        %4428 = vmatprep.subr.bf16.mxu0 %v3949
        %4429 = vmatpush1.bf16.msra.mxu0 %v3948
        %4430 = vmatprep.subr.bf16.mxu0 %v3953
        %4431 = vmatpush1.bf16.msra.mxu0 %v3952
        %4432 = vmatprep.subr.bf16.mxu0 %v3957
        %4433 = vmatpush1.bf16.msra.mxu0 %v3956
        %4434 = vmatprep.subr.bf16.mxu0 %v3961
        %4435 = vmatpush1.bf16.msra.mxu0 %v3960
        %4436 = vmatprep.subr.bf16.mxu0 %v3965
        %4437 = vmatpush1.bf16.msra.mxu0 %v3964
        %4438 = vmatprep.subr.bf16.mxu0 %v3969
        %4439 = vmatpush1.bf16.msra.mxu0 %v3968
        %4440 = vmatprep.subr.bf16.mxu0 %v3973
        %4441 = vmatpush1.bf16.msra.mxu0 %v3972
        %4442 = vmatprep.subr.bf16.mxu0 %v3977
        %4443 = vmatpush1.bf16.msra.mxu0 %v3976
        %4444 = vmatprep.subr.bf16.mxu0 %v3981
        %4445 = vmatpush1.bf16.msra.mxu0 %v3980
        %4446 = vmatprep.subr.bf16.mxu0 %v3985
        %4447 = vmatpush1.bf16.msra.mxu0 %v3984
        %4448 = vmatprep.subr.bf16.mxu0 %v3989
        %4449 = vmatpush1.bf16.msra.mxu0 %v3988
        %4450 = vmatprep.subr.bf16.mxu0 %v3993
        %4451 = vmatpush1.bf16.msra.mxu0 %v3992
        %4452 = vmatprep.subr.bf16.mxu0 %v3997
        %4453 = vmatpush1.bf16.msra.mxu0 %v3996
        %4454 = vmatprep.subr.bf16.mxu0 %v4001
        %4455 = vmatpush1.bf16.msra.mxu0 %v4000
        %4456 = vmatprep.subr.bf16.mxu0 %v4005
        %4457 = vmatpush1.bf16.msra.mxu0 %v4004
        %4458 = vmatprep.subr.bf16.mxu0 %v4009
        %4459 = vmatpush1.bf16.msra.mxu0 %v4008
        %4460 = vmatprep.mubr.bf16.mxu0 %v3381
        %4461 = vmatmul.mubr.bf16.gmra.mrb[0].mxu0 %v3380
        %v4462 = vpop.f32.mrb[0].mxu0
        %v4463 = vadd.f32 %v3553, %v4462
        %v4464 = vpop.f32.mrb[0].mxu0
        %v4465 = vadd.f32 %v3557, %v4464
        %v4466 = vpop.f32.mrb[0].mxu0
        %v4467 = vadd.f32 %v3553, %v4466
        %v4468 = vpop.f32.mrb[0].mxu0
        %v4469 = vadd.f32 %v3557, %v4468
        %4470 = vmatprep.mubr.bf16.mxu0 %v3385
        %4471 = vmatmul.mubr.bf16.gmra.mrb[0].mxu0 %v3384
        %v4472 = vpop.f32.mrb[0].mxu0
        %v4473 = vadd.f32 %v3553, %v4472
        %v4474 = vpop.f32.mrb[0].mxu0
        %v4475 = vadd.f32 %v3557, %v4474
        %v4476 = vpop.f32.mrb[0].mxu0
        %v4477 = vadd.f32 %v3553, %v4476
        %v4478 = vpop.f32.mrb[0].mxu0
        %v4479 = vadd.f32 %v3557, %v4478
        %4480 = vmatprep.mubr.bf16.mxu0 %v3389
        %4481 = vmatmul.mubr.bf16.gmra.mrb[0].mxu0 %v3388
        %v4482 = vpop.f32.mrb[0].mxu0
        %v4483 = vadd.f32 %v3553, %v4482
        %v4484 = vpop.f32.mrb[0].mxu0
        %v4485 = vadd.f32 %v3557, %v4484
        %v4486 = vpop.f32.mrb[0].mxu0
        %v4487 = vadd.f32 %v3553, %v4486
        %v4488 = vpop.f32.mrb[0].mxu0
        %v4489 = vadd.f32 %v3557, %v4488
        %4490 = vmatprep.mubr.bf16.mxu0 %v3393
        %4491 = vmatmul.mubr.bf16.gmra.mrb[0].mxu0 %v3392
        %v4492 = vpop.f32.mrb[0].mxu0
        %v4493 = vadd.f32 %v3553, %v4492
        %v4494 = vpop.f32.mrb[0].mxu0
        %v4495 = vadd.f32 %v3557, %v4494
        %v4496 = vpop.f32.mrb[0].mxu0
        %v4497 = vadd.f32 %v3553, %v4496
        %v4498 = vpop.f32.mrb[0].mxu0
        %v4499 = vadd.f32 %v3557, %v4498
        %4500 = vmatprep.mubr.bf16.mxu0 %v3397
        %4501 = vmatmul.mubr.bf16.gmra.mrb[0].mxu0 %v3396
        %v4502 = vpop.f32.mrb[0].mxu0
        %v4503 = vadd.f32 %v3553, %v4502
        %v4504 = vpop.f32.mrb[0].mxu0
        %v4505 = vadd.f32 %v3557, %v4504
        %v4506 = vpop.f32.mrb[0].mxu0
        %v4507 = vadd.f32 %v3553, %v4506
        %v4508 = vpop.f32.mrb[0].mxu0
        %v4509 = vadd.f32 %v3557, %v4508
        %4510 = vmatprep.mubr.bf16.mxu0 %v3401
        %4511 = vmatmul.mubr.bf16.gmra.mrb[0].mxu0 %v3400
        %v4512 = vpop.f32.mrb[0].mxu0
        %v4513 = vadd.f32 %v3553, %v4512
        %v4514 = vpop.f32.mrb[0].mxu0
        %v4515 = vadd.f32 %v3557, %v4514
        %v4516 = vpop.f32.mrb[0].mxu0
        %v4517 = vadd.f32 %v3553, %v4516
        %v4518 = vpop.f32.mrb[0].mxu0
        %v4519 = vadd.f32 %v3557, %v4518
        %4520 = vmatprep.mubr.bf16.mxu0 %v3405
        %4521 = vmatmul.mubr.bf16.gmra.mrb[0].mxu0 %v3404
        %v4522 = vpop.f32.mrb[0].mxu0
        %v4523 = vadd.f32 %v3553, %v4522
        %v4524 = vpop.f32.mrb[0].mxu0
        %v4525 = vadd.f32 %v3557, %v4524
        %v4526 = vpop.f32.mrb[0].mxu0
        %v4527 = vadd.f32 %v3553, %v4526
        %v4528 = vpop.f32.mrb[0].mxu0
        %v4529 = vadd.f32 %v3557, %v4528
        %4530 = vmatprep.mubr.bf16.mxu0 %v3409
        %4531 = vmatmul.mubr.bf16.gmra.mrb[0].mxu0 %v3408
        %v4532 = vpop.f32.mrb[0].mxu0
        %v4533 = vadd.f32 %v3553, %v4532
        %v4534 = vpop.f32.mrb[0].mxu0
        %v4535 = vadd.f32 %v3557, %v4534
        %v4536 = vpop.f32.mrb[0].mxu0
        %v4537 = vadd.f32 %v3553, %v4536
        %v4538 = vpop.f32.mrb[0].mxu0
        %v4539 = vadd.f32 %v3557, %v4538
        %4540 = vdwg.mxu0
        %4541 = vmatprep.subr.bf16.mxu0 %v4013
        %4542 = vmatpush1.bf16.msra.mxu0 %v4012
        %4543 = vmatprep.subr.bf16.mxu0 %v4017
        %4544 = vmatpush1.bf16.msra.mxu0 %v4016
        %4545 = vmatprep.subr.bf16.mxu0 %v4021
        %4546 = vmatpush1.bf16.msra.mxu0 %v4020
        %4547 = vmatprep.subr.bf16.mxu0 %v4025
        %4548 = vmatpush1.bf16.msra.mxu0 %v4024
        %4549 = vmatprep.subr.bf16.mxu0 %v4029
        %4550 = vmatpush1.bf16.msra.mxu0 %v4028
        %4551 = vmatprep.subr.bf16.mxu0 %v4033
        %4552 = vmatpush1.bf16.msra.mxu0 %v4032
        %4553 = vmatprep.subr.bf16.mxu0 %v4037
        %4554 = vmatpush1.bf16.msra.mxu0 %v4036
        %4555 = vmatprep.subr.bf16.mxu0 %v4041
        %4556 = vmatpush1.bf16.msra.mxu0 %v4040
        %4557 = vmatprep.subr.bf16.mxu0 %v4045
        %4558 = vmatpush1.bf16.msra.mxu0 %v4044
        %4559 = vmatprep.subr.bf16.mxu0 %v4049
        %4560 = vmatpush1.bf16.msra.mxu0 %v4048
        %4561 = vmatprep.subr.bf16.mxu0 %v4053
        %4562 = vmatpush1.bf16.msra.mxu0 %v4052
        %4563 = vmatprep.subr.bf16.mxu0 %v4057
        %4564 = vmatpush1.bf16.msra.mxu0 %v4056
        %4565 = vmatprep.subr.bf16.mxu0 %v4061
        %4566 = vmatpush1.bf16.msra.mxu0 %v4060
        %4567 = vmatprep.subr.bf16.mxu0 %v4065
        %4568 = vmatpush1.bf16.msra.mxu0 %v4064
        %4569 = vmatprep.subr.bf16.mxu0 %v4069
        %4570 = vmatpush1.bf16.msra.mxu0 %v4068
        %4571 = vmatprep.subr.bf16.mxu0 %v4073
        %4572 = vmatpush1.bf16.msra.mxu0 %v4072
        %4573 = vmatprep.mubr.bf16.mxu0 %v3383
        %4574 = vmatmul.mubr.bf16.gmra.mrb[0].mxu0 %v3382
        %v4575 = vpop.f32.mrb[0].mxu0
        %v4576 = vadd.f32 %v4463, %v4575
        %v4577 = vpop.f32.mrb[0].mxu0
        %v4578 = vadd.f32 %v4465, %v4577
        %v4579 = vpop.f32.mrb[0].mxu0
        %v4580 = vadd.f32 %v4467, %v4579
        %v4581 = vpop.f32.mrb[0].mxu0
        %v4582 = vadd.f32 %v4469, %v4581
        %4583 = vmatprep.mubr.bf16.mxu0 %v3387
        %4584 = vmatmul.mubr.bf16.gmra.mrb[0].mxu0 %v3386
        %v4585 = vpop.f32.mrb[0].mxu0
        %v4586 = vadd.f32 %v4473, %v4585
        %v4587 = vpop.f32.mrb[0].mxu0
        %v4588 = vadd.f32 %v4475, %v4587
        %v4589 = vpop.f32.mrb[0].mxu0
        %v4590 = vadd.f32 %v4477, %v4589
        %v4591 = vpop.f32.mrb[0].mxu0
        %v4592 = vadd.f32 %v4479, %v4591
        %4593 = vmatprep.mubr.bf16.mxu0 %v3391
        %4594 = vmatmul.mubr.bf16.gmra.mrb[0].mxu0 %v3390
        %v4595 = vpop.f32.mrb[0].mxu0
        %v4596 = vadd.f32 %v4483, %v4595
        %v4597 = vpop.f32.mrb[0].mxu0
        %v4598 = vadd.f32 %v4485, %v4597
        %v4599 = vpop.f32.mrb[0].mxu0
        %v4600 = vadd.f32 %v4487, %v4599
        %v4601 = vpop.f32.mrb[0].mxu0
        %v4602 = vadd.f32 %v4489, %v4601
        %4603 = vmatprep.mubr.bf16.mxu0 %v3395
        %4604 = vmatmul.mubr.bf16.gmra.mrb[0].mxu0 %v3394
        %v4605 = vpop.f32.mrb[0].mxu0
        %v4606 = vadd.f32 %v4493, %v4605
        %v4607 = vpop.f32.mrb[0].mxu0
        %v4608 = vadd.f32 %v4495, %v4607
        %v4609 = vpop.f32.mrb[0].mxu0
        %v4610 = vadd.f32 %v4497, %v4609
        %v4611 = vpop.f32.mrb[0].mxu0
        %v4612 = vadd.f32 %v4499, %v4611
        %4613 = vmatprep.mubr.bf16.mxu0 %v3399
        %4614 = vmatmul.mubr.bf16.gmra.mrb[0].mxu0 %v3398
        %v4615 = vpop.f32.mrb[0].mxu0
        %v4616 = vadd.f32 %v4503, %v4615
        %v4617 = vpop.f32.mrb[0].mxu0
        %v4618 = vadd.f32 %v4505, %v4617
        %v4619 = vpop.f32.mrb[0].mxu0
        %v4620 = vadd.f32 %v4507, %v4619
        %v4621 = vpop.f32.mrb[0].mxu0
        %v4622 = vadd.f32 %v4509, %v4621
        %4623 = vmatprep.mubr.bf16.mxu0 %v3403
        %4624 = vmatmul.mubr.bf16.gmra.mrb[0].mxu0 %v3402
        %v4625 = vpop.f32.mrb[0].mxu0
        %v4626 = vadd.f32 %v4513, %v4625
        %v4627 = vpop.f32.mrb[0].mxu0
        %v4628 = vadd.f32 %v4515, %v4627
        %v4629 = vpop.f32.mrb[0].mxu0
        %v4630 = vadd.f32 %v4517, %v4629
        %v4631 = vpop.f32.mrb[0].mxu0
        %v4632 = vadd.f32 %v4519, %v4631
        %4633 = vmatprep.mubr.bf16.mxu0 %v3407
        %4634 = vmatmul.mubr.bf16.gmra.mrb[0].mxu0 %v3406
        %v4635 = vpop.f32.mrb[0].mxu0
        %v4636 = vadd.f32 %v4523, %v4635
        %v4637 = vpop.f32.mrb[0].mxu0
        %v4638 = vadd.f32 %v4525, %v4637
        %v4639 = vpop.f32.mrb[0].mxu0
        %v4640 = vadd.f32 %v4527, %v4639
        %v4641 = vpop.f32.mrb[0].mxu0
        %v4642 = vadd.f32 %v4529, %v4641
        %4643 = vmatprep.mubr.bf16.mxu0 %v3411
        %4644 = vmatmul.mubr.bf16.gmra.mrb[0].mxu0 %v3410
        %v4645 = vpop.f32.mrb[0].mxu0
        %v4646 = vadd.f32 %v4533, %v4645
        %v4647 = vpop.f32.mrb[0].mxu0
        %v4648 = vadd.f32 %v4535, %v4647
        %v4649 = vpop.f32.mrb[0].mxu0
        %v4650 = vadd.f32 %v4537, %v4649
        %v4651 = vpop.f32.mrb[0].mxu0
        %v4652 = vadd.f32 %v4539, %v4651
        %4653 = vdwg.mxu0
        %v4654 = vtanh.pop %v4350
        %v4655 = vtanh.pop %v4352
        %v4656 = vtanh.pop %v4354
        %v4657 = vtanh.pop %v4356
        %v4658 = vtanh.pop %v4360
        %v4659 = vtanh.pop %v4362
        %v4660 = vtanh.pop %v4364
        %v4661 = vtanh.pop %v4366
        %v4662 = vtanh.pop %v4370
        %v4663 = vtanh.pop %v4372
        %v4664 = vtanh.pop %v4374
        %v4665 = vtanh.pop %v4376
        %v4666 = vtanh.pop %v4380
        %v4667 = vtanh.pop %v4382
        %v4668 = vtanh.pop %v4384
        %v4669 = vtanh.pop %v4386
        %v4670 = vtanh.pop %v4390
        %v4671 = vtanh.pop %v4392
        %v4672 = vtanh.pop %v4394
        %v4673 = vtanh.pop %v4396
        %v4674 = vtanh.pop %v4400
        %v4675 = vtanh.pop %v4402
        %v4676 = vtanh.pop %v4404
        %v4677 = vtanh.pop %v4406
        %v4678 = vtanh.pop %v4410
        %v4679 = vtanh.pop %v4412
        %v4680 = vtanh.pop %v4414
        %v4681 = vtanh.pop %v4416
        %v4682 = vtanh.pop %v4420
        %v4683 = vtanh.pop %v4422
        %v4684 = vtanh.pop %v4424
        %v4685 = vtanh.pop %v4426
        %v4686 = vxor.u32 %v4576, 2147483648
        %v4687 = vxor.u32 %v4578, 2147483648
        %v4688 = vxor.u32 %v4580, 2147483648
        %v4689 = vxor.u32 %v4582, 2147483648
        %v4690 = vxor.u32 %v4586, 2147483648
        %v4691 = vxor.u32 %v4588, 2147483648
        %v4692 = vxor.u32 %v4590, 2147483648
        %v4693 = vxor.u32 %v4592, 2147483648
        %v4694 = vxor.u32 %v4596, 2147483648
        %v4695 = vxor.u32 %v4598, 2147483648
        %v4696 = vxor.u32 %v4600, 2147483648
        %v4697 = vxor.u32 %v4602, 2147483648
        %v4698 = vxor.u32 %v4606, 2147483648
        %v4699 = vxor.u32 %v4608, 2147483648
        %v4700 = vxor.u32 %v4610, 2147483648
        %v4701 = vxor.u32 %v4612, 2147483648
        %v4702 = vxor.u32 %v4616, 2147483648
        %v4703 = vxor.u32 %v4618, 2147483648
        %v4704 = vxor.u32 %v4620, 2147483648
        %v4705 = vxor.u32 %v4622, 2147483648
        %v4706 = vxor.u32 %v4626, 2147483648
        %v4707 = vxor.u32 %v4628, 2147483648
        %v4708 = vxor.u32 %v4630, 2147483648
        %v4709 = vxor.u32 %v4632, 2147483648
        %v4710 = vxor.u32 %v4636, 2147483648
        %v4711 = vxor.u32 %v4638, 2147483648
        %v4712 = vxor.u32 %v4640, 2147483648
        %v4713 = vxor.u32 %v4642, 2147483648
        %v4714 = vxor.u32 %v4646, 2147483648
        %v4715 = vxor.u32 %v4648, 2147483648
        %v4716 = vxor.u32 %v4650, 2147483648
        %v4717 = vxor.u32 %v4652, 2147483648
        %v4718 = vmul.f32 %v4686, 1.442695
        %v4719 = vpow.pop %v4718
        %v4720 = vmul.f32 %v4687, 1.442695
        %v4721 = vpow.pop %v4720
        %v4722 = vmul.f32 %v4688, 1.442695
        %v4723 = vpow.pop %v4722
        %v4724 = vmul.f32 %v4689, 1.442695
        %v4725 = vpow.pop %v4724
        %v4726 = vmul.f32 %v4690, 1.442695
        %v4727 = vpow.pop %v4726
        %v4728 = vmul.f32 %v4691, 1.442695
        %v4729 = vpow.pop %v4728
        %v4730 = vmul.f32 %v4692, 1.442695
        %v4731 = vpow.pop %v4730
        %v4732 = vmul.f32 %v4693, 1.442695
        %v4733 = vpow.pop %v4732
        %v4734 = vmul.f32 %v4694, 1.442695
        %v4735 = vpow.pop %v4734
        %v4736 = vmul.f32 %v4695, 1.442695
        %v4737 = vpow.pop %v4736
        %v4738 = vmul.f32 %v4696, 1.442695
        %v4739 = vpow.pop %v4738
        %v4740 = vmul.f32 %v4697, 1.442695
        %v4741 = vpow.pop %v4740
        %v4742 = vmul.f32 %v4698, 1.442695
        %v4743 = vpow.pop %v4742
        %v4744 = vmul.f32 %v4699, 1.442695
        %v4745 = vpow.pop %v4744
        %v4746 = vmul.f32 %v4700, 1.442695
        %v4747 = vpow.pop %v4746
        %v4748 = vmul.f32 %v4701, 1.442695
        %v4749 = vpow.pop %v4748
        %v4750 = vmul.f32 %v4702, 1.442695
        %v4751 = vpow.pop %v4750
        %v4752 = vmul.f32 %v4703, 1.442695
        %v4753 = vpow.pop %v4752
        %v4754 = vmul.f32 %v4704, 1.442695
        %v4755 = vpow.pop %v4754
        %v4756 = vmul.f32 %v4705, 1.442695
        %v4757 = vpow.pop %v4756
        %v4758 = vmul.f32 %v4706, 1.442695
        %v4759 = vpow.pop %v4758
        %v4760 = vmul.f32 %v4707, 1.442695
        %v4761 = vpow.pop %v4760
        %v4762 = vmul.f32 %v4708, 1.442695
        %v4763 = vpow.pop %v4762
        %v4764 = vmul.f32 %v4709, 1.442695
        %v4765 = vpow.pop %v4764
        %v4766 = vmul.f32 %v4710, 1.442695
        %v4767 = vpow.pop %v4766
        %v4768 = vmul.f32 %v4711, 1.442695
        %v4769 = vpow.pop %v4768
        %v4770 = vmul.f32 %v4712, 1.442695
        %v4771 = vpow.pop %v4770
        %v4772 = vmul.f32 %v4713, 1.442695
        %v4773 = vpow.pop %v4772
        %v4774 = vmul.f32 %v4714, 1.442695
        %v4775 = vpow.pop %v4774
        %v4776 = vmul.f32 %v4715, 1.442695
        %v4777 = vpow.pop %v4776
        %v4778 = vmul.f32 %v4716, 1.442695
        %v4779 = vpow.pop %v4778
        %v4780 = vmul.f32 %v4717, 1.442695
        %v4781 = vpow.pop %v4780
        %v4782 = vadd.f32 %v4719, 1.0
        %v4783 = vadd.f32 %v4721, 1.0
        %v4784 = vadd.f32 %v4723, 1.0
        %v4785 = vadd.f32 %v4725, 1.0
        %v4786 = vadd.f32 %v4727, 1.0
        %v4787 = vadd.f32 %v4729, 1.0
        %v4788 = vadd.f32 %v4731, 1.0
        %v4789 = vadd.f32 %v4733, 1.0
        %v4790 = vadd.f32 %v4735, 1.0
        %v4791 = vadd.f32 %v4737, 1.0
        %v4792 = vadd.f32 %v4739, 1.0
        %v4793 = vadd.f32 %v4741, 1.0
        %v4794 = vadd.f32 %v4743, 1.0
        %v4795 = vadd.f32 %v4745, 1.0
        %v4796 = vadd.f32 %v4747, 1.0
        %v4797 = vadd.f32 %v4749, 1.0
        %v4798 = vadd.f32 %v4751, 1.0
        %v4799 = vadd.f32 %v4753, 1.0
        %v4800 = vadd.f32 %v4755, 1.0
        %v4801 = vadd.f32 %v4757, 1.0
        %v4802 = vadd.f32 %v4759, 1.0
        %v4803 = vadd.f32 %v4761, 1.0
        %v4804 = vadd.f32 %v4763, 1.0
        %v4805 = vadd.f32 %v4765, 1.0
        %v4806 = vadd.f32 %v4767, 1.0
        %v4807 = vadd.f32 %v4769, 1.0
        %v4808 = vadd.f32 %v4771, 1.0
        %v4809 = vadd.f32 %v4773, 1.0
        %v4810 = vadd.f32 %v4775, 1.0
        %v4811 = vadd.f32 %v4777, 1.0
        %v4812 = vadd.f32 %v4779, 1.0
        %v4813 = vadd.f32 %v4781, 1.0
        %v4814 = vrcp.pop %v4782
        %v4815 = vmul.f32 1.0, %v4814
        %v4816 = vrcp.pop %v4783
        %v4817 = vmul.f32 1.0, %v4816
        %v4818 = vrcp.pop %v4784
        %v4819 = vmul.f32 1.0, %v4818
        %v4820 = vrcp.pop %v4785
        %v4821 = vmul.f32 1.0, %v4820
        %v4822 = vrcp.pop %v4786
        %v4823 = vmul.f32 1.0, %v4822
        %v4824 = vrcp.pop %v4787
        %v4825 = vmul.f32 1.0, %v4824
        %v4826 = vrcp.pop %v4788
        %v4827 = vmul.f32 1.0, %v4826
        %v4828 = vrcp.pop %v4789
        %v4829 = vmul.f32 1.0, %v4828
        %v4830 = vrcp.pop %v4790
        %v4831 = vmul.f32 1.0, %v4830
        %v4832 = vrcp.pop %v4791
        %v4833 = vmul.f32 1.0, %v4832
        %v4834 = vrcp.pop %v4792
        %v4835 = vmul.f32 1.0, %v4834
        %v4836 = vrcp.pop %v4793
        %v4837 = vmul.f32 1.0, %v4836
        %v4838 = vrcp.pop %v4794
        %v4839 = vmul.f32 1.0, %v4838
        %v4840 = vrcp.pop %v4795
        %v4841 = vmul.f32 1.0, %v4840
        %v4842 = vrcp.pop %v4796
        %v4843 = vmul.f32 1.0, %v4842
        %v4844 = vrcp.pop %v4797
        %v4845 = vmul.f32 1.0, %v4844
        %v4846 = vrcp.pop %v4798
        %v4847 = vmul.f32 1.0, %v4846
        %v4848 = vrcp.pop %v4799
        %v4849 = vmul.f32 1.0, %v4848
        %v4850 = vrcp.pop %v4800
        %v4851 = vmul.f32 1.0, %v4850
        %v4852 = vrcp.pop %v4801
        %v4853 = vmul.f32 1.0, %v4852
        %v4854 = vrcp.pop %v4802
        %v4855 = vmul.f32 1.0, %v4854
        %v4856 = vrcp.pop %v4803
        %v4857 = vmul.f32 1.0, %v4856
        %v4858 = vrcp.pop %v4804
        %v4859 = vmul.f32 1.0, %v4858
        %v4860 = vrcp.pop %v4805
        %v4861 = vmul.f32 1.0, %v4860
        %v4862 = vrcp.pop %v4806
        %v4863 = vmul.f32 1.0, %v4862
        %v4864 = vrcp.pop %v4807
        %v4865 = vmul.f32 1.0, %v4864
        %v4866 = vrcp.pop %v4808
        %v4867 = vmul.f32 1.0, %v4866
        %v4868 = vrcp.pop %v4809
        %v4869 = vmul.f32 1.0, %v4868
        %v4870 = vrcp.pop %v4810
        %v4871 = vmul.f32 1.0, %v4870
        %v4872 = vrcp.pop %v4811
        %v4873 = vmul.f32 1.0, %v4872
        %v4874 = vrcp.pop %v4812
        %v4875 = vmul.f32 1.0, %v4874
        %v4876 = vrcp.pop %v4813
        %v4877 = vmul.f32 1.0, %v4876
        %v4878 = vmul.f32 %v4654, %v4815
        %v4879 = vmul.f32 %v4655, %v4817
        %v4880 = vmul.f32 %v4656, %v4819
        %v4881 = vmul.f32 %v4657, %v4821
        %v4882 = vmul.f32 %v4658, %v4823
        %v4883 = vmul.f32 %v4659, %v4825
        %v4884 = vmul.f32 %v4660, %v4827
        %v4885 = vmul.f32 %v4661, %v4829
        %v4886 = vmul.f32 %v4662, %v4831
        %v4887 = vmul.f32 %v4663, %v4833
        %v4888 = vmul.f32 %v4664, %v4835
        %v4889 = vmul.f32 %v4665, %v4837
        %v4890 = vmul.f32 %v4666, %v4839
        %v4891 = vmul.f32 %v4667, %v4841
        %v4892 = vmul.f32 %v4668, %v4843
        %v4893 = vmul.f32 %v4669, %v4845
        %v4894 = vmul.f32 %v4670, %v4847
        %v4895 = vmul.f32 %v4671, %v4849
        %v4896 = vmul.f32 %v4672, %v4851
        %v4897 = vmul.f32 %v4673, %v4853
        %v4898 = vmul.f32 %v4674, %v4855
        %v4899 = vmul.f32 %v4675, %v4857
        %v4900 = vmul.f32 %v4676, %v4859
        %v4901 = vmul.f32 %v4677, %v4861
        %v4902 = vmul.f32 %v4678, %v4863
        %v4903 = vmul.f32 %v4679, %v4865
        %v4904 = vmul.f32 %v4680, %v4867
        %v4905 = vmul.f32 %v4681, %v4869
        %v4906 = vmul.f32 %v4682, %v4871
        %v4907 = vmul.f32 %v4683, %v4873
        %v4908 = vmul.f32 %v4684, %v4875
        %v4909 = vmul.f32 %v4685, %v4877
        %v4910 = vld [vmem:[%s5] sm:$0x3]
        %v4911 = vld [vmem:[#allocation5] sm:$0x1]
        %4913 = vset.pattern.permute.xlu0 0
        %4914 = vperm.xlu0 %4913, %v4911
        %v4915 = vpop.permute.xlu0 %4914
        %v4917 = vlaneseq
        %v4918 = vshrl.u32 %v4917, 7
        %v4919 = vsub.s32 0, %v4918
        %v4920 = vrot.slane %v4915, %v4919
        %v4922 = vlaneseq
        %v4923 = vshrl.u32 %v4922, 7
        %v4924 = vsub.s32 0, %v4923
        %v4925 = vrot.slane %v4910, %v4924
        %v4926 = vlaneseq
        %v4927 = vshrl.u32 %v4926, 7
        %v4928 = vsub.s32 1, %v4927
        %v4929 = vrot.slane %v4910, %v4928
        %4932 = vmatprep.subr.mxu0 %v4879
        %4933 = vmatpush1.xpose.msra.mxu0 %v4878
        %4934 = vmatprep.subr.mxu0 %v4881
        %4935 = vmatpush1.xpose.msra.mxu0 %v4880
        %4936 = vmatprep.subr.mxu0 %v4883
        %4937 = vmatpush1.xpose.msra.mxu0 %v4882
        %4938 = vmatprep.subr.mxu0 %v4885
        %4939 = vmatpush1.xpose.msra.mxu0 %v4884
        %4940 = vmatprep.subr.mxu0 %v4887
        %4941 = vmatpush1.xpose.msra.mxu0 %v4886
        %4942 = vmatprep.subr.mxu0 %v4889
        %4943 = vmatpush1.xpose.msra.mxu0 %v4888
        %4944 = vmatprep.subr.mxu0 %v4891
        %4945 = vmatpush1.xpose.msra.mxu0 %v4890
        %4946 = vmatprep.subr.mxu0 %v4893
        %4947 = vmatpush1.xpose.msra.mxu0 %v4892
        %4948 = vmatprep.subr.mxu0 %v4895
        %4949 = vmatpush1.xpose.msra.mxu0 %v4894
        %4950 = vmatprep.subr.mxu0 %v4897
        %4951 = vmatpush1.xpose.msra.mxu0 %v4896
        %4952 = vmatprep.subr.mxu0 %v4899
        %4953 = vmatpush1.xpose.msra.mxu0 %v4898
        %4954 = vmatprep.subr.mxu0 %v4901
        %4955 = vmatpush1.xpose.msra.mxu0 %v4900
        %4956 = vmatprep.subr.mxu0 %v4903
        %4957 = vmatpush1.xpose.msra.mxu0 %v4902
        %4958 = vmatprep.subr.mxu0 %v4905
        %4959 = vmatpush1.xpose.msra.mxu0 %v4904
        %4960 = vmatprep.subr.mxu0 %v4907
        %4961 = vmatpush1.xpose.msra.mxu0 %v4906
        %4962 = vmatprep.subr.mxu0 %v4909
        %4963 = vmatpush1.xpose.msra.mxu0 %v4908
        %4964 = vmatprep.subr.mxu0 0.0
        %4965 = vmatpush1.xpose.msra.mxu0 0.0
        %4966 = vmatprep.subr.mxu0 0.0
        %4967 = vmatpush1.xpose.msra.mxu0 0.0
        %4968 = vmatprep.subr.mxu0 0.0
        %4969 = vmatpush1.xpose.msra.mxu0 0.0
        %4970 = vmatprep.subr.mxu0 0.0
        %4971 = vmatpush1.xpose.msra.mxu0 0.0
        %4972 = vmatprep.subr.mxu0 0.0
        %4973 = vmatpush1.xpose.msra.mxu0 0.0
        %4974 = vmatprep.subr.mxu0 0.0
        %4975 = vmatpush1.xpose.msra.mxu0 0.0
        %4976 = vmatprep.subr.mxu0 0.0
        %4977 = vmatpush1.xpose.msra.mxu0 0.0
        %4978 = vmatprep.subr.mxu0 0.0
        %4979 = vmatpush1.xpose.msra.mxu0 0.0
        %4980 = vmatprep.subr.mxu0 0.0
        %4981 = vmatpush1.xpose.msra.mxu0 0.0
        %4982 = vmatprep.subr.mxu0 0.0
        %4983 = vmatpush1.xpose.msra.mxu0 0.0
        %4984 = vmatprep.subr.mxu0 0.0
        %4985 = vmatpush1.xpose.msra.mxu0 0.0
        %4986 = vmatprep.subr.mxu0 0.0
        %4987 = vmatpush1.xpose.msra.mxu0 0.0
        %4988 = vmatprep.subr.mxu0 0.0
        %4989 = vmatpush1.xpose.msra.mxu0 0.0
        %4990 = vmatprep.subr.mxu0 0.0
        %4991 = vmatpush1.xpose.msra.mxu0 0.0
        %4992 = vmatprep.subr.mxu0 0.0
        %4993 = vmatpush1.xpose.msra.mxu0 0.0
        %4994 = vmatprep.subr.mxu0 0.0
        %4995 = vmatpush1.xpose.msra.mxu0 0.0
        %4996 = vmatprep.mubr.f32.mxu0 %v4929
        %4997 = vmatmul.mubr.f32.gmra.mrb[0].mxu0 %v4925
        %v4998 = vpop.f32.mrb[0].mxu0
        %v4999 = vadd.f32 %v4920, %v4998
        %v5000 = vpop.f32.mrb[0].mxu0
        %5001 = vdwg.mxu0
        %5002 = vst [vmem:[%s450] sm:$0x1] %v4999
        %v5003 = vlaneseq
        %v5004 = vand.u32 %v5003, 127
        %s5005 = smul.u32 %s35, 128
        %v5006 = vstv %s5005
        %v5007 = vadd.s32 %v5004, %v5006
        %vm5008 = vcmp.lt.s32.totalorder %v5007, 300
        %v5009 = vsel %vm5008, %v4999, -inf
        %v5010 = vld [vmem:[#allocation2] sm:$0x1]
        %vm5011 = vcmask 1040384
        %v5012 = vsel %vm5011, %v5009, -inf
        %5013 = vmax.xlane.f32.xlu0 %v5012
        %v5014 = vpop.xlane.xlu0 %5013
        %v5015 = vmax.f32 %v5010, %v5014
        %v5016 = vsub.f32 %v5010, %v5015
        %v5017 = vmul.f32 %v5016, 1.442695
        %v5018 = vpow.pop %v5017
        %5020 = vset.pattern.permute.xlu0 0
        %5021 = vperm.xlu0 %5020, %v5015
        %v5022 = vpop.permute.xlu0 %5021
        %v5024 = vlaneseq
        %v5025 = vshrl.u32 %v5024, 7
        %v5026 = vsub.s32 0, %v5025
        %v5027 = vrot.slane %v5022, %v5026
        %v5028 = vsub.f32 %v5009, %v5027
        %v5029 = vmul.f32 %v5028, 1.442695
        %v5030 = vpow.pop %v5029
        %v5031 = vld [vmem:[#allocation3] sm:$0x1]
        %v5032 = vmul.f32 %v5018, %v5031
        %v5033 = vsel %vm5011, %v5030, 0.0
        %5034 = vadd.xlane.f32.xlu0 %v5033
        %v5035 = vpop.xlane.xlu0 %5034
        %v5036 = vadd.f32 %v5032, %v5035
        %vm5037 = vcmask 0
        %5038 = vst.msk [vmem:[#allocation3] sm:$0x1] %vm5037, %v5036
        %v5039 = vld [vmem:[#allocation4] sm:$0xf]
        %5041 = vset.pattern.permute.xlu0 0
        %5042 = vperm.xlu0 %5041, %v5018
        %v5043 = vpop.permute.xlu0 %5042
        %v5045 = vlaneseq
        %v5046 = vshrl.u32 %v5045, 7
        %v5047 = vsub.s32 0, %v5046
        %v5048 = vrot.slane %v5043, %v5047
        %v5049 = vmul.f32 %v5048, %v5039
        %5050 = vmatprep.subr.mxu0 %v3317
        %5051 = vmatpush1.msra.mxu0 %v3316
        %5052 = vmatprep.subr.mxu0 %v3321
        %5053 = vmatpush1.msra.mxu0 %v3320
        %5054 = vmatprep.subr.mxu0 %v3325
        %5055 = vmatpush1.msra.mxu0 %v3324
        %5056 = vmatprep.subr.mxu0 %v3329
        %5057 = vmatpush1.msra.mxu0 %v3328
        %5058 = vmatprep.subr.mxu0 %v3333
        %5059 = vmatpush1.msra.mxu0 %v3332
        %5060 = vmatprep.subr.mxu0 %v3337
        %5061 = vmatpush1.msra.mxu0 %v3336
        %5062 = vmatprep.subr.mxu0 %v3341
        %5063 = vmatpush1.msra.mxu0 %v3340
        %5064 = vmatprep.subr.mxu0 %v3345
        %5065 = vmatpush1.msra.mxu0 %v3344
        %5066 = vmatprep.subr.mxu0 %v3349
        %5067 = vmatpush1.msra.mxu0 %v3348
        %5068 = vmatprep.subr.mxu0 %v3353
        %5069 = vmatpush1.msra.mxu0 %v3352
        %5070 = vmatprep.subr.mxu0 %v3357
        %5071 = vmatpush1.msra.mxu0 %v3356
        %5072 = vmatprep.subr.mxu0 %v3361
        %5073 = vmatpush1.msra.mxu0 %v3360
        %5074 = vmatprep.subr.mxu0 %v3365
        %5075 = vmatpush1.msra.mxu0 %v3364
        %5076 = vmatprep.subr.mxu0 %v3369
        %5077 = vmatpush1.msra.mxu0 %v3368
        %5078 = vmatprep.subr.mxu0 %v3373
        %5079 = vmatpush1.msra.mxu0 %v3372
        %5080 = vmatprep.subr.mxu0 %v3377
        %5081 = vmatpush1.msra.mxu0 %v3376
        %5082 = vmatprep.subr.mxu0 0.0
        %5083 = vmatpush1.msra.mxu0 0.0
        %5084 = vmatprep.subr.mxu0 0.0
        %5085 = vmatpush1.msra.mxu0 0.0
        %5086 = vmatprep.subr.mxu0 0.0
        %5087 = vmatpush1.msra.mxu0 0.0
        %5088 = vmatprep.subr.mxu0 0.0
        %5089 = vmatpush1.msra.mxu0 0.0
        %5090 = vmatprep.subr.mxu0 0.0
        %5091 = vmatpush1.msra.mxu0 0.0
        %5092 = vmatprep.subr.mxu0 0.0
        %5093 = vmatpush1.msra.mxu0 0.0
        %5094 = vmatprep.subr.mxu0 0.0
        %5095 = vmatpush1.msra.mxu0 0.0
        %5096 = vmatprep.subr.mxu0 0.0
        %5097 = vmatpush1.msra.mxu0 0.0
        %5098 = vmatprep.subr.mxu0 0.0
        %5099 = vmatpush1.msra.mxu0 0.0
        %5100 = vmatprep.subr.mxu0 0.0
        %5101 = vmatpush1.msra.mxu0 0.0
        %5102 = vmatprep.subr.mxu0 0.0
        %5103 = vmatpush1.msra.mxu0 0.0
        %5104 = vmatprep.subr.mxu0 0.0
        %5105 = vmatpush1.msra.mxu0 0.0
        %5106 = vmatprep.subr.mxu0 0.0
        %5107 = vmatpush1.msra.mxu0 0.0
        %5108 = vmatprep.subr.mxu0 0.0
        %5109 = vmatpush1.msra.mxu0 0.0
        %5110 = vmatprep.subr.mxu0 0.0
        %5111 = vmatpush1.msra.mxu0 0.0
        %5112 = vmatprep.subr.mxu0 0.0
        %5113 = vmatpush1.msra.mxu0 0.0
        %5114 = vmatprep.mubr.f32.mxu0 0.0
        %5115 = vmatmul.mubr.f32.gmra.mrb[0].mxu0 %v5030
        %v5116 = vpop.f32.mrb[0].mxu0
        %v5117 = vadd.f32 0.0, %v5116
        %v5118 = vpop.f32.mrb[0].mxu0
        %v5119 = vadd.f32 0.0, %v5118
        %5120 = vdwg.mxu0
        %5121 = vmatprep.subr.mxu0 %v3319
        %5122 = vmatpush1.msra.mxu0 %v3318
        %5123 = vmatprep.subr.mxu0 %v3323
        %5124 = vmatpush1.msra.mxu0 %v3322
        %5125 = vmatprep.subr.mxu0 %v3327
        %5126 = vmatpush1.msra.mxu0 %v3326
        %5127 = vmatprep.subr.mxu0 %v3331
        %5128 = vmatpush1.msra.mxu0 %v3330
        %5129 = vmatprep.subr.mxu0 %v3335
        %5130 = vmatpush1.msra.mxu0 %v3334
        %5131 = vmatprep.subr.mxu0 %v3339
        %5132 = vmatpush1.msra.mxu0 %v3338
        %5133 = vmatprep.subr.mxu0 %v3343
        %5134 = vmatpush1.msra.mxu0 %v3342
        %5135 = vmatprep.subr.mxu0 %v3347
        %5136 = vmatpush1.msra.mxu0 %v3346
        %5137 = vmatprep.subr.mxu0 %v3351
        %5138 = vmatpush1.msra.mxu0 %v3350
        %5139 = vmatprep.subr.mxu0 %v3355
        %5140 = vmatpush1.msra.mxu0 %v3354
        %5141 = vmatprep.subr.mxu0 %v3359
        %5142 = vmatpush1.msra.mxu0 %v3358
        %5143 = vmatprep.subr.mxu0 %v3363
        %5144 = vmatpush1.msra.mxu0 %v3362
        %5145 = vmatprep.subr.mxu0 %v3367
        %5146 = vmatpush1.msra.mxu0 %v3366
        %5147 = vmatprep.subr.mxu0 %v3371
        %5148 = vmatpush1.msra.mxu0 %v3370
        %5149 = vmatprep.subr.mxu0 %v3375
        %5150 = vmatpush1.msra.mxu0 %v3374
        %5151 = vmatprep.subr.mxu0 %v3379
        %5152 = vmatpush1.msra.mxu0 %v3378
        %5153 = vmatprep.subr.mxu0 0.0
        %5154 = vmatpush1.msra.mxu0 0.0
        %5155 = vmatprep.subr.mxu0 0.0
        %5156 = vmatpush1.msra.mxu0 0.0
        %5157 = vmatprep.subr.mxu0 0.0
        %5158 = vmatpush1.msra.mxu0 0.0
        %5159 = vmatprep.subr.mxu0 0.0
        %5160 = vmatpush1.msra.mxu0 0.0
        %5161 = vmatprep.subr.mxu0 0.0
        %5162 = vmatpush1.msra.mxu0 0.0
        %5163 = vmatprep.subr.mxu0 0.0
        %5164 = vmatpush1.msra.mxu0 0.0
        %5165 = vmatprep.subr.mxu0 0.0
        %5166 = vmatpush1.msra.mxu0 0.0
        %5167 = vmatprep.subr.mxu0 0.0
        %5168 = vmatpush1.msra.mxu0 0.0
        %5169 = vmatprep.subr.mxu0 0.0
        %5170 = vmatpush1.msra.mxu0 0.0
        %5171 = vmatprep.subr.mxu0 0.0
        %5172 = vmatpush1.msra.mxu0 0.0
        %5173 = vmatprep.subr.mxu0 0.0
        %5174 = vmatpush1.msra.mxu0 0.0
        %5175 = vmatprep.subr.mxu0 0.0
        %5176 = vmatpush1.msra.mxu0 0.0
        %5177 = vmatprep.subr.mxu0 0.0
        %5178 = vmatpush1.msra.mxu0 0.0
        %5179 = vmatprep.subr.mxu0 0.0
        %5180 = vmatpush1.msra.mxu0 0.0
        %5181 = vmatprep.subr.mxu0 0.0
        %5182 = vmatpush1.msra.mxu0 0.0
        %5183 = vmatprep.subr.mxu0 0.0
        %5184 = vmatpush1.msra.mxu0 0.0
        %5185 = vmatprep.mubr.f32.mxu0 0.0
        %5186 = vmatmul.mubr.f32.gmra.mrb[0].mxu0 %v5030
        %v5187 = vpop.f32.mrb[0].mxu0
        %v5188 = vadd.f32 0.0, %v5187
        %v5189 = vpop.f32.mrb[0].mxu0
        %v5190 = vadd.f32 0.0, %v5189
        %5191 = vdwg.mxu0
        %v5196 = vcombine.low %v5117, %v5119
        %v5197 = vcombine.low %v5188, %v5190
        %v5199 = vunpack.c.l.s4 1966171168
        %v5200 = vunpack.c.0.s8 %v5199
        %v5201 = vlaneseq
        %v5202 = vshrl.u32 %v5201, 7
        %v5203 = vsub.s32 %v5200, %v5202
        %v5204 = vrot.slane %v5196, %v5203
        %v5206 = vunpack.c.l.s4 1966171168
        %v5207 = vunpack.c.0.s8 %v5206
        %v5208 = vlaneseq
        %v5209 = vshrl.u32 %v5208, 7
        %v5210 = vsub.s32 %v5207, %v5209
        %v5211 = vrot.slane %v5197, %v5210
        %v5212 = vcombine.low %v5204, %v5211
        %v5214 = vunpack.c.l.s4 1966171168
        %v5215 = vunpack.c.0.s8 %v5214
        %v5216 = vlaneseq
        %v5217 = vshrl.u32 %v5216, 7
        %v5218 = vsub.s32 %v5215, %v5217
        %v5219 = vrot.slane %v5212, %v5218
        %v5221 = vadd.f32 %v5049, %v5219
        %v5222 = vlaneseq
        %vm5223 = vcmp.ge.s32.totalorder %v5222, 0
        %vm5224 = vcmp.lt.s32.totalorder %v5222, 512
        %vm5225 = vmand %vm5223, %vm5224
        %5226 = vst.msk [vmem:[#allocation4] sm:$0xf] %vm5225, %v5221
        %5227 = vst.msk [vmem:[#allocation2] sm:$0x1] %vm5037, %v5015
        %p5228 = scmp.eq.s32.totalorder %s35, 2
        // Predicated region
        $region73: #{tpu_custom_call.1} parent=55 // pred_check
          %p5229 = pneg %p5228
        $region74: #{tpu_custom_call.1} parent=55 // pred_check_branch
          %5231 = sbr.rel (%p5229) target = $region76
        $region75: #{tpu_custom_call.1} parent=55 // pred_region
          %v5232 = vld [vmem:[#allocation4] sm:$0xf]
          %v5233 = vld [vmem:[#allocation3] sm:$0x1]
          %v5234 = vrcp.pop %v5233
          %5236 = vset.pattern.permute.xlu0 0
          %5237 = vperm.xlu0 %5236, %v5234
          %v5238 = vpop.permute.xlu0 %5237
          %v5240 = vlaneseq
          %v5241 = vshrl.u32 %v5240, 7
          %v5242 = vsub.s32 0, %v5241
          %v5243 = vrot.slane %v5238, %v5242
          %v5244 = vmul.f32 %v5232, %v5243
          %5245 = vst.msk [vmem:[#allocation16] sm:$0xf] %vm5225, %v5244
          %v5246 = vld [vmem:[%s7] sm:$0xff]
          %v5247 = vld [vmem:[%s7 + $0x8] sm:$0xff]
          %v5248 = vld [vmem:[%s7 + $0x10] sm:$0xff]
          %v5249 = vld [vmem:[%s7 + $0x18] sm:$0xff]
          %v5250 = vld [vmem:[%s7 + $0x20] sm:$0xff]
          %v5251 = vld [vmem:[%s7 + $0x28] sm:$0xff]
          %v5252 = vld [vmem:[%s7 + $0x30] sm:$0xff]
          %v5253 = vld [vmem:[%s7 + $0x38] sm:$0xff]
          %v5254 = vld [vmem:[%s7 + $0x40] sm:$0xff]
          %v5255 = vld [vmem:[%s7 + $0x48] sm:$0xff]
          %v5256 = vld [vmem:[%s7 + $0x50] sm:$0xff]
          %v5257 = vld [vmem:[%s7 + $0x58] sm:$0xff]
          %v5258 = vld [vmem:[%s7 + $0x60] sm:$0xff]
          %v5259 = vld [vmem:[%s7 + $0x68] sm:$0xff]
          %v5260 = vld [vmem:[%s7 + $0x70] sm:$0xff]
          %v5261 = vld [vmem:[%s7 + $0x78] sm:$0xff]
          %v5262 = vld [vmem:[%s7 + $0x80] sm:$0xff]
          %v5263 = vld [vmem:[%s7 + $0x88] sm:$0xff]
          %v5264 = vld [vmem:[%s7 + $0x90] sm:$0xff]
          %v5265 = vld [vmem:[%s7 + $0x98] sm:$0xff]
          %v5266 = vld [vmem:[%s7 + $0xa0] sm:$0xff]
          %v5267 = vld [vmem:[%s7 + $0xa8] sm:$0xff]
          %v5268 = vld [vmem:[%s7 + $0xb0] sm:$0xff]
          %v5269 = vld [vmem:[%s7 + $0xb8] sm:$0xff]
          %v5270 = vld [vmem:[%s7 + $0xc0] sm:$0xff]
          %v5271 = vld [vmem:[%s7 + $0xc8] sm:$0xff]
          %v5272 = vld [vmem:[%s7 + $0xd0] sm:$0xff]
          %v5273 = vld [vmem:[%s7 + $0xd8] sm:$0xff]
          %v5274 = vld [vmem:[%s7 + $0xe0] sm:$0xff]
          %v5275 = vld [vmem:[%s7 + $0xe8] sm:$0xff]
          %v5276 = vld [vmem:[%s7 + $0xf0] sm:$0xff]
          %v5277 = vld [vmem:[%s7 + $0xf8] sm:$0xff]
          %v5278 = vld [vmem:[%s7 + $0x100] sm:$0xff]
          %v5279 = vld [vmem:[%s7 + $0x108] sm:$0xff]
          %v5280 = vld [vmem:[%s7 + $0x110] sm:$0xff]
          %v5281 = vld [vmem:[%s7 + $0x118] sm:$0xff]
          %v5282 = vld [vmem:[%s7 + $0x120] sm:$0xff]
          %v5283 = vld [vmem:[%s7 + $0x128] sm:$0xff]
          %v5284 = vld [vmem:[%s7 + $0x130] sm:$0xff]
          %v5285 = vld [vmem:[%s7 + $0x138] sm:$0xff]
          %v5286 = vld [vmem:[%s7 + $0x140] sm:$0xff]
          %v5287 = vld [vmem:[%s7 + $0x148] sm:$0xff]
          %v5288 = vld [vmem:[%s7 + $0x150] sm:$0xff]
          %v5289 = vld [vmem:[%s7 + $0x158] sm:$0xff]
          %v5290 = vld [vmem:[%s7 + $0x160] sm:$0xff]
          %v5291 = vld [vmem:[%s7 + $0x168] sm:$0xff]
          %v5292 = vld [vmem:[%s7 + $0x170] sm:$0xff]
          %v5293 = vld [vmem:[%s7 + $0x178] sm:$0xff]
          %v5294 = vld [vmem:[%s7 + $0x180] sm:$0xff]
          %v5295 = vld [vmem:[%s7 + $0x188] sm:$0xff]
          %v5296 = vld [vmem:[%s7 + $0x190] sm:$0xff]
          %v5297 = vld [vmem:[%s7 + $0x198] sm:$0xff]
          %v5298 = vld [vmem:[%s7 + $0x1a0] sm:$0xff]
          %v5299 = vld [vmem:[%s7 + $0x1a8] sm:$0xff]
          %v5300 = vld [vmem:[%s7 + $0x1b0] sm:$0xff]
          %v5301 = vld [vmem:[%s7 + $0x1b8] sm:$0xff]
          %v5302 = vld [vmem:[%s7 + $0x1c0] sm:$0xff]
          %v5303 = vld [vmem:[%s7 + $0x1c8] sm:$0xff]
          %v5304 = vld [vmem:[%s7 + $0x1d0] sm:$0xff]
          %v5305 = vld [vmem:[%s7 + $0x1d8] sm:$0xff]
          %v5306 = vld [vmem:[%s7 + $0x1e0] sm:$0xff]
          %v5307 = vld [vmem:[%s7 + $0x1e8] sm:$0xff]
          %v5308 = vld [vmem:[%s7 + $0x1f0] sm:$0xff]
          %v5309 = vld [vmem:[%s7 + $0x1f8] sm:$0xff]
          %v5310 = vld [vmem:[%s8] sm:$0x1]
          %v5312 = vlaneseq
          %v5313 = vshrl.u32 %v5312, 7
          %v5314 = vsub.s32 0, %v5313
          %v5315 = vrot.slane %v5244, %v5314
          %v5316 = vlaneseq
          %v5317 = vshrl.u32 %v5316, 7
          %v5318 = vsub.s32 1, %v5317
          %v5319 = vrot.slane %v5244, %v5318
          %v5320 = vlaneseq
          %v5321 = vshrl.u32 %v5320, 7
          %v5322 = vsub.s32 2, %v5321
          %v5323 = vrot.slane %v5244, %v5322
          %v5324 = vlaneseq
          %v5325 = vshrl.u32 %v5324, 7
          %v5326 = vsub.s32 3, %v5325
          %v5327 = vrot.slane %v5244, %v5326
          %5332 = vmatprep.subr.mxu0 0.0
          %5333 = vmatpush1.msra.mxu0 %v5246
          %5334 = vmatprep.subr.mxu0 0.0
          %5335 = vmatpush1.msra.mxu0 %v5247
          %5336 = vmatprep.subr.mxu0 0.0
          %5337 = vmatpush1.msra.mxu0 %v5248
          %5338 = vmatprep.subr.mxu0 0.0
          %5339 = vmatpush1.msra.mxu0 %v5249
          %5340 = vmatprep.subr.mxu0 0.0
          %5341 = vmatpush1.msra.mxu0 %v5250
          %5342 = vmatprep.subr.mxu0 0.0
          %5343 = vmatpush1.msra.mxu0 %v5251
          %5344 = vmatprep.subr.mxu0 0.0
          %5345 = vmatpush1.msra.mxu0 %v5252
          %5346 = vmatprep.subr.mxu0 0.0
          %5347 = vmatpush1.msra.mxu0 %v5253
          %5348 = vmatprep.subr.mxu0 0.0
          %5349 = vmatpush1.msra.mxu0 %v5254
          %5350 = vmatprep.subr.mxu0 0.0
          %5351 = vmatpush1.msra.mxu0 %v5255
          %5352 = vmatprep.subr.mxu0 0.0
          %5353 = vmatpush1.msra.mxu0 %v5256
          %5354 = vmatprep.subr.mxu0 0.0
          %5355 = vmatpush1.msra.mxu0 %v5257
          %5356 = vmatprep.subr.mxu0 0.0
          %5357 = vmatpush1.msra.mxu0 %v5258
          %5358 = vmatprep.subr.mxu0 0.0
          %5359 = vmatpush1.msra.mxu0 %v5259
          %5360 = vmatprep.subr.mxu0 0.0
          %5361 = vmatpush1.msra.mxu0 %v5260
          %5362 = vmatprep.subr.mxu0 0.0
          %5363 = vmatpush1.msra.mxu0 %v5261
          %5364 = vmatprep.subr.mxu0 0.0
          %5365 = vmatpush1.msra.mxu0 %v5262
          %5366 = vmatprep.subr.mxu0 0.0
          %5367 = vmatpush1.msra.mxu0 %v5263
          %5368 = vmatprep.subr.mxu0 0.0
          %5369 = vmatpush1.msra.mxu0 %v5264
          %5370 = vmatprep.subr.mxu0 0.0
          %5371 = vmatpush1.msra.mxu0 %v5265
          %5372 = vmatprep.subr.mxu0 0.0
          %5373 = vmatpush1.msra.mxu0 %v5266
          %5374 = vmatprep.subr.mxu0 0.0
          %5375 = vmatpush1.msra.mxu0 %v5267
          %5376 = vmatprep.subr.mxu0 0.0
          %5377 = vmatpush1.msra.mxu0 %v5268
          %5378 = vmatprep.subr.mxu0 0.0
          %5379 = vmatpush1.msra.mxu0 %v5269
          %5380 = vmatprep.subr.mxu0 0.0
          %5381 = vmatpush1.msra.mxu0 %v5270
          %5382 = vmatprep.subr.mxu0 0.0
          %5383 = vmatpush1.msra.mxu0 %v5271
          %5384 = vmatprep.subr.mxu0 0.0
          %5385 = vmatpush1.msra.mxu0 %v5272
          %5386 = vmatprep.subr.mxu0 0.0
          %5387 = vmatpush1.msra.mxu0 %v5273
          %5388 = vmatprep.subr.mxu0 0.0
          %5389 = vmatpush1.msra.mxu0 %v5274
          %5390 = vmatprep.subr.mxu0 0.0
          %5391 = vmatpush1.msra.mxu0 %v5275
          %5392 = vmatprep.subr.mxu0 0.0
          %5393 = vmatpush1.msra.mxu0 %v5276
          %5394 = vmatprep.subr.mxu0 0.0
          %5395 = vmatpush1.msra.mxu0 %v5277
          %5396 = vmatprep.mubr.f32.mxu0 %v5319
          %5397 = vmatmul.mubr.f32.gmra.mrb[0].mxu0 %v5315
          %v5398 = vpop.f32.mrb[0].mxu0
          %v5399 = vadd.f32 %v5310, %v5398
          %v5400 = vpop.f32.mrb[0].mxu0
          %5401 = vdwg.mxu0
          %5402 = vmatprep.subr.mxu0 0.0
          %5403 = vmatpush1.msra.mxu0 %v5278
          %5404 = vmatprep.subr.mxu0 0.0
          %5405 = vmatpush1.msra.mxu0 %v5279
          %5406 = vmatprep.subr.mxu0 0.0
          %5407 = vmatpush1.msra.mxu0 %v5280
          %5408 = vmatprep.subr.mxu0 0.0
          %5409 = vmatpush1.msra.mxu0 %v5281
          %5410 = vmatprep.subr.mxu0 0.0
          %5411 = vmatpush1.msra.mxu0 %v5282
          %5412 = vmatprep.subr.mxu0 0.0
          %5413 = vmatpush1.msra.mxu0 %v5283
          %5414 = vmatprep.subr.mxu0 0.0
          %5415 = vmatpush1.msra.mxu0 %v5284
          %5416 = vmatprep.subr.mxu0 0.0
          %5417 = vmatpush1.msra.mxu0 %v5285
          %5418 = vmatprep.subr.mxu0 0.0
          %5419 = vmatpush1.msra.mxu0 %v5286
          %5420 = vmatprep.subr.mxu0 0.0
          %5421 = vmatpush1.msra.mxu0 %v5287
          %5422 = vmatprep.subr.mxu0 0.0
          %5423 = vmatpush1.msra.mxu0 %v5288
          %5424 = vmatprep.subr.mxu0 0.0
          %5425 = vmatpush1.msra.mxu0 %v5289
          %5426 = vmatprep.subr.mxu0 0.0
          %5427 = vmatpush1.msra.mxu0 %v5290
          %5428 = vmatprep.subr.mxu0 0.0
          %5429 = vmatpush1.msra.mxu0 %v5291
          %5430 = vmatprep.subr.mxu0 0.0
          %5431 = vmatpush1.msra.mxu0 %v5292
          %5432 = vmatprep.subr.mxu0 0.0
          %5433 = vmatpush1.msra.mxu0 %v5293
          %5434 = vmatprep.subr.mxu0 0.0
          %5435 = vmatpush1.msra.mxu0 %v5294
          %5436 = vmatprep.subr.mxu0 0.0
          %5437 = vmatpush1.msra.mxu0 %v5295
          %5438 = vmatprep.subr.mxu0 0.0
          %5439 = vmatpush1.msra.mxu0 %v5296
          %5440 = vmatprep.subr.mxu0 0.0
          %5441 = vmatpush1.msra.mxu0 %v5297
          %5442 = vmatprep.subr.mxu0 0.0
          %5443 = vmatpush1.msra.mxu0 %v5298
          %5444 = vmatprep.subr.mxu0 0.0
          %5445 = vmatpush1.msra.mxu0 %v5299
          %5446 = vmatprep.subr.mxu0 0.0
          %5447 = vmatpush1.msra.mxu0 %v5300
          %5448 = vmatprep.subr.mxu0 0.0
          %5449 = vmatpush1.msra.mxu0 %v5301
          %5450 = vmatprep.subr.mxu0 0.0
          %5451 = vmatpush1.msra.mxu0 %v5302
          %5452 = vmatprep.subr.mxu0 0.0
          %5453 = vmatpush1.msra.mxu0 %v5303
          %5454 = vmatprep.subr.mxu0 0.0
          %5455 = vmatpush1.msra.mxu0 %v5304
          %5456 = vmatprep.subr.mxu0 0.0
          %5457 = vmatpush1.msra.mxu0 %v5305
          %5458 = vmatprep.subr.mxu0 0.0
          %5459 = vmatpush1.msra.mxu0 %v5306
          %5460 = vmatprep.subr.mxu0 0.0
          %5461 = vmatpush1.msra.mxu0 %v5307
          %5462 = vmatprep.subr.mxu0 0.0
          %5463 = vmatpush1.msra.mxu0 %v5308
          %5464 = vmatprep.subr.mxu0 0.0
          %5465 = vmatpush1.msra.mxu0 %v5309
          %5466 = vmatprep.mubr.f32.mxu0 %v5327
          %5467 = vmatmul.mubr.f32.gmra.mrb[0].mxu0 %v5323
          %v5468 = vpop.f32.mrb[0].mxu0
          %v5469 = vadd.f32 %v5399, %v5468
          %v5470 = vpop.f32.mrb[0].mxu0
          %5471 = vdwg.mxu0
          %vm5472 = vcmask 8192
          %5473 = vst.msk [vmem:[#allocation13] sm:$0x1] %vm5472, %v5469
          %v5474 = vsel %vm5472, %v5469, -inf
          %5475 = vmax.xlane.f32.xlu0 %v5474
          %v5476 = vpop.xlane.xlu0 %5475
          %v5477 = vsub.f32 %v5469, %v5476
          %v5478 = vmul.f32 %v5477, 1.442695
          %v5479 = vpow.pop %v5478
          %v5480 = vsel %vm5472, %v5479, 0.0
          %5481 = vadd.xlane.f32.xlu0 %v5480
          %v5482 = vpop.xlane.xlu0 %5481
          %v5483 = vrcp.pop %v5482
          %v5484 = vmul.f32 %v5479, %v5483
          %5485 = vst.msk [vmem:[#allocation15] sm:$0x1] %vm5472, %v5484
        $region76: #{tpu_custom_call.1} parent=55 // pred_fallthru
          _
        %s5486 = sand.u32 %s237, 1
        %s5487 = scalar_lea.sflag [#allocation8], %s5486
        %s5488 = sand.u32 %s237, 1
        %s5489 = scalar_lea.vmem [#allocation12], %s5488
        // Predicated region
        $region77: #{tpu_custom_call.1} parent=55 // pred_check
          %p5490 = pneg %p247
        $region78: #{tpu_custom_call.1} parent=55 // pred_check_branch
          %5492 = sbr.rel (%p5490) target = $region80
        $region79: #{tpu_custom_call.1} parent=55 // pred_region
          %s5494 = ssub.s32 16, 16
          %5495 = vsyncadd %s5487, %s5494
          %s5496 = smul.addr %s35, 16
          %s5497 = scalar_lea.hbm %s9, %s5496
          %s5499 = sshll.u32 %s5489, 4
          %s5500 = int_to_ptr.vmem [resolvable:$true] %s5499
          %5502 = dma.vmem_to_hbm [thread:$0]  %s5500, 16, %s5497, %s5487
        $region80: #{tpu_custom_call.1} parent=55 // pred_fallthru
          _
        // Predicated region
        $region81: #{tpu_custom_call.1} parent=55 // pred_check
          %p5503 = pneg %p268
        $region82: #{tpu_custom_call.1} parent=55 // pred_check_branch
          %5505 = sbr.rel (%p5503) target = $region84
        $region83: #{tpu_custom_call.1} parent=55 // pred_region
          %s5507 = ssub.s32 16, 16
          %5508 = vsyncadd [#allocation14], %s5507
          %s5510 = sshll.u32 [#allocation13], 4
          %s5511 = int_to_ptr.vmem [resolvable:$true] %s5510
          %5513 = dma.vmem_to_hbm [thread:$0]  %s5511, 16, %s10, [#allocation14]
        $region84: #{tpu_custom_call.1} parent=55 // pred_fallthru
          _
        // Predicated region
        $region85: #{tpu_custom_call.1} parent=55 // pred_check
          %p5514 = pneg %p289
        $region86: #{tpu_custom_call.1} parent=55 // pred_check_branch
          %5516 = sbr.rel (%p5514) target = $region88
        $region87: #{tpu_custom_call.1} parent=55 // pred_region
          %s5518 = ssub.s32 16, 16
          %5519 = vsyncadd [#allocation14], %s5518
          %s5521 = sshll.u32 [#allocation15], 4
          %s5522 = int_to_ptr.vmem [resolvable:$true] %s5521
          %5524 = dma.vmem_to_hbm [thread:$0]  %s5522, 16, %s11, [#allocation14]
        $region88: #{tpu_custom_call.1} parent=55 // pred_fallthru
          _
        // Predicated region
        $region89: #{tpu_custom_call.1} parent=55 // pred_check
          %p5525 = pneg %p310
        $region90: #{tpu_custom_call.1} parent=55 // pred_check_branch
          %5527 = sbr.rel (%p5525) target = $region92
        $region91: #{tpu_custom_call.1} parent=55 // pred_region
          %s5529 = ssub.s32 64, 64
          %5530 = vsyncadd [#allocation17], %s5529
          %s5532 = sshll.u32 [#allocation16], 4
          %s5533 = int_to_ptr.vmem [resolvable:$true] %s5532
          %5535 = dma.vmem_to_hbm [thread:$0]  %s5533, 64, %s12, [#allocation17]
        $region92: #{tpu_custom_call.1} parent=55 // pred_fallthru
          _
        // Predicated region
        $region93: #{tpu_custom_call.1} parent=55 // pred_check
          %p5536 = pneg %p268
        $region94: #{tpu_custom_call.1} parent=55 // pred_check_branch
          %5538 = sbr.rel (%p5536) target = $region96
        $region95: #{tpu_custom_call.1} parent=55 // pred_region
          %5539 = dma.done [#allocation14], 16
        $region96: #{tpu_custom_call.1} parent=55 // pred_fallthru
          _
        // Predicated region
        $region97: #{tpu_custom_call.1} parent=55 // pred_check
          %p5540 = pneg %p289
        $region98: #{tpu_custom_call.1} parent=55 // pred_check_branch
          %5542 = sbr.rel (%p5540) target = $region100
        $region99: #{tpu_custom_call.1} parent=55 // pred_region
          %5543 = dma.done [#allocation14], 16
        $region100: #{tpu_custom_call.1} parent=55 // pred_fallthru
          _
        // Predicated region
        $region101: #{tpu_custom_call.1} parent=55 // pred_check
          %p5544 = pneg %p310
        $region102: #{tpu_custom_call.1} parent=55 // pred_check_branch
          %5546 = sbr.rel (%p5544) target = $region104
        $region103: #{tpu_custom_call.1} parent=55 // pred_region
          %5547 = dma.done [#allocation17], 64
        $region104: #{tpu_custom_call.1} parent=55 // pred_fallthru
          _
      $region56: #{tpu_custom_call.1} parent=5 // pred_fallthru
        _
      %p5548 = scmp.le.s32.totalorder 2, %s30
      // Predicated region
      $region105: #{tpu_custom_call.1} parent=5 // pred_check
        %p5549 = pneg %p5548
      $region106: #{tpu_custom_call.1} parent=5 // pred_check_branch
        %5551 = sbr.rel (%p5549) target = $region108
      $region107: #{tpu_custom_call.1} parent=5 // pred_region
        %s5552 = ssub.s32 %s30, 2
        // Predicated region
        $region109: #{tpu_custom_call.1} parent=107 // pred_check
          %p5553 = pneg %p253
        $region110: #{tpu_custom_call.1} parent=107 // pred_check_branch
          %5555 = sbr.rel (%p5553) target = $region112
        $region111: #{tpu_custom_call.1} parent=107 // pred_region
          %s5556 = sand.u32 %s238, 1
          %s5557 = scalar_lea.sflag [#allocation8], %s5556
          %s5558 = sand.u32 %s238, 1
          %s5559 = scalar_lea.vmem [#allocation12], %s5558
          %5560 = dma.done %s5557, 16
        $region112: #{tpu_custom_call.1} parent=107 // pred_fallthru
          _
      $region108: #{tpu_custom_call.1} parent=5 // pred_fallthru
        _
    $region6: #{tpu_custom_call.1} parent=1 // loop_footer
      %s34 = sadd.s32 1, %s30
    $region7: #{tpu_custom_call.1} parent=1 // loop_footer_branch
      %29 = sbr.rel target = $region3
    $region8: #{tpu_custom_call.1} parent=1 // loop_exit
      _
    %5561 = vsyncpa [#allocation7], 1
    %s5562 = scalar_lea.sflag [#allocation7], 1
    %5563 = vsyncpa %s5562, 1
    %5564 = vsyncpa [#allocation10], 1
    %5565 = vsyncpa [#allocation8], 1
    %s5566 = scalar_lea.sflag [#allocation8], 1
    %5567 = vsyncpa %s5566, 1
    %5568 = vsyncpa [#allocation14], 1
    %5569 = vsyncpa [#allocation17], 1

</llo_original>
